<compile_context>
chip_gen: v7x
topology: tpu7x:2x2x1
jax: 0.10.0
libtpu: 0.0.40
codegen_flags: <defaults>
</compile_context>

<pallas_src>
import math
from functools import partial

import jax
import jax.numpy as jnp
from jax import lax
from jax.experimental import pallas as pl
from jax.experimental.pallas import tpu as pltpu

NEG_INF = -1e30  # finite "-inf": exp() underflows to exactly 0, avoids NaN on masked rows


# ------------------------------ fused kernel -------------------------------

def _make_decoder_kernel(num_heads):
    H = num_heads

    def kernel(x0_ref, enc_ref, pad_ref,
               wqkv_s_ref, bqkv_s_ref, wo_s_ref, bo_s_ref, ln1g_ref, ln1b_ref,
               wq_c_ref, bq_c_ref, wkv_c_ref, bkv_c_ref, wo_c_ref, bo_c_ref,
               ln2g_ref, ln2b_ref,
               w1_ref, b1_ref, w2_ref, b2_ref, ln3g_ref, ln3b_ref,
               x_out_ref, attn_ref,
               x_scr, head_scr):
        L, E = x_scr.shape
        Dh = E // H
        layer = pl.program_id(1)

        @pl.when(layer == 0)
        def _load_initial_activations():
            x_scr[...] = x0_ref[...]

        def matmul(a, w_ref, b_ref):
            # bf16 operands, f32 MXU accumulation; weights are pre-transposed (in, out)
            return jnp.dot(a.astype(jnp.bfloat16), w_ref[...],
                           preferred_element_type=jnp.float32) + b_ref[...]

        def layer_norm(v, g_ref, b_ref):
            mu = jnp.mean(v, axis=-1, keepdims=True)
            var = jnp.mean(jnp.square(v - mu), axis=-1, keepdims=True)
            return (v - mu) * lax.rsqrt(var + 1e-5) * g_ref[...] + b_ref[...]

        def mha(q, k, v, add_mask, average):
            # q: (Lq, E), k/v: (Sk, E); per-head scores + softmax; heads concatenated
            # into head_scr; optionally returns the head-averaged probabilities.
            avg = None
            for h in range(H):                       # static unroll, H is tiny
                hs = slice(h * Dh, (h + 1) * Dh)
                qh = q[:, hs].astype(jnp.bfloat16)
                kh = k[:, hs].astype(jnp.bfloat16)
                vh = v[:, hs].astype(jnp.bfloat16)
                s = jnp.einsum("ld,sd->ls", qh, kh,
                               preferred_element_type=jnp.float32)
                if add_mask is not None:
                    s = s + add_mask
                m = jnp.max(s, axis=-1, keepdims=True)
                e = jnp.exp(s - m)
                p = e * pl.reciprocal(jnp.sum(e, axis=-1, keepdims=True), approx=True)
                head_scr[:, hs] = jnp.dot(p.astype(jnp.bfloat16), vh,
                                          preferred_element_type=jnp.float32)
                if average:
                    avg = p if avg is None else avg + p
            out = head_scr[...]
            if average:
                avg = avg * jnp.float32(1.0 / H)
            return out, avg

        x = x_scr[...]                                           # (L, E) f32 carry

        # ---- self-attention: fused QKV, causal + key-padding mask built in-kernel ----
        qkv = matmul(x, wqkv_s_ref, bqkv_s_ref)                  # (L, 3E), Q pre-scaled
        row = lax.broadcasted_iota(jnp.int32, (L, L), 0)
        col = lax.broadcasted_iota(jnp.int32, (L, L), 1)
        causal = jnp.where(col > row, jnp.float32(NEG_INF), jnp.float32(0.0))
        mask = causal + pad_ref[...]                             # (L, L) + (1, L)
        sa, _ = mha(qkv[:, :E], qkv[:, E:2 * E], qkv[:, 2 * E:], mask, average=False)
        x = layer_norm(x + matmul(sa, wo_s_ref, bo_s_ref), ln1g_ref, ln1b_ref)

        # ---- cross-attention over encoder image features: fused KV projection --------
        qc = matmul(x, wq_c_ref, bq_c_ref)                       # (L, E), Q pre-scaled
        kv = matmul(enc_ref[...], wkv_c_ref, bkv_c_ref)          # (S, 2E)
        ca, avg_attn = mha(qc, kv[:, :E], kv[:, E:], None, average=True)
        attn_ref[...] = avg_attn                                 # head-averaged (L, S)
        x = layer_norm(x + matmul(ca, wo_c_ref, bo_c_ref), ln2g_ref, ln2b_ref)

        # ---- position-wise feed-forward (ReLU fused) ---------------------------------
        hdn = jnp.maximum(matmul(x, w1_ref, b1_ref), 0.0)        # (L, F)
        x = layer_norm(x + matmul(hdn, w2_ref, b2_ref), ln3g_ref, ln3b_ref)

        x_scr[...] = x                                           # carry to next layer

        @pl.when(layer == pl.num_programs(1) - 1)
        def _write_final_hidden_state():
            x_out_ref[...] = x

    return kernel


# ------------------------- model forward (wrapper) --------------------------

def decoder_forward(params, tgt_cptn, src_img, pad_id, num_heads):
    N, L = tgt_cptn.shape
    S = src_img.shape[0]
    E = params["emb"].shape[1]
    Ly, _, F = params["w1"].shape

    # plain-JAX glue: embedding gather + positional encoding + masks + layout
    x0 = params["emb"][tgt_cptn].astype(jnp.float32) * math.sqrt(E)      # (N, L, E)
    # NOTE: reproduces the reference PositionalEncoding exactly: pe[:, :x.size(1)] on a
    # (L, N, E) tensor slices by the BATCH dimension, i.e. element (l, n, :) += pe[0, n, :].
    x0 = x0 + params["pe"][0, :N, :][:, None, :]
    enc = jnp.transpose(src_img, (1, 0, 2)).astype(jnp.float32)          # (N, S, E)
    pad_add = jnp.where(tgt_cptn == pad_id, NEG_INF, 0.0
                        ).astype(jnp.float32)[:, None, :]                # (N, 1, L)

    per_n = lambda *tail: pl.BlockSpec((None,) + tail, lambda n, l: (n, 0, 0))
    per_l = lambda *tail: pl.BlockSpec((None,) + tail, lambda n, l: (l, 0, 0))

    in_specs = [
        per_n(L, E),                                                     # x0
        per_n(S, E),                                                     # enc
        per_n(1, L),                                                     # pad mask
        per_l(E, 3 * E), per_l(1, 3 * E), per_l(E, E), per_l(1, E),      # self-attn
        per_l(1, E), per_l(1, E),                                        # ln1
        per_l(E, E), per_l(1, E), per_l(E, 2 * E), per_l(1, 2 * E),      # cross q / kv
        per_l(E, E), per_l(1, E),                                        # cross out
        per_l(1, E), per_l(1, E),                                        # ln2
        per_l(E, F), per_l(1, F), per_l(F, E), per_l(1, E),              # ffn
        per_l(1, E), per_l(1, E),                                        # ln3
    ]
    out_specs = (
        pl.BlockSpec((None, L, E), lambda n, l: (n, 0, 0)),              # hidden state
        pl.BlockSpec((None, None, L, S), lambda n, l: (l, n, 0, 0)),     # per-layer attn
    )
    out_shape = (jax.ShapeDtypeStruct((N, L, E), jnp.float32),
                 jax.ShapeDtypeStruct((Ly, N, L, S), jnp.float32))

    x_out, attns = pl.pallas_call(
        _make_decoder_kernel(num_heads),
        out_shape=out_shape,
        grid=(N, Ly),
        in_specs=in_specs,
        out_specs=out_specs,
        scratch_shapes=[pltpu.VMEM((L, E), jnp.float32),    # activation carry across layers
                        pltpu.VMEM((L, E), jnp.float32)],   # per-attention head-concat buffer
        compiler_params=pltpu.CompilerParams(
            dimension_semantics=("parallel", "arbitrary")),
    )(x0, enc, pad_add,
      params["wqkv_s"], params["bqkv_s"], params["wo_s"], params["bo_s"],
      params["ln1_g"], params["ln1_b"],
      params["wq_c"], params["bq_c"], params["wkv_c"], params["bkv_c"],
      params["wo_c"], params["bo_c"], params["ln2_g"], params["ln2_b"],
      params["w1"], params["b1"], params["w2"], params["b2"],
      params["ln3_g"], params["ln3_b"])

    return jnp.transpose(x_out, (1, 0, 2)), attns            # (L, N, E), (Ly, N, L, S)


# ----------------------------- parameter init -------------------------------

def init_params(key, vocab_size, d_model, num_layers, num_heads, ff_dim, max_len, pad_id):
    E, F, Ly = d_model, ff_dim, num_layers
    scale = (E // num_heads) ** -0.5
    keys = jax.random.split(key, 1 + Ly)

    emb = 0.02 * jax.random.normal(keys[0], (vocab_size, E), jnp.float32)
    emb = emb.at[pad_id].set(0.0)                       # nn.Embedding(padding_idx=pad_id)

    pos = jnp.arange(max_len, dtype=jnp.float32)[:, None]
    div = jnp.exp(jnp.arange(0, E, 2, dtype=jnp.float32) * (-math.log(10000.0) / E))
    pe = jnp.zeros((max_len, E), jnp.float32)
    pe = pe.at[:, 0::2].set(jnp.sin(pos * div))
    pe = pe.at[:, 1::2].set(jnp.cos(pos * div))
    pe = pe[None]                                        # (1, max_len, E)

    def w(k, shape):                                     # PyTorch-layout (out, in) init
        return 0.02 * jax.random.normal(k, shape, jnp.float32)

    # Packed per-layer weights: pre-transposed to (in, out), bf16, 1/sqrt(Dh) folded into Q,
    # QKV (self) / KV (cross) fused into single wide projections.  Biases / LN params f32.
    wqkv_s, wo_s, wq_c, wkv_c, wo_c, w1, w2 = [], [], [], [], [], [], []
    for li in range(Ly):
        ks = jax.random.split(keys[1 + li], 6)
        in_w_s, out_w_s = w(ks[0], (3 * E, E)), w(ks[1], (E, E))     # self-attn MHA
        in_w_c, out_w_c = w(ks[2], (3 * E, E)), w(ks[3], (E, E))     # cross-attn MHA
        ff1, ff2 = w(ks[4], (F, E)), w(ks[5], (E, F))                # FFN

        wqkv_s.append(jnp.concatenate([in_w_s[:E] * scale, in_w_s[E:]], 0).T)   # (E, 3E)
        wo_s.append(out_w_s.T)
        wq_c.append((in_w_c[:E] * scale).T)                                      # (E, E)
        wkv_c.append(in_w_c[E:].T)                                               # (E, 2E)
        wo_c.append(out_w_c.T)
        w1.append(ff1.T)                                                         # (E, F)
        w2.append(ff2.T)                                                         # (F, E)

    bf16 = lambda xs: jnp.stack(xs).astype(jnp.bfloat16)
    zeros = lambda n: jnp.zeros((Ly, 1, n), jnp.float32)
    ones_e = jnp.ones((Ly, 1, E), jnp.float32)
    return dict(
        emb=emb, pe=pe,
        wqkv_s=bf16(wqkv_s), bqkv_s=zeros(3 * E), wo_s=bf16(wo_s), bo_s=zeros(E),
        wq_c=bf16(wq_c), bq_c=zeros(E), wkv_c=bf16(wkv_c), bkv_c=zeros(2 * E),
        wo_c=bf16(wo_c), bo_c=zeros(E),
        ln1_g=ones_e, ln1_b=zeros(E), ln2_g=ones_e, ln2_b=zeros(E),
        ln3_g=ones_e, ln3_b=zeros(E),
        w1=bf16(w1), b1=zeros(F), w2=bf16(w2), b2=zeros(E),
    )


# ---------------------------------- main ------------------------------------

if __name__ == "__main__":
    vocab_size, d_model, num_layers, num_heads = 40, 32, 2, 4
    ff_dim, max_len, pad_id = 64, 64, 0
    N, L, S = 2, 8, 16     # batch, caption length, image-feature length

    key = jax.random.PRNGKey(0)
    kp, kt, ks = jax.random.split(key, 3)

    params = init_params(kp, vocab_size, d_model, num_layers, num_heads,
                         ff_dim, max_len, pad_id)

    tgt_cptn = jax.random.randint(kt, (N, L), 1, vocab_size).astype(jnp.int32)
    tgt_cptn = tgt_cptn.at[1, -2:].set(pad_id)         # trailing padding in one sequence
    src_img = jax.random.normal(ks, (S, N, d_model), jnp.float32)

    fwd = jax.jit(partial(decoder_forward, pad_id=pad_id, num_heads=num_heads))
    out, attns_all = fwd(params, tgt_cptn, src_img)
    out, attns_all = jax.block_until_ready((out, attns_all))

    assert out.shape == (L, N, d_model)
    assert attns_all.shape == (num_layers, N, L, S)
    assert jnp.isfinite(out).all() and jnp.isfinite(attns_all).all()
    # cross-attention rows are probabilities (approx reciprocal => tiny deviation from 1)
    assert jnp.allclose(attns_all.sum(-1), 1.0, atol=2e-2)
    print("KERNEL_OK")
</pallas_src>

<mosaic_0001>
module attributes {stable_mosaic.version = 11 : i64} {
  func.func @kernel(%arg0: i32, %arg1: i32, %arg2: memref<1x8x32xf32, #tpu.memory_space<vmem>>, %arg3: memref<1x16x32xf32, #tpu.memory_space<vmem>>, %arg4: memref<1x1x8xf32, #tpu.memory_space<vmem>>, %arg5: memref<1x32x96xbf16, #tpu.memory_space<vmem>>, %arg6: memref<1x1x96xf32, #tpu.memory_space<vmem>>, %arg7: memref<1x32x32xbf16, #tpu.memory_space<vmem>>, %arg8: memref<1x1x32xf32, #tpu.memory_space<vmem>>, %arg9: memref<1x1x32xf32, #tpu.memory_space<vmem>>, %arg10: memref<1x1x32xf32, #tpu.memory_space<vmem>>, %arg11: memref<1x32x32xbf16, #tpu.memory_space<vmem>>, %arg12: memref<1x1x32xf32, #tpu.memory_space<vmem>>, %arg13: memref<1x32x64xbf16, #tpu.memory_space<vmem>>, %arg14: memref<1x1x64xf32, #tpu.memory_space<vmem>>, %arg15: memref<1x32x32xbf16, #tpu.memory_space<vmem>>, %arg16: memref<1x1x32xf32, #tpu.memory_space<vmem>>, %arg17: memref<1x1x32xf32, #tpu.memory_space<vmem>>, %arg18: memref<1x1x32xf32, #tpu.memory_space<vmem>>, %arg19: memref<1x32x64xbf16, #tpu.memory_space<vmem>>, %arg20: memref<1x1x64xf32, #tpu.memory_space<vmem>>, %arg21: memref<1x64x32xbf16, #tpu.memory_space<vmem>>, %arg22: memref<1x1x32xf32, #tpu.memory_space<vmem>>, %arg23: memref<1x1x32xf32, #tpu.memory_space<vmem>>, %arg24: memref<1x1x32xf32, #tpu.memory_space<vmem>>, %arg25: memref<1x8x32xf32, #tpu.memory_space<vmem>>, %arg26: memref<1x1x8x16xf32, #tpu.memory_space<vmem>>, %arg27: memref<8x32xf32, #tpu.memory_space<vmem>>, %arg28: memref<8x32xf32, #tpu.memory_space<vmem>>) attributes {dimension_semantics = [#tpu.dimension_semantics<parallel>, #tpu.dimension_semantics<arbitrary>], iteration_bounds = array<i64: 2, 2>, scalar_prefetch = 0 : i64, scratch_operands = 2 : i64, tpu.core_type = #tpu.core_type<tc>, window_params = [{transform_indices = @transform_0, window_bounds = array<i64: 1, 8, 32>}, {transform_indices = @transform_1, window_bounds = array<i64: 1, 16, 32>}, {transform_indices = @transform_2, window_bounds = array<i64: 1, 1, 8>}, {transform_indices = @transform_3, window_bounds = array<i64: 1, 32, 96>}, {transform_indices = @transform_4, window_bounds = array<i64: 1, 1, 96>}, {transform_indices = @transform_5, window_bounds = array<i64: 1, 32, 32>}, {transform_indices = @transform_6, window_bounds = array<i64: 1, 1, 32>}, {transform_indices = @transform_7, window_bounds = array<i64: 1, 1, 32>}, {transform_indices = @transform_8, window_bounds = array<i64: 1, 1, 32>}, {transform_indices = @transform_9, window_bounds = array<i64: 1, 32, 32>}, {transform_indices = @transform_10, window_bounds = array<i64: 1, 1, 32>}, {transform_indices = @transform_11, window_bounds = array<i64: 1, 32, 64>}, {transform_indices = @transform_12, window_bounds = array<i64: 1, 1, 64>}, {transform_indices = @transform_13, window_bounds = array<i64: 1, 32, 32>}, {transform_indices = @transform_14, window_bounds = array<i64: 1, 1, 32>}, {transform_indices = @transform_15, window_bounds = array<i64: 1, 1, 32>}, {transform_indices = @transform_16, window_bounds = array<i64: 1, 1, 32>}, {transform_indices = @transform_17, window_bounds = array<i64: 1, 32, 64>}, {transform_indices = @transform_18, window_bounds = array<i64: 1, 1, 64>}, {transform_indices = @transform_19, window_bounds = array<i64: 1, 64, 32>}, {transform_indices = @transform_20, window_bounds = array<i64: 1, 1, 32>}, {transform_indices = @transform_21, window_bounds = array<i64: 1, 1, 32>}, {transform_indices = @transform_22, window_bounds = array<i64: 1, 1, 32>}, {transform_indices = @transform_23, window_bounds = array<i64: 1, 8, 32>}, {transform_indices = @transform_24, window_bounds = array<i64: 1, 1, 8, 16>}]} {
    %c0_i32 = arith.constant 0 : i32
    %0 = arith.cmpi eq, %arg1, %c0_i32 : i32
    %1 = arith.extui %0 : i1 to i32
    %c0_i32_0 = arith.constant 0 : i32
    %2 = arith.cmpi ne, %1, %c0_i32_0 : i32
    scf.if %2 {
      %c0_149 = arith.constant 0 : index
      %c0_150 = arith.constant 0 : index
      %c0_151 = arith.constant 0 : index
      %338 = vector.load %arg2[%c0_149, %c0_150, %c0_151] : memref<1x8x32xf32, #tpu.memory_space<vmem>>, vector<1x8x32xf32>
      %339 = vector.shape_cast %338 : vector<1x8x32xf32> to vector<8x32xf32>
      %c0_152 = arith.constant 0 : index
      %c0_153 = arith.constant 0 : index
      %340 = vector.load %arg27[%c0_152, %c0_153] : memref<8x32xf32, #tpu.memory_space<vmem>>, vector<8x32xf32>
      tpu.vector_store %arg27[%c0_152, %c0_153], %339 {strides = array<i32>} : memref<8x32xf32, #tpu.memory_space<vmem>>, vector<8x32xf32>,
    } else {
    }
    %c0 = arith.constant 0 : index
    %c0_1 = arith.constant 0 : index
    %3 = vector.load %arg27[%c0, %c0_1] : memref<8x32xf32, #tpu.memory_space<vmem>>, vector<8x32xf32>
    %4 = arith.truncf %3 : vector<8x32xf32> to vector<8x32xbf16>
    %c0_2 = arith.constant 0 : index
    %c0_3 = arith.constant 0 : index
    %c0_4 = arith.constant 0 : index
    %5 = vector.load %arg5[%c0_2, %c0_3, %c0_4] : memref<1x32x96xbf16, #tpu.memory_space<vmem>>, vector<1x32x96xbf16>
    %6 = vector.shape_cast %5 : vector<1x32x96xbf16> to vector<32x96xbf16>
    %cst = arith.constant dense<0.000000e+00> : vector<8x96xf32>
    %7 = tpu.matmul %4, %6, %cst {dimension_numbers = #tpu.dot_dimension_numbers<[1], [0], [0], [1], [0, 0, 1, 1], [], []>} : vector<8x32xbf16>, vector<32x96xbf16>, vector<8x96xf32> -> vector<8x96xf32>
    %c0_5 = arith.constant 0 : index
    %c0_6 = arith.constant 0 : index
    %c0_7 = arith.constant 0 : index
    %8 = vector.load %arg6[%c0_5, %c0_6, %c0_7] : memref<1x1x96xf32, #tpu.memory_space<vmem>>, vector<1x1x96xf32>
    %9 = vector.shape_cast %8 : vector<1x1x96xf32> to vector<1x96xf32>
    %10 = vector.broadcast %9 : vector<1x96xf32> to vector<8x96xf32>
    %11 = arith.addf %7, %10 : vector<8x96xf32>
    %12 = tpu.iota {dimensions = array<i32: 0>} : vector<8x8xi32>
    %13 = tpu.iota {dimensions = array<i32: 1>} : vector<8x8xi32>
    %14 = arith.cmpi sgt, %13, %12 : vector<8x8xi32>
    %cst_8 = arith.constant -1.000000e+30 : f32
    %cst_9 = arith.constant 0.000000e+00 : f32
    %15 = vector.broadcast %cst_8 : f32 to vector<8x8xf32>
    %16 = vector.broadcast %cst_9 : f32 to vector<8x8xf32>
    %17 = arith.select %14, %15, %16 : vector<8x8xi1>, vector<8x8xf32>
    %c0_10 = arith.constant 0 : index
    %c0_11 = arith.constant 0 : index
    %c0_12 = arith.constant 0 : index
    %18 = vector.load %arg4[%c0_10, %c0_11, %c0_12] : memref<1x1x8xf32, #tpu.memory_space<vmem>>, vector<1x1x8xf32>
    %19 = vector.shape_cast %18 : vector<1x1x8xf32> to vector<1x8xf32>
    %20 = vector.broadcast %19 : vector<1x8xf32> to vector<8x8xf32>
    %21 = arith.addf %17, %20 : vector<8x8xf32>
    %22 = vector.extract_strided_slice %11 {offsets = [0, 0], sizes = [8, 32], strides = [1, 1]} : vector<8x96xf32> to vector<8x32xf32>
    %23 = vector.extract_strided_slice %11 {offsets = [0, 32], sizes = [8, 32], strides = [1, 1]} : vector<8x96xf32> to vector<8x32xf32>
    %24 = vector.extract_strided_slice %11 {offsets = [0, 64], sizes = [8, 32], strides = [1, 1]} : vector<8x96xf32> to vector<8x32xf32>
    %25 = vector.extract_strided_slice %22 {offsets = [0, 0], sizes = [8, 8], strides = [1, 1]} : vector<8x32xf32> to vector<8x8xf32>
    %26 = arith.truncf %25 : vector<8x8xf32> to vector<8x8xbf16>
    %27 = vector.extract_strided_slice %23 {offsets = [0, 0], sizes = [8, 8], strides = [1, 1]} : vector<8x32xf32> to vector<8x8xf32>
    %28 = arith.truncf %27 : vector<8x8xf32> to vector<8x8xbf16>
    %29 = vector.extract_strided_slice %24 {offsets = [0, 0], sizes = [8, 8], strides = [1, 1]} : vector<8x32xf32> to vector<8x8xf32>
    %30 = arith.truncf %29 : vector<8x8xf32> to vector<8x8xbf16>
    "tpu.trace_start"() <{level = 10 : i32, message = "ld,sd->ls"}> : () -> ()
    %cst_13 = arith.constant dense<0.000000e+00> : vector<8x8xf32>
    %31 = tpu.matmul %26, %28, %cst_13 {dimension_numbers = #tpu.dot_dimension_numbers<[1], [1], [0], [0], [0, 0, 1, 0], [], []>} : vector<8x8xbf16>, vector<8x8xbf16>, vector<8x8xf32> -> vector<8x8xf32>
    "tpu.trace_stop"() : () -> ()
    %32 = arith.addf %31, %21 : vector<8x8xf32>
    %cst_14 = arith.constant dense<0xFF800000> : vector<8xf32>
    %33 = vector.multi_reduction <maximumf>, %32, %cst_14 [1] : vector<8x8xf32> to vector<8xf32>
    %34 = vector.shape_cast %33 : vector<8xf32> to vector<8x1xf32>
    %35 = vector.broadcast %34 : vector<8x1xf32> to vector<8x8xf32>
    %36 = arith.subf %32, %35 : vector<8x8xf32>
    %37 = math.exp %36 : vector<8x8xf32>
    %cst_15 = arith.constant dense<0.000000e+00> : vector<8xf32>
    %38 = vector.multi_reduction <add>, %37, %cst_15 [1] : vector<8x8xf32> to vector<8xf32>
    %39 = vector.shape_cast %38 : vector<8xf32> to vector<8x1xf32>
    %40 = tpu.reciprocal %39 {approx = true} : vector<8x1xf32> -> vector<8x1xf32>
    %41 = vector.broadcast %40 : vector<8x1xf32> to vector<8x8xf32>
    %42 = arith.mulf %37, %41 : vector<8x8xf32>
    %43 = arith.truncf %42 : vector<8x8xf32> to vector<8x8xbf16>
    %cst_16 = arith.constant dense<0.000000e+00> : vector<8x8xf32>
    %44 = tpu.matmul %43, %30, %cst_16 {dimension_numbers = #tpu.dot_dimension_numbers<[1], [0], [0], [1], [0, 0, 1, 1], [], []>} : vector<8x8xbf16>, vector<8x8xbf16>, vector<8x8xf32> -> vector<8x8xf32>
    %c0_17 = arith.constant 0 : index
    %c0_18 = arith.constant 0 : index
    %45 = vector.load %arg28[%c0_17, %c0_18] : memref<8x32xf32, #tpu.memory_space<vmem>>, vector<8x8xf32>
    tpu.vector_store %arg28[%c0_17, %c0_18], %44 {strides = array<i32>} : memref<8x32xf32, #tpu.memory_space<vmem>>, vector<8x8xf32>,
    %46 = vector.extract_strided_slice %22 {offsets = [0, 8], sizes = [8, 8], strides = [1, 1]} : vector<8x32xf32> to vector<8x8xf32>
    %47 = arith.truncf %46 : vector<8x8xf32> to vector<8x8xbf16>
    %48 = vector.extract_strided_slice %23 {offsets = [0, 8], sizes = [8, 8], strides = [1, 1]} : vector<8x32xf32> to vector<8x8xf32>
    %49 = arith.truncf %48 : vector<8x8xf32> to vector<8x8xbf16>
    %50 = vector.extract_strided_slice %24 {offsets = [0, 8], sizes = [8, 8], strides = [1, 1]} : vector<8x32xf32> to vector<8x8xf32>
    %51 = arith.truncf %50 : vector<8x8xf32> to vector<8x8xbf16>
    "tpu.trace_start"() <{level = 10 : i32, message = "ld,sd->ls"}> : () -> ()
    %cst_19 = arith.constant dense<0.000000e+00> : vector<8x8xf32>
    %52 = tpu.matmul %47, %49, %cst_19 {dimension_numbers = #tpu.dot_dimension_numbers<[1], [1], [0], [0], [0, 0, 1, 0], [], []>} : vector<8x8xbf16>, vector<8x8xbf16>, vector<8x8xf32> -> vector<8x8xf32>
    "tpu.trace_stop"() : () -> ()
    %53 = arith.addf %52, %21 : vector<8x8xf32>
    %cst_20 = arith.constant dense<0xFF800000> : vector<8xf32>
    %54 = vector.multi_reduction <maximumf>, %53, %cst_20 [1] : vector<8x8xf32> to vector<8xf32>
    %55 = vector.shape_cast %54 : vector<8xf32> to vector<8x1xf32>
    %56 = vector.broadcast %55 : vector<8x1xf32> to vector<8x8xf32>
    %57 = arith.subf %53, %56 : vector<8x8xf32>
    %58 = math.exp %57 : vector<8x8xf32>
    %cst_21 = arith.constant dense<0.000000e+00> : vector<8xf32>
    %59 = vector.multi_reduction <add>, %58, %cst_21 [1] : vector<8x8xf32> to vector<8xf32>
    %60 = vector.shape_cast %59 : vector<8xf32> to vector<8x1xf32>
    %61 = tpu.reciprocal %60 {approx = true} : vector<8x1xf32> -> vector<8x1xf32>
    %62 = vector.broadcast %61 : vector<8x1xf32> to vector<8x8xf32>
    %63 = arith.mulf %58, %62 : vector<8x8xf32>
    %64 = arith.truncf %63 : vector<8x8xf32> to vector<8x8xbf16>
    %cst_22 = arith.constant dense<0.000000e+00> : vector<8x8xf32>
    %65 = tpu.matmul %64, %51, %cst_22 {dimension_numbers = #tpu.dot_dimension_numbers<[1], [0], [0], [1], [0, 0, 1, 1], [], []>} : vector<8x8xbf16>, vector<8x8xbf16>, vector<8x8xf32> -> vector<8x8xf32>
    %c0_23 = arith.constant 0 : index
    %c8 = arith.constant 8 : index
    %66 = vector.load %arg28[%c0_23, %c8] : memref<8x32xf32, #tpu.memory_space<vmem>>, vector<8x8xf32>
    tpu.vector_store %arg28[%c0_23, %c8], %65 {strides = array<i32>} : memref<8x32xf32, #tpu.memory_space<vmem>>, vector<8x8xf32>,
    %67 = vector.extract_strided_slice %22 {offsets = [0, 16], sizes = [8, 8], strides = [1, 1]} : vector<8x32xf32> to vector<8x8xf32>
    %68 = arith.truncf %67 : vector<8x8xf32> to vector<8x8xbf16>
    %69 = vector.extract_strided_slice %23 {offsets = [0, 16], sizes = [8, 8], strides = [1, 1]} : vector<8x32xf32> to vector<8x8xf32>
    %70 = arith.truncf %69 : vector<8x8xf32> to vector<8x8xbf16>
    %71 = vector.extract_strided_slice %24 {offsets = [0, 16], sizes = [8, 8], strides = [1, 1]} : vector<8x32xf32> to vector<8x8xf32>
    %72 = arith.truncf %71 : vector<8x8xf32> to vector<8x8xbf16>
    "tpu.trace_start"() <{level = 10 : i32, message = "ld,sd->ls"}> : () -> ()
    %cst_24 = arith.constant dense<0.000000e+00> : vector<8x8xf32>
    %73 = tpu.matmul %68, %70, %cst_24 {dimension_numbers = #tpu.dot_dimension_numbers<[1], [1], [0], [0], [0, 0, 1, 0], [], []>} : vector<8x8xbf16>, vector<8x8xbf16>, vector<8x8xf32> -> vector<8x8xf32>
    "tpu.trace_stop"() : () -> ()
    %74 = arith.addf %73, %21 : vector<8x8xf32>
    %cst_25 = arith.constant dense<0xFF800000> : vector<8xf32>
    %75 = vector.multi_reduction <maximumf>, %74, %cst_25 [1] : vector<8x8xf32> to vector<8xf32>
    %76 = vector.shape_cast %75 : vector<8xf32> to vector<8x1xf32>
    %77 = vector.broadcast %76 : vector<8x1xf32> to vector<8x8xf32>
    %78 = arith.subf %74, %77 : vector<8x8xf32>
    %79 = math.exp %78 : vector<8x8xf32>
    %cst_26 = arith.constant dense<0.000000e+00> : vector<8xf32>
    %80 = vector.multi_reduction <add>, %79, %cst_26 [1] : vector<8x8xf32> to vector<8xf32>
    %81 = vector.shape_cast %80 : vector<8xf32> to vector<8x1xf32>
    %82 = tpu.reciprocal %81 {approx = true} : vector<8x1xf32> -> vector<8x1xf32>
    %83 = vector.broadcast %82 : vector<8x1xf32> to vector<8x8xf32>
    %84 = arith.mulf %79, %83 : vector<8x8xf32>
    %85 = arith.truncf %84 : vector<8x8xf32> to vector<8x8xbf16>
    %cst_27 = arith.constant dense<0.000000e+00> : vector<8x8xf32>
    %86 = tpu.matmul %85, %72, %cst_27 {dimension_numbers = #tpu.dot_dimension_numbers<[1], [0], [0], [1], [0, 0, 1, 1], [], []>} : vector<8x8xbf16>, vector<8x8xbf16>, vector<8x8xf32> -> vector<8x8xf32>
    %c0_28 = arith.constant 0 : index
    %c16 = arith.constant 16 : index
    %87 = vector.load %arg28[%c0_28, %c16] : memref<8x32xf32, #tpu.memory_space<vmem>>, vector<8x8xf32>
    tpu.vector_store %arg28[%c0_28, %c16], %86 {strides = array<i32>} : memref<8x32xf32, #tpu.memory_space<vmem>>, vector<8x8xf32>,
    %88 = vector.extract_strided_slice %22 {offsets = [0, 24], sizes = [8, 8], strides = [1, 1]} : vector<8x32xf32> to vector<8x8xf32>
    %89 = arith.truncf %88 : vector<8x8xf32> to vector<8x8xbf16>
    %90 = vector.extract_strided_slice %23 {offsets = [0, 24], sizes = [8, 8], strides = [1, 1]} : vector<8x32xf32> to vector<8x8xf32>
    %91 = arith.truncf %90 : vector<8x8xf32> to vector<8x8xbf16>
    %92 = vector.extract_strided_slice %24 {offsets = [0, 24], sizes = [8, 8], strides = [1, 1]} : vector<8x32xf32> to vector<8x8xf32>
    %93 = arith.truncf %92 : vector<8x8xf32> to vector<8x8xbf16>
    "tpu.trace_start"() <{level = 10 : i32, message = "ld,sd->ls"}> : () -> ()
    %cst_29 = arith.constant dense<0.000000e+00> : vector<8x8xf32>
    %94 = tpu.matmul %89, %91, %cst_29 {dimension_numbers = #tpu.dot_dimension_numbers<[1], [1], [0], [0], [0, 0, 1, 0], [], []>} : vector<8x8xbf16>, vector<8x8xbf16>, vector<8x8xf32> -> vector<8x8xf32>
    "tpu.trace_stop"() : () -> ()
    %95 = arith.addf %94, %21 : vector<8x8xf32>
    %cst_30 = arith.constant dense<0xFF800000> : vector<8xf32>
    %96 = vector.multi_reduction <maximumf>, %95, %cst_30 [1] : vector<8x8xf32> to vector<8xf32>
    %97 = vector.shape_cast %96 : vector<8xf32> to vector<8x1xf32>
    %98 = vector.broadcast %97 : vector<8x1xf32> to vector<8x8xf32>
    %99 = arith.subf %95, %98 : vector<8x8xf32>
    %100 = math.exp %99 : vector<8x8xf32>
    %cst_31 = arith.constant dense<0.000000e+00> : vector<8xf32>
    %101 = vector.multi_reduction <add>, %100, %cst_31 [1] : vector<8x8xf32> to vector<8xf32>
    %102 = vector.shape_cast %101 : vector<8xf32> to vector<8x1xf32>
    %103 = tpu.reciprocal %102 {approx = true} : vector<8x1xf32> -> vector<8x1xf32>
    %104 = vector.broadcast %103 : vector<8x1xf32> to vector<8x8xf32>
    %105 = arith.mulf %100, %104 : vector<8x8xf32>
    %106 = arith.truncf %105 : vector<8x8xf32> to vector<8x8xbf16>
    %cst_32 = arith.constant dense<0.000000e+00> : vector<8x8xf32>
    %107 = tpu.matmul %106, %93, %cst_32 {dimension_numbers = #tpu.dot_dimension_numbers<[1], [0], [0], [1], [0, 0, 1, 1], [], []>} : vector<8x8xbf16>, vector<8x8xbf16>, vector<8x8xf32> -> vector<8x8xf32>
    %c0_33 = arith.constant 0 : index
    %c24 = arith.constant 24 : index
    %108 = vector.load %arg28[%c0_33, %c24] : memref<8x32xf32, #tpu.memory_space<vmem>>, vector<8x8xf32>
    tpu.vector_store %arg28[%c0_33, %c24], %107 {strides = array<i32>} : memref<8x32xf32, #tpu.memory_space<vmem>>, vector<8x8xf32>,
    %c0_34 = arith.constant 0 : index
    %c0_35 = arith.constant 0 : index
    %109 = vector.load %arg28[%c0_34, %c0_35] : memref<8x32xf32, #tpu.memory_space<vmem>>, vector<8x32xf32>
    %110 = arith.truncf %109 : vector<8x32xf32> to vector<8x32xbf16>
    %c0_36 = arith.constant 0 : index
    %c0_37 = arith.constant 0 : index
    %c0_38 = arith.constant 0 : index
    %111 = vector.load %arg7[%c0_36, %c0_37, %c0_38] : memref<1x32x32xbf16, #tpu.memory_space<vmem>>, vector<1x32x32xbf16>
    %112 = vector.shape_cast %111 : vector<1x32x32xbf16> to vector<32x32xbf16>
    %cst_39 = arith.constant dense<0.000000e+00> : vector<8x32xf32>
    %113 = tpu.matmul %110, %112, %cst_39 {dimension_numbers = #tpu.dot_dimension_numbers<[1], [0], [0], [1], [0, 0, 1, 1], [], []>} : vector<8x32xbf16>, vector<32x32xbf16>, vector<8x32xf32> -> vector<8x32xf32>
    %c0_40 = arith.constant 0 : index
    %c0_41 = arith.constant 0 : index
    %c0_42 = arith.constant 0 : index
    %114 = vector.load %arg8[%c0_40, %c0_41, %c0_42] : memref<1x1x32xf32, #tpu.memory_space<vmem>>, vector<1x1x32xf32>
    %115 = vector.shape_cast %114 : vector<1x1x32xf32> to vector<1x32xf32>
    %116 = vector.broadcast %115 : vector<1x32xf32> to vector<8x32xf32>
    %117 = arith.addf %113, %116 : vector<8x32xf32>
    %118 = arith.addf %3, %117 : vector<8x32xf32>
    %cst_43 = arith.constant dense<0.000000e+00> : vector<8xf32>
    %119 = vector.multi_reduction <add>, %118, %cst_43 [1] : vector<8x32xf32> to vector<8xf32>
    %120 = vector.shape_cast %119 : vector<8xf32> to vector<8x1xf32>
    %cst_44 = arith.constant 3.200000e+01 : f32
    %121 = vector.broadcast %cst_44 : f32 to vector<8x1xf32>
    %122 = arith.divf %120, %121 : vector<8x1xf32>
    %123 = vector.broadcast %122 : vector<8x1xf32> to vector<8x32xf32>
    %124 = arith.subf %118, %123 : vector<8x32xf32>
    %125 = arith.mulf %124, %124 : vector<8x32xf32>
    %cst_45 = arith.constant dense<0.000000e+00> : vector<8xf32>
    %126 = vector.multi_reduction <add>, %125, %cst_45 [1] : vector<8x32xf32> to vector<8xf32>
    %127 = vector.shape_cast %126 : vector<8xf32> to vector<8x1xf32>
    %cst_46 = arith.constant 3.200000e+01 : f32
    %128 = vector.broadcast %cst_46 : f32 to vector<8x1xf32>
    %129 = arith.divf %127, %128 : vector<8x1xf32>
    %130 = vector.broadcast %122 : vector<8x1xf32> to vector<8x32xf32>
    %131 = arith.subf %118, %130 : vector<8x32xf32>
    %cst_47 = arith.constant 9.99999974E-6 : f32
    %132 = vector.broadcast %cst_47 : f32 to vector<8x1xf32>
    %133 = arith.addf %129, %132 : vector<8x1xf32>
    %134 = math.rsqrt %133 : vector<8x1xf32>
    %135 = vector.broadcast %134 : vector<8x1xf32> to vector<8x32xf32>
    %136 = arith.mulf %131, %135 : vector<8x32xf32>
    %c0_48 = arith.constant 0 : index
    %c0_49 = arith.constant 0 : index
    %c0_50 = arith.constant 0 : index
    %137 = vector.load %arg9[%c0_48, %c0_49, %c0_50] : memref<1x1x32xf32, #tpu.memory_space<vmem>>, vector<1x1x32xf32>
    %138 = vector.shape_cast %137 : vector<1x1x32xf32> to vector<1x32xf32>
    %139 = vector.broadcast %138 : vector<1x32xf32> to vector<8x32xf32>
    %140 = arith.mulf %136, %139 : vector<8x32xf32>
    %c0_51 = arith.constant 0 : index
    %c0_52 = arith.constant 0 : index
    %c0_53 = arith.constant 0 : index
    %141 = vector.load %arg10[%c0_51, %c0_52, %c0_53] : memref<1x1x32xf32, #tpu.memory_space<vmem>>, vector<1x1x32xf32>
    %142 = vector.shape_cast %141 : vector<1x1x32xf32> to vector<1x32xf32>
    %143 = vector.broadcast %142 : vector<1x32xf32> to vector<8x32xf32>
    %144 = arith.addf %140, %143 : vector<8x32xf32>
    %145 = arith.truncf %144 : vector<8x32xf32> to vector<8x32xbf16>
    %c0_54 = arith.constant 0 : index
    %c0_55 = arith.constant 0 : index
    %c0_56 = arith.constant 0 : index
    %146 = vector.load %arg11[%c0_54, %c0_55, %c0_56] : memref<1x32x32xbf16, #tpu.memory_space<vmem>>, vector<1x32x32xbf16>
    %147 = vector.shape_cast %146 : vector<1x32x32xbf16> to vector<32x32xbf16>
    %cst_57 = arith.constant dense<0.000000e+00> : vector<8x32xf32>
    %148 = tpu.matmul %145, %147, %cst_57 {dimension_numbers = #tpu.dot_dimension_numbers<[1], [0], [0], [1], [0, 0, 1, 1], [], []>} : vector<8x32xbf16>, vector<32x32xbf16>, vector<8x32xf32> -> vector<8x32xf32>
    %c0_58 = arith.constant 0 : index
    %c0_59 = arith.constant 0 : index
    %c0_60 = arith.constant 0 : index
    %149 = vector.load %arg12[%c0_58, %c0_59, %c0_60] : memref<1x1x32xf32, #tpu.memory_space<vmem>>, vector<1x1x32xf32>
    %150 = vector.shape_cast %149 : vector<1x1x32xf32> to vector<1x32xf32>
    %151 = vector.broadcast %150 : vector<1x32xf32> to vector<8x32xf32>
    %152 = arith.addf %148, %151 : vector<8x32xf32>
    %c0_61 = arith.constant 0 : index
    %c0_62 = arith.constant 0 : index
    %c0_63 = arith.constant 0 : index
    %153 = vector.load %arg3[%c0_61, %c0_62, %c0_63] : memref<1x16x32xf32, #tpu.memory_space<vmem>>, vector<1x16x32xf32>
    %154 = vector.shape_cast %153 : vector<1x16x32xf32> to vector<16x32xf32>
    %155 = arith.truncf %154 : vector<16x32xf32> to vector<16x32xbf16>
    %c0_64 = arith.constant 0 : index
    %c0_65 = arith.constant 0 : index
    %c0_66 = arith.constant 0 : index
    %156 = vector.load %arg13[%c0_64, %c0_65, %c0_66] : memref<1x32x64xbf16, #tpu.memory_space<vmem>>, vector<1x32x64xbf16>
    %157 = vector.shape_cast %156 : vector<1x32x64xbf16> to vector<32x64xbf16>
    %cst_67 = arith.constant dense<0.000000e+00> : vector<16x64xf32>
    %158 = tpu.matmul %155, %157, %cst_67 {dimension_numbers = #tpu.dot_dimension_numbers<[1], [0], [0], [1], [0, 0, 1, 1], [], []>} : vector<16x32xbf16>, vector<32x64xbf16>, vector<16x64xf32> -> vector<16x64xf32>
    %c0_68 = arith.constant 0 : index
    %c0_69 = arith.constant 0 : index
    %c0_70 = arith.constant 0 : index
    %159 = vector.load %arg14[%c0_68, %c0_69, %c0_70] : memref<1x1x64xf32, #tpu.memory_space<vmem>>, vector<1x1x64xf32>
    %160 = vector.shape_cast %159 : vector<1x1x64xf32> to vector<1x64xf32>
    %161 = vector.broadcast %160 : vector<1x64xf32> to vector<16x64xf32>
    %162 = arith.addf %158, %161 : vector<16x64xf32>
    %163 = vector.extract_strided_slice %162 {offsets = [0, 0], sizes = [16, 32], strides = [1, 1]} : vector<16x64xf32> to vector<16x32xf32>
    %164 = vector.extract_strided_slice %162 {offsets = [0, 32], sizes = [16, 32], strides = [1, 1]} : vector<16x64xf32> to vector<16x32xf32>
    %165 = vector.extract_strided_slice %152 {offsets = [0, 0], sizes = [8, 8], strides = [1, 1]} : vector<8x32xf32> to vector<8x8xf32>
    %166 = arith.truncf %165 : vector<8x8xf32> to vector<8x8xbf16>
    %167 = vector.extract_strided_slice %163 {offsets = [0, 0], sizes = [16, 8], strides = [1, 1]} : vector<16x32xf32> to vector<16x8xf32>
    %168 = arith.truncf %167 : vector<16x8xf32> to vector<16x8xbf16>
    %169 = vector.extract_strided_slice %164 {offsets = [0, 0], sizes = [16, 8], strides = [1, 1]} : vector<16x32xf32> to vector<16x8xf32>
    %170 = arith.truncf %169 : vector<16x8xf32> to vector<16x8xbf16>
    "tpu.trace_start"() <{level = 10 : i32, message = "ld,sd->ls"}> : () -> ()
    %cst_71 = arith.constant dense<0.000000e+00> : vector<8x16xf32>
    %171 = tpu.matmul %166, %168, %cst_71 {dimension_numbers = #tpu.dot_dimension_numbers<[1], [1], [0], [0], [0, 0, 1, 0], [], []>} : vector<8x8xbf16>, vector<16x8xbf16>, vector<8x16xf32> -> vector<8x16xf32>
    "tpu.trace_stop"() : () -> ()
    %cst_72 = arith.constant dense<0xFF800000> : vector<8xf32>
    %172 = vector.multi_reduction <maximumf>, %171, %cst_72 [1] : vector<8x16xf32> to vector<8xf32>
    %173 = vector.shape_cast %172 : vector<8xf32> to vector<8x1xf32>
    %174 = vector.broadcast %173 : vector<8x1xf32> to vector<8x16xf32>
    %175 = arith.subf %171, %174 : vector<8x16xf32>
    %176 = math.exp %175 : vector<8x16xf32>
    %cst_73 = arith.constant dense<0.000000e+00> : vector<8xf32>
    %177 = vector.multi_reduction <add>, %176, %cst_73 [1] : vector<8x16xf32> to vector<8xf32>
    %178 = vector.shape_cast %177 : vector<8xf32> to vector<8x1xf32>
    %179 = tpu.reciprocal %178 {approx = true} : vector<8x1xf32> -> vector<8x1xf32>
    %180 = vector.broadcast %179 : vector<8x1xf32> to vector<8x16xf32>
    %181 = arith.mulf %176, %180 : vector<8x16xf32>
    %182 = arith.truncf %181 : vector<8x16xf32> to vector<8x16xbf16>
    %cst_74 = arith.constant dense<0.000000e+00> : vector<8x8xf32>
    %183 = tpu.matmul %182, %170, %cst_74 {dimension_numbers = #tpu.dot_dimension_numbers<[1], [0], [0], [1], [0, 0, 1, 1], [], []>} : vector<8x16xbf16>, vector<16x8xbf16>, vector<8x8xf32> -> vector<8x8xf32>
    %c0_75 = arith.constant 0 : index
    %c0_76 = arith.constant 0 : index
    %184 = vector.load %arg28[%c0_75, %c0_76] : memref<8x32xf32, #tpu.memory_space<vmem>>, vector<8x8xf32>
    tpu.vector_store %arg28[%c0_75, %c0_76], %183 {strides = array<i32>} : memref<8x32xf32, #tpu.memory_space<vmem>>, vector<8x8xf32>,
    %185 = vector.extract_strided_slice %152 {offsets = [0, 8], sizes = [8, 8], strides = [1, 1]} : vector<8x32xf32> to vector<8x8xf32>
    %186 = arith.truncf %185 : vector<8x8xf32> to vector<8x8xbf16>
    %187 = vector.extract_strided_slice %163 {offsets = [0, 8], sizes = [16, 8], strides = [1, 1]} : vector<16x32xf32> to vector<16x8xf32>
    %188 = arith.truncf %187 : vector<16x8xf32> to vector<16x8xbf16>
    %189 = vector.extract_strided_slice %164 {offsets = [0, 8], sizes = [16, 8], strides = [1, 1]} : vector<16x32xf32> to vector<16x8xf32>
    %190 = arith.truncf %189 : vector<16x8xf32> to vector<16x8xbf16>
    "tpu.trace_start"() <{level = 10 : i32, message = "ld,sd->ls"}> : () -> ()
    %cst_77 = arith.constant dense<0.000000e+00> : vector<8x16xf32>
    %191 = tpu.matmul %186, %188, %cst_77 {dimension_numbers = #tpu.dot_dimension_numbers<[1], [1], [0], [0], [0, 0, 1, 0], [], []>} : vector<8x8xbf16>, vector<16x8xbf16>, vector<8x16xf32> -> vector<8x16xf32>
    "tpu.trace_stop"() : () -> ()
    %cst_78 = arith.constant dense<0xFF800000> : vector<8xf32>
    %192 = vector.multi_reduction <maximumf>, %191, %cst_78 [1] : vector<8x16xf32> to vector<8xf32>
    %193 = vector.shape_cast %192 : vector<8xf32> to vector<8x1xf32>
    %194 = vector.broadcast %193 : vector<8x1xf32> to vector<8x16xf32>
    %195 = arith.subf %191, %194 : vector<8x16xf32>
    %196 = math.exp %195 : vector<8x16xf32>
    %cst_79 = arith.constant dense<0.000000e+00> : vector<8xf32>
    %197 = vector.multi_reduction <add>, %196, %cst_79 [1] : vector<8x16xf32> to vector<8xf32>
    %198 = vector.shape_cast %197 : vector<8xf32> to vector<8x1xf32>
    %199 = tpu.reciprocal %198 {approx = true} : vector<8x1xf32> -> vector<8x1xf32>
    %200 = vector.broadcast %199 : vector<8x1xf32> to vector<8x16xf32>
    %201 = arith.mulf %196, %200 : vector<8x16xf32>
    %202 = arith.truncf %201 : vector<8x16xf32> to vector<8x16xbf16>
    %cst_80 = arith.constant dense<0.000000e+00> : vector<8x8xf32>
    %203 = tpu.matmul %202, %190, %cst_80 {dimension_numbers = #tpu.dot_dimension_numbers<[1], [0], [0], [1], [0, 0, 1, 1], [], []>} : vector<8x16xbf16>, vector<16x8xbf16>, vector<8x8xf32> -> vector<8x8xf32>
    %c0_81 = arith.constant 0 : index
    %c8_82 = arith.constant 8 : index
    %204 = vector.load %arg28[%c0_81, %c8_82] : memref<8x32xf32, #tpu.memory_space<vmem>>, vector<8x8xf32>
    tpu.vector_store %arg28[%c0_81, %c8_82], %203 {strides = array<i32>} : memref<8x32xf32, #tpu.memory_space<vmem>>, vector<8x8xf32>,
    %205 = arith.addf %181, %201 : vector<8x16xf32>
    %206 = vector.extract_strided_slice %152 {offsets = [0, 16], sizes = [8, 8], strides = [1, 1]} : vector<8x32xf32> to vector<8x8xf32>
    %207 = arith.truncf %206 : vector<8x8xf32> to vector<8x8xbf16>
    %208 = vector.extract_strided_slice %163 {offsets = [0, 16], sizes = [16, 8], strides = [1, 1]} : vector<16x32xf32> to vector<16x8xf32>
    %209 = arith.truncf %208 : vector<16x8xf32> to vector<16x8xbf16>
    %210 = vector.extract_strided_slice %164 {offsets = [0, 16], sizes = [16, 8], strides = [1, 1]} : vector<16x32xf32> to vector<16x8xf32>
    %211 = arith.truncf %210 : vector<16x8xf32> to vector<16x8xbf16>
    "tpu.trace_start"() <{level = 10 : i32, message = "ld,sd->ls"}> : () -> ()
    %cst_83 = arith.constant dense<0.000000e+00> : vector<8x16xf32>
    %212 = tpu.matmul %207, %209, %cst_83 {dimension_numbers = #tpu.dot_dimension_numbers<[1], [1], [0], [0], [0, 0, 1, 0], [], []>} : vector<8x8xbf16>, vector<16x8xbf16>, vector<8x16xf32> -> vector<8x16xf32>
    "tpu.trace_stop"() : () -> ()
    %cst_84 = arith.constant dense<0xFF800000> : vector<8xf32>
    %213 = vector.multi_reduction <maximumf>, %212, %cst_84 [1] : vector<8x16xf32> to vector<8xf32>
    %214 = vector.shape_cast %213 : vector<8xf32> to vector<8x1xf32>
    %215 = vector.broadcast %214 : vector<8x1xf32> to vector<8x16xf32>
    %216 = arith.subf %212, %215 : vector<8x16xf32>
    %217 = math.exp %216 : vector<8x16xf32>
    %cst_85 = arith.constant dense<0.000000e+00> : vector<8xf32>
    %218 = vector.multi_reduction <add>, %217, %cst_85 [1] : vector<8x16xf32> to vector<8xf32>
    %219 = vector.shape_cast %218 : vector<8xf32> to vector<8x1xf32>
    %220 = tpu.reciprocal %219 {approx = true} : vector<8x1xf32> -> vector<8x1xf32>
    %221 = vector.broadcast %220 : vector<8x1xf32> to vector<8x16xf32>
    %222 = arith.mulf %217, %221 : vector<8x16xf32>
    %223 = arith.truncf %222 : vector<8x16xf32> to vector<8x16xbf16>
    %cst_86 = arith.constant dense<0.000000e+00> : vector<8x8xf32>
    %224 = tpu.matmul %223, %211, %cst_86 {dimension_numbers = #tpu.dot_dimension_numbers<[1], [0], [0], [1], [0, 0, 1, 1], [], []>} : vector<8x16xbf16>, vector<16x8xbf16>, vector<8x8xf32> -> vector<8x8xf32>
    %c0_87 = arith.constant 0 : index
    %c16_88 = arith.constant 16 : index
    %225 = vector.load %arg28[%c0_87, %c16_88] : memref<8x32xf32, #tpu.memory_space<vmem>>, vector<8x8xf32>
    tpu.vector_store %arg28[%c0_87, %c16_88], %224 {strides = array<i32>} : memref<8x32xf32, #tpu.memory_space<vmem>>, vector<8x8xf32>,
    %226 = arith.addf %205, %222 : vector<8x16xf32>
    %227 = vector.extract_strided_slice %152 {offsets = [0, 24], sizes = [8, 8], strides = [1, 1]} : vector<8x32xf32> to vector<8x8xf32>
    %228 = arith.truncf %227 : vector<8x8xf32> to vector<8x8xbf16>
    %229 = vector.extract_strided_slice %163 {offsets = [0, 24], sizes = [16, 8], strides = [1, 1]} : vector<16x32xf32> to vector<16x8xf32>
    %230 = arith.truncf %229 : vector<16x8xf32> to vector<16x8xbf16>
    %231 = vector.extract_strided_slice %164 {offsets = [0, 24], sizes = [16, 8], strides = [1, 1]} : vector<16x32xf32> to vector<16x8xf32>
    %232 = arith.truncf %231 : vector<16x8xf32> to vector<16x8xbf16>
    "tpu.trace_start"() <{level = 10 : i32, message = "ld,sd->ls"}> : () -> ()
    %cst_89 = arith.constant dense<0.000000e+00> : vector<8x16xf32>
    %233 = tpu.matmul %228, %230, %cst_89 {dimension_numbers = #tpu.dot_dimension_numbers<[1], [1], [0], [0], [0, 0, 1, 0], [], []>} : vector<8x8xbf16>, vector<16x8xbf16>, vector<8x16xf32> -> vector<8x16xf32>
    "tpu.trace_stop"() : () -> ()
    %cst_90 = arith.constant dense<0xFF800000> : vector<8xf32>
    %234 = vector.multi_reduction <maximumf>, %233, %cst_90 [1] : vector<8x16xf32> to vector<8xf32>
    %235 = vector.shape_cast %234 : vector<8xf32> to vector<8x1xf32>
    %236 = vector.broadcast %235 : vector<8x1xf32> to vector<8x16xf32>
    %237 = arith.subf %233, %236 : vector<8x16xf32>
    %238 = math.exp %237 : vector<8x16xf32>
    %cst_91 = arith.constant dense<0.000000e+00> : vector<8xf32>
    %239 = vector.multi_reduction <add>, %238, %cst_91 [1] : vector<8x16xf32> to vector<8xf32>
    %240 = vector.shape_cast %239 : vector<8xf32> to vector<8x1xf32>
    %241 = tpu.reciprocal %240 {approx = true} : vector<8x1xf32> -> vector<8x1xf32>
    %242 = vector.broadcast %241 : vector<8x1xf32> to vector<8x16xf32>
    %243 = arith.mulf %238, %242 : vector<8x16xf32>
    %244 = arith.truncf %243 : vector<8x16xf32> to vector<8x16xbf16>
    %cst_92 = arith.constant dense<0.000000e+00> : vector<8x8xf32>
    %245 = tpu.matmul %244, %232, %cst_92 {dimension_numbers = #tpu.dot_dimension_numbers<[1], [0], [0], [1], [0, 0, 1, 1], [], []>} : vector<8x16xbf16>, vector<16x8xbf16>, vector<8x8xf32> -> vector<8x8xf32>
    %c0_93 = arith.constant 0 : index
    %c24_94 = arith.constant 24 : index
    %246 = vector.load %arg28[%c0_93, %c24_94] : memref<8x32xf32, #tpu.memory_space<vmem>>, vector<8x8xf32>
    tpu.vector_store %arg28[%c0_93, %c24_94], %245 {strides = array<i32>} : memref<8x32xf32, #tpu.memory_space<vmem>>, vector<8x8xf32>,
    %247 = arith.addf %226, %243 : vector<8x16xf32>
    %c0_95 = arith.constant 0 : index
    %c0_96 = arith.constant 0 : index
    %248 = vector.load %arg28[%c0_95, %c0_96] : memref<8x32xf32, #tpu.memory_space<vmem>>, vector<8x32xf32>
    %cst_97 = arith.constant 2.500000e-01 : f32
    %249 = vector.broadcast %cst_97 : f32 to vector<8x16xf32>
    %250 = arith.mulf %247, %249 : vector<8x16xf32>
    %c0_98 = arith.constant 0 : index
    %c0_99 = arith.constant 0 : index
    %c0_100 = arith.constant 0 : index
    %c0_101 = arith.constant 0 : index
    %251 = vector.load %arg26[%c0_98, %c0_99, %c0_100, %c0_101] : memref<1x1x8x16xf32, #tpu.memory_space<vmem>>, vector<1x1x8x16xf32>
    %252 = vector.shape_cast %251 : vector<1x1x8x16xf32> to vector<8x16xf32>
    %253 = vector.shape_cast %250 : vector<8x16xf32> to vector<1x1x8x16xf32>
    tpu.vector_store %arg26[%c0_98, %c0_99, %c0_100, %c0_101], %253 {strides = array<i32>} : memref<1x1x8x16xf32, #tpu.memory_space<vmem>>, vector<1x1x8x16xf32>,
    %254 = arith.truncf %248 : vector<8x32xf32> to vector<8x32xbf16>
    %c0_102 = arith.constant 0 : index
    %c0_103 = arith.constant 0 : index
    %c0_104 = arith.constant 0 : index
    %255 = vector.load %arg15[%c0_102, %c0_103, %c0_104] : memref<1x32x32xbf16, #tpu.memory_space<vmem>>, vector<1x32x32xbf16>
    %256 = vector.shape_cast %255 : vector<1x32x32xbf16> to vector<32x32xbf16>
    %cst_105 = arith.constant dense<0.000000e+00> : vector<8x32xf32>
    %257 = tpu.matmul %254, %256, %cst_105 {dimension_numbers = #tpu.dot_dimension_numbers<[1], [0], [0], [1], [0, 0, 1, 1], [], []>} : vector<8x32xbf16>, vector<32x32xbf16>, vector<8x32xf32> -> vector<8x32xf32>
    %c0_106 = arith.constant 0 : index
    %c0_107 = arith.constant 0 : index
    %c0_108 = arith.constant 0 : index
    %258 = vector.load %arg16[%c0_106, %c0_107, %c0_108] : memref<1x1x32xf32, #tpu.memory_space<vmem>>, vector<1x1x32xf32>
    %259 = vector.shape_cast %258 : vector<1x1x32xf32> to vector<1x32xf32>
    %260 = vector.broadcast %259 : vector<1x32xf32> to vector<8x32xf32>
    %261 = arith.addf %257, %260 : vector<8x32xf32>
    %262 = arith.addf %144, %261 : vector<8x32xf32>
    %cst_109 = arith.constant dense<0.000000e+00> : vector<8xf32>
    %263 = vector.multi_reduction <add>, %262, %cst_109 [1] : vector<8x32xf32> to vector<8xf32>
    %264 = vector.shape_cast %263 : vector<8xf32> to vector<8x1xf32>
    %cst_110 = arith.constant 3.200000e+01 : f32
    %265 = vector.broadcast %cst_110 : f32 to vector<8x1xf32>
    %266 = arith.divf %264, %265 : vector<8x1xf32>
    %267 = vector.broadcast %266 : vector<8x1xf32> to vector<8x32xf32>
    %268 = arith.subf %262, %267 : vector<8x32xf32>
    %269 = arith.mulf %268, %268 : vector<8x32xf32>
    %cst_111 = arith.constant dense<0.000000e+00> : vector<8xf32>
    %270 = vector.multi_reduction <add>, %269, %cst_111 [1] : vector<8x32xf32> to vector<8xf32>
    %271 = vector.shape_cast %270 : vector<8xf32> to vector<8x1xf32>
    %cst_112 = arith.constant 3.200000e+01 : f32
    %272 = vector.broadcast %cst_112 : f32 to vector<8x1xf32>
    %273 = arith.divf %271, %272 : vector<8x1xf32>
    %274 = vector.broadcast %266 : vector<8x1xf32> to vector<8x32xf32>
    %275 = arith.subf %262, %274 : vector<8x32xf32>
    %cst_113 = arith.constant 9.99999974E-6 : f32
    %276 = vector.broadcast %cst_113 : f32 to vector<8x1xf32>
    %277 = arith.addf %273, %276 : vector<8x1xf32>
    %278 = math.rsqrt %277 : vector<8x1xf32>
    %279 = vector.broadcast %278 : vector<8x1xf32> to vector<8x32xf32>
    %280 = arith.mulf %275, %279 : vector<8x32xf32>
    %c0_114 = arith.constant 0 : index
    %c0_115 = arith.constant 0 : index
    %c0_116 = arith.constant 0 : index
    %281 = vector.load %arg17[%c0_114, %c0_115, %c0_116] : memref<1x1x32xf32, #tpu.memory_space<vmem>>, vector<1x1x32xf32>
    %282 = vector.shape_cast %281 : vector<1x1x32xf32> to vector<1x32xf32>
    %283 = vector.broadcast %282 : vector<1x32xf32> to vector<8x32xf32>
    %284 = arith.mulf %280, %283 : vector<8x32xf32>
    %c0_117 = arith.constant 0 : index
    %c0_118 = arith.constant 0 : index
    %c0_119 = arith.constant 0 : index
    %285 = vector.load %arg18[%c0_117, %c0_118, %c0_119] : memref<1x1x32xf32, #tpu.memory_space<vmem>>, vector<1x1x32xf32>
    %286 = vector.shape_cast %285 : vector<1x1x32xf32> to vector<1x32xf32>
    %287 = vector.broadcast %286 : vector<1x32xf32> to vector<8x32xf32>
    %288 = arith.addf %284, %287 : vector<8x32xf32>
    %289 = arith.truncf %288 : vector<8x32xf32> to vector<8x32xbf16>
    %c0_120 = arith.constant 0 : index
    %c0_121 = arith.constant 0 : index
    %c0_122 = arith.constant 0 : index
    %290 = vector.load %arg19[%c0_120, %c0_121, %c0_122] : memref<1x32x64xbf16, #tpu.memory_space<vmem>>, vector<1x32x64xbf16>
    %291 = vector.shape_cast %290 : vector<1x32x64xbf16> to vector<32x64xbf16>
    %cst_123 = arith.constant dense<0.000000e+00> : vector<8x64xf32>
    %292 = tpu.matmul %289, %291, %cst_123 {dimension_numbers = #tpu.dot_dimension_numbers<[1], [0], [0], [1], [0, 0, 1, 1], [], []>} : vector<8x32xbf16>, vector<32x64xbf16>, vector<8x64xf32> -> vector<8x64xf32>
    %c0_124 = arith.constant 0 : index
    %c0_125 = arith.constant 0 : index
    %c0_126 = arith.constant 0 : index
    %293 = vector.load %arg20[%c0_124, %c0_125, %c0_126] : memref<1x1x64xf32, #tpu.memory_space<vmem>>, vector<1x1x64xf32>
    %294 = vector.shape_cast %293 : vector<1x1x64xf32> to vector<1x64xf32>
    %295 = vector.broadcast %294 : vector<1x64xf32> to vector<8x64xf32>
    %296 = arith.addf %292, %295 : vector<8x64xf32>
    %cst_127 = arith.constant 0.000000e+00 : f32
    %297 = vector.broadcast %cst_127 : f32 to vector<8x64xf32>
    %298 = arith.maximumf %296, %297 : vector<8x64xf32>
    %299 = arith.truncf %298 : vector<8x64xf32> to vector<8x64xbf16>
    %c0_128 = arith.constant 0 : index
    %c0_129 = arith.constant 0 : index
    %c0_130 = arith.constant 0 : index
    %300 = vector.load %arg21[%c0_128, %c0_129, %c0_130] : memref<1x64x32xbf16, #tpu.memory_space<vmem>>, vector<1x64x32xbf16>
    %301 = vector.shape_cast %300 : vector<1x64x32xbf16> to vector<64x32xbf16>
    %cst_131 = arith.constant dense<0.000000e+00> : vector<8x32xf32>
    %302 = tpu.matmul %299, %301, %cst_131 {dimension_numbers = #tpu.dot_dimension_numbers<[1], [0], [0], [1], [0, 0, 1, 1], [], []>} : vector<8x64xbf16>, vector<64x32xbf16>, vector<8x32xf32> -> vector<8x32xf32>
    %c0_132 = arith.constant 0 : index
    %c0_133 = arith.constant 0 : index
    %c0_134 = arith.constant 0 : index
    %303 = vector.load %arg22[%c0_132, %c0_133, %c0_134] : memref<1x1x32xf32, #tpu.memory_space<vmem>>, vector<1x1x32xf32>
    %304 = vector.shape_cast %303 : vector<1x1x32xf32> to vector<1x32xf32>
    %305 = vector.broadcast %304 : vector<1x32xf32> to vector<8x32xf32>
    %306 = arith.addf %302, %305 : vector<8x32xf32>
    %307 = arith.addf %288, %306 : vector<8x32xf32>
    %cst_135 = arith.constant dense<0.000000e+00> : vector<8xf32>
    %308 = vector.multi_reduction <add>, %307, %cst_135 [1] : vector<8x32xf32> to vector<8xf32>
    %309 = vector.shape_cast %308 : vector<8xf32> to vector<8x1xf32>
    %cst_136 = arith.constant 3.200000e+01 : f32
    %310 = vector.broadcast %cst_136 : f32 to vector<8x1xf32>
    %311 = arith.divf %309, %310 : vector<8x1xf32>
    %312 = vector.broadcast %311 : vector<8x1xf32> to vector<8x32xf32>
    %313 = arith.subf %307, %312 : vector<8x32xf32>
    %314 = arith.mulf %313, %313 : vector<8x32xf32>
    %cst_137 = arith.constant dense<0.000000e+00> : vector<8xf32>
    %315 = vector.multi_reduction <add>, %314, %cst_137 [1] : vector<8x32xf32> to vector<8xf32>
    %316 = vector.shape_cast %315 : vector<8xf32> to vector<8x1xf32>
    %cst_138 = arith.constant 3.200000e+01 : f32
    %317 = vector.broadcast %cst_138 : f32 to vector<8x1xf32>
    %318 = arith.divf %316, %317 : vector<8x1xf32>
    %319 = vector.broadcast %311 : vector<8x1xf32> to vector<8x32xf32>
    %320 = arith.subf %307, %319 : vector<8x32xf32>
    %cst_139 = arith.constant 9.99999974E-6 : f32
    %321 = vector.broadcast %cst_139 : f32 to vector<8x1xf32>
    %322 = arith.addf %318, %321 : vector<8x1xf32>
    %323 = math.rsqrt %322 : vector<8x1xf32>
    %324 = vector.broadcast %323 : vector<8x1xf32> to vector<8x32xf32>
    %325 = arith.mulf %320, %324 : vector<8x32xf32>
    %c0_140 = arith.constant 0 : index
    %c0_141 = arith.constant 0 : index
    %c0_142 = arith.constant 0 : index
    %326 = vector.load %arg23[%c0_140, %c0_141, %c0_142] : memref<1x1x32xf32, #tpu.memory_space<vmem>>, vector<1x1x32xf32>
    %327 = vector.shape_cast %326 : vector<1x1x32xf32> to vector<1x32xf32>
    %328 = vector.broadcast %327 : vector<1x32xf32> to vector<8x32xf32>
    %329 = arith.mulf %325, %328 : vector<8x32xf32>
    %c0_143 = arith.constant 0 : index
    %c0_144 = arith.constant 0 : index
    %c0_145 = arith.constant 0 : index
    %330 = vector.load %arg24[%c0_143, %c0_144, %c0_145] : memref<1x1x32xf32, #tpu.memory_space<vmem>>, vector<1x1x32xf32>
    %331 = vector.shape_cast %330 : vector<1x1x32xf32> to vector<1x32xf32>
    %332 = vector.broadcast %331 : vector<1x32xf32> to vector<8x32xf32>
    %333 = arith.addf %329, %332 : vector<8x32xf32>
    %c0_146 = arith.constant 0 : index
    %c0_147 = arith.constant 0 : index
    %334 = vector.load %arg27[%c0_146, %c0_147] : memref<8x32xf32, #tpu.memory_space<vmem>>, vector<8x32xf32>
    tpu.vector_store %arg27[%c0_146, %c0_147], %333 {strides = array<i32>} : memref<8x32xf32, #tpu.memory_space<vmem>>, vector<8x32xf32>,
    %c1_i32 = arith.constant 1 : i32
    %335 = arith.cmpi eq, %arg1, %c1_i32 : i32
    %336 = arith.extui %335 : i1 to i32
    %c0_i32_148 = arith.constant 0 : i32
    %337 = arith.cmpi ne, %336, %c0_i32_148 : i32
    scf.if %337 {
      %c0_149 = arith.constant 0 : index
      %c0_150 = arith.constant 0 : index
      %c0_151 = arith.constant 0 : index
      %338 = vector.load %arg25[%c0_149, %c0_150, %c0_151] : memref<1x8x32xf32, #tpu.memory_space<vmem>>, vector<1x8x32xf32>
      %339 = vector.shape_cast %338 : vector<1x8x32xf32> to vector<8x32xf32>
      %340 = vector.shape_cast %333 : vector<8x32xf32> to vector<1x8x32xf32>
      tpu.vector_store %arg25[%c0_149, %c0_150, %c0_151], %340 {strides = array<i32>} : memref<1x8x32xf32, #tpu.memory_space<vmem>>, vector<1x8x32xf32>,
    } else {
    }
    return
  }
  func.func @transform_0(%arg0: i32, %arg1: i32) -> (i32, i32, i32) {
    %c0_i32 = arith.constant 0 : i32
    %c0_i32_0 = arith.constant 0 : i32
    %c0_i32_1 = arith.constant 0 : i32
    return %arg0, %c0_i32, %c0_i32_0 : i32, i32, i32
  }
  func.func @transform_1(%arg0: i32, %arg1: i32) -> (i32, i32, i32) {
    %c0_i32 = arith.constant 0 : i32
    %c0_i32_0 = arith.constant 0 : i32
    %c0_i32_1 = arith.constant 0 : i32
    return %arg0, %c0_i32, %c0_i32_0 : i32, i32, i32
  }
  func.func @transform_2(%arg0: i32, %arg1: i32) -> (i32, i32, i32) {
    %c0_i32 = arith.constant 0 : i32
    %c0_i32_0 = arith.constant 0 : i32
    %c0_i32_1 = arith.constant 0 : i32
    return %arg0, %c0_i32, %c0_i32_0 : i32, i32, i32
  }
  func.func @transform_3(%arg0: i32, %arg1: i32) -> (i32, i32, i32) {
    %c0_i32 = arith.constant 0 : i32
    %c0_i32_0 = arith.constant 0 : i32
    %c0_i32_1 = arith.constant 0 : i32
    return %arg1, %c0_i32, %c0_i32_0 : i32, i32, i32
  }
  func.func @transform_4(%arg0: i32, %arg1: i32) -> (i32, i32, i32) {
    %c0_i32 = arith.constant 0 : i32
    %c0_i32_0 = arith.constant 0 : i32
    %c0_i32_1 = arith.constant 0 : i32
    return %arg1, %c0_i32, %c0_i32_0 : i32, i32, i32
  }
  func.func @transform_5(%arg0: i32, %arg1: i32) -> (i32, i32, i32) {
    %c0_i32 = arith.constant 0 : i32
    %c0_i32_0 = arith.constant 0 : i32
    %c0_i32_1 = arith.constant 0 : i32
    return %arg1, %c0_i32, %c0_i32_0 : i32, i32, i32
  }
  func.func @transform_6(%arg0: i32, %arg1: i32) -> (i32, i32, i32) {
    %c0_i32 = arith.constant 0 : i32
    %c0_i32_0 = arith.constant 0 : i32
    %c0_i32_1 = arith.constant 0 : i32
    return %arg1, %c0_i32, %c0_i32_0 : i32, i32, i32
  }
  func.func @transform_7(%arg0: i32, %arg1: i32) -> (i32, i32, i32) {
    %c0_i32 = arith.constant 0 : i32
    %c0_i32_0 = arith.constant 0 : i32
    %c0_i32_1 = arith.constant 0 : i32
    return %arg1, %c0_i32, %c0_i32_0 : i32, i32, i32
  }
  func.func @transform_8(%arg0: i32, %arg1: i32) -> (i32, i32, i32) {
    %c0_i32 = arith.constant 0 : i32
    %c0_i32_0 = arith.constant 0 : i32
    %c0_i32_1 = arith.constant 0 : i32
    return %arg1, %c0_i32, %c0_i32_0 : i32, i32, i32
  }
  func.func @transform_9(%arg0: i32, %arg1: i32) -> (i32, i32, i32) {
    %c0_i32 = arith.constant 0 : i32
    %c0_i32_0 = arith.constant 0 : i32
    %c0_i32_1 = arith.constant 0 : i32
    return %arg1, %c0_i32, %c0_i32_0 : i32, i32, i32
  }
  func.func @transform_10(%arg0: i32, %arg1: i32) -> (i32, i32, i32) {
    %c0_i32 = arith.constant 0 : i32
    %c0_i32_0 = arith.constant 0 : i32
    %c0_i32_1 = arith.constant 0 : i32
    return %arg1, %c0_i32, %c0_i32_0 : i32, i32, i32
  }
  func.func @transform_11(%arg0: i32, %arg1: i32) -> (i32, i32, i32) {
    %c0_i32 = arith.constant 0 : i32
    %c0_i32_0 = arith.constant 0 : i32
    %c0_i32_1 = arith.constant 0 : i32
    return %arg1, %c0_i32, %c0_i32_0 : i32, i32, i32
  }
  func.func @transform_12(%arg0: i32, %arg1: i32) -> (i32, i32, i32) {
    %c0_i32 = arith.constant 0 : i32
    %c0_i32_0 = arith.constant 0 : i32
    %c0_i32_1 = arith.constant 0 : i32
    return %arg1, %c0_i32, %c0_i32_0 : i32, i32, i32
  }
  func.func @transform_13(%arg0: i32, %arg1: i32) -> (i32, i32, i32) {
    %c0_i32 = arith.constant 0 : i32
    %c0_i32_0 = arith.constant 0 : i32
    %c0_i32_1 = arith.constant 0 : i32
    return %arg1, %c0_i32, %c0_i32_0 : i32, i32, i32
  }
  func.func @transform_14(%arg0: i32, %arg1: i32) -> (i32, i32, i32) {
    %c0_i32 = arith.constant 0 : i32
    %c0_i32_0 = arith.constant 0 : i32
    %c0_i32_1 = arith.constant 0 : i32
    return %arg1, %c0_i32, %c0_i32_0 : i32, i32, i32
  }
  func.func @transform_15(%arg0: i32, %arg1: i32) -> (i32, i32, i32) {
    %c0_i32 = arith.constant 0 : i32
    %c0_i32_0 = arith.constant 0 : i32
    %c0_i32_1 = arith.constant 0 : i32
    return %arg1, %c0_i32, %c0_i32_0 : i32, i32, i32
  }
  func.func @transform_16(%arg0: i32, %arg1: i32) -> (i32, i32, i32) {
    %c0_i32 = arith.constant 0 : i32
    %c0_i32_0 = arith.constant 0 : i32
    %c0_i32_1 = arith.constant 0 : i32
    return %arg1, %c0_i32, %c0_i32_0 : i32, i32, i32
  }
  func.func @transform_17(%arg0: i32, %arg1: i32) -> (i32, i32, i32) {
    %c0_i32 = arith.constant 0 : i32
    %c0_i32_0 = arith.constant 0 : i32
    %c0_i32_1 = arith.constant 0 : i32
    return %arg1, %c0_i32, %c0_i32_0 : i32, i32, i32
  }
  func.func @transform_18(%arg0: i32, %arg1: i32) -> (i32, i32, i32) {
    %c0_i32 = arith.constant 0 : i32
    %c0_i32_0 = arith.constant 0 : i32
    %c0_i32_1 = arith.constant 0 : i32
    return %arg1, %c0_i32, %c0_i32_0 : i32, i32, i32
  }
  func.func @transform_19(%arg0: i32, %arg1: i32) -> (i32, i32, i32) {
    %c0_i32 = arith.constant 0 : i32
    %c0_i32_0 = arith.constant 0 : i32
    %c0_i32_1 = arith.constant 0 : i32
    return %arg1, %c0_i32, %c0_i32_0 : i32, i32, i32
  }
  func.func @transform_20(%arg0: i32, %arg1: i32) -> (i32, i32, i32) {
    %c0_i32 = arith.constant 0 : i32
    %c0_i32_0 = arith.constant 0 : i32
    %c0_i32_1 = arith.constant 0 : i32
    return %arg1, %c0_i32, %c0_i32_0 : i32, i32, i32
  }
  func.func @transform_21(%arg0: i32, %arg1: i32) -> (i32, i32, i32) {
    %c0_i32 = arith.constant 0 : i32
    %c0_i32_0 = arith.constant 0 : i32
    %c0_i32_1 = arith.constant 0 : i32
    return %arg1, %c0_i32, %c0_i32_0 : i32, i32, i32
  }
  func.func @transform_22(%arg0: i32, %arg1: i32) -> (i32, i32, i32) {
    %c0_i32 = arith.constant 0 : i32
    %c0_i32_0 = arith.constant 0 : i32
    %c0_i32_1 = arith.constant 0 : i32
    return %arg1, %c0_i32, %c0_i32_0 : i32, i32, i32
  }
  func.func @transform_23(%arg0: i32, %arg1: i32) -> (i32, i32, i32) {
    %c0_i32 = arith.constant 0 : i32
    %c0_i32_0 = arith.constant 0 : i32
    %c0_i32_1 = arith.constant 0 : i32
    return %arg0, %c0_i32, %c0_i32_0 : i32, i32, i32
  }
  func.func @transform_24(%arg0: i32, %arg1: i32) -> (i32, i32, i32, i32) {
    %c0_i32 = arith.constant 0 : i32
    %c0_i32_0 = arith.constant 0 : i32
    %c0_i32_1 = arith.constant 0 : i32
    return %arg1, %arg0, %c0_i32, %c0_i32_0 : i32, i32, i32, i32
  }
}

</mosaic_0001>

<llo_original>
// kernel: decoder_forward.1
$region0: #{decoder_forward.1}
  #allocation0 [shape = 'u32[]', space=smem, size = 0x4, offset = 0x4, fixed_abs, tag = 'smem constant byte address 0x4 - core index']
  #allocation1 [shape = 'u32[144,128]{1,0:T(1,128)}', space=vmem, size = 0x12000, scoped, tag = 'internal scratch']
  #allocation2 [shape = 'f32[8,32]{1,0:T(8,128)}', space=vmem, size = 0x1000, scoped, tag = 'scratch operand']
  #allocation3 [shape = 'f32[8,32]{1,0:T(8,128)}', space=vmem, size = 0x1000, scoped, tag = 'scratch operand']
  %s0 = inlined_call_operand.vmem [shape: f32[2,8,32], index: 0, kind: input, shape index: {}]
  %s1 = inlined_call_operand.vmem [shape: f32[2,16,32], index: 1, kind: input, shape index: {}]
  %s2 = inlined_call_operand.vmem [shape: f32[2,1,8], index: 2, kind: input, shape index: {}]
  %s3 = inlined_call_operand.vmem [shape: bf16[2,32,96], index: 3, kind: input, shape index: {}]
  %s4 = inlined_call_operand.vmem [shape: f32[2,1,96], index: 4, kind: input, shape index: {}]
  %s5 = inlined_call_operand.vmem [shape: bf16[2,32,32], index: 5, kind: input, shape index: {}]
  %s6 = inlined_call_operand.vmem [shape: f32[2,1,32], index: 6, kind: input, shape index: {}]
  %s7 = inlined_call_operand.vmem [shape: f32[2,1,32], index: 7, kind: input, shape index: {}]
  %s8 = inlined_call_operand.vmem [shape: f32[2,1,32], index: 8, kind: input, shape index: {}]
  %s9 = inlined_call_operand.vmem [shape: bf16[2,32,32], index: 9, kind: input, shape index: {}]
  %s10 = inlined_call_operand.vmem [shape: f32[2,1,32], index: 10, kind: input, shape index: {}]
  %s11 = inlined_call_operand.vmem [shape: bf16[2,32,64], index: 11, kind: input, shape index: {}]
  %s12 = inlined_call_operand.vmem [shape: f32[2,1,64], index: 12, kind: input, shape index: {}]
  %s13 = inlined_call_operand.vmem [shape: bf16[2,32,32], index: 13, kind: input, shape index: {}]
  %s14 = inlined_call_operand.vmem [shape: f32[2,1,32], index: 14, kind: input, shape index: {}]
  %s15 = inlined_call_operand.vmem [shape: f32[2,1,32], index: 15, kind: input, shape index: {}]
  %s16 = inlined_call_operand.vmem [shape: f32[2,1,32], index: 16, kind: input, shape index: {}]
  %s17 = inlined_call_operand.vmem [shape: bf16[2,32,64], index: 17, kind: input, shape index: {}]
  %s18 = inlined_call_operand.vmem [shape: f32[2,1,64], index: 18, kind: input, shape index: {}]
  %s19 = inlined_call_operand.vmem [shape: bf16[2,64,32], index: 19, kind: input, shape index: {}]
  %s20 = inlined_call_operand.vmem [shape: f32[2,1,32], index: 20, kind: input, shape index: {}]
  %s21 = inlined_call_operand.vmem [shape: f32[2,1,32], index: 21, kind: input, shape index: {}]
  %s22 = inlined_call_operand.vmem [shape: f32[2,1,32], index: 22, kind: input, shape index: {}]
  %s23 = inlined_call_operand.vmem [shape: f32[2,8,32], index: 23, kind: output, shape index: {0}]
  %s24 = inlined_call_operand.hbm [shape: f32[2,2,8,16], index: 24, kind: output, shape index: {1}]
  %25 = xla_tuple %s23, %s24
  %s26 = sld [smem:[#allocation0]]
  $region141: #{decoder_forward.1} parent=0
    _
  %s28 = ssub.s32 1, %s26
  %s29 = scalar_select 0, %s28, %s26
  $region1: #{decoder_forward.1} parent=0
    #allocation4 [shape = 'u8[8192]{0}', space=vmem, size = 0x2000, scoped, tag = 'output window, operand 1']
    #allocation5 [shape = 's32[2]{0}', space=sflag, size = 0x8, scoped, tag = 'scoped memory for decoder_forward.1']
    %30 = vsyncpa [#allocation5], 0
    %s31 = scalar_lea.sflag [#allocation5], 1
    %32 = vsyncpa %s31, 0
    loop: start=0, step=1, limit=6
    $region2: #{decoder_forward.1} parent=1 // loop_pre_header
      _
    $region3: #{decoder_forward.1} parent=1 // loop_header
      %s34 = sphi 0, %s38
      %p35 = scmp.ge.s32.totalorder %s34, 6
      %s41 = sphi 0, %s53
      %s42 = sphi 0, %s49
      %s43 = sphi 0, %s41
      %s44 = sphi 0, %s42
      %s45 = sphi 0, %s43
      %s46 = sphi 0, %s44
      %s56 = sphi 0, %s58
      %s59 = sphi 0, %s56
      %s60 = sphi 0, %s59
      %s76 = sphi 0, %s60
      %s82 = sphi 0, %s84
      %s85 = sphi 0, %s82
      %s86 = sphi 0, %s85
      %s102 = sphi 0, %s86
      %s108 = sphi 0, %s110
      %s111 = sphi 0, %s108
      %s112 = sphi 0, %s111
      %s128 = sphi 0, %s112
      %s134 = sphi 0, %s136
      %s137 = sphi 0, %s134
      %s138 = sphi 0, %s137
      %s154 = sphi 0, %s138
      %s160 = sphi 0, %s162
      %s163 = sphi 0, %s160
      %s164 = sphi 0, %s163
      %s180 = sphi 0, %s164
      %s186 = sphi 0, %s188
      %s189 = sphi 0, %s186
      %s190 = sphi 0, %s189
      %s206 = sphi 0, %s190
      %s212 = sphi 0, %s214
      %s215 = sphi 0, %s212
      %s216 = sphi 0, %s215
      %s232 = sphi 0, %s216
      %s238 = sphi 0, %s240
      %s241 = sphi 0, %s238
      %s242 = sphi 0, %s241
      %s258 = sphi 0, %s242
      %s264 = sphi 0, %s266
      %s267 = sphi 0, %s264
      %s268 = sphi 0, %s267
      %s284 = sphi 0, %s268
      %s290 = sphi 0, %s292
      %s293 = sphi 0, %s290
      %s294 = sphi 0, %s293
      %s310 = sphi 0, %s294
      %s316 = sphi 0, %s318
      %s319 = sphi 0, %s316
      %s320 = sphi 0, %s319
      %s336 = sphi 0, %s320
      %s342 = sphi 0, %s344
      %s345 = sphi 0, %s342
      %s346 = sphi 0, %s345
      %s362 = sphi 0, %s346
      %s368 = sphi 0, %s370
      %s371 = sphi 0, %s368
      %s372 = sphi 0, %s371
      %s388 = sphi 0, %s372
      %s394 = sphi 0, %s396
      %s397 = sphi 0, %s394
      %s398 = sphi 0, %s397
      %s414 = sphi 0, %s398
      %s420 = sphi 0, %s422
      %s423 = sphi 0, %s420
      %s424 = sphi 0, %s423
      %s440 = sphi 0, %s424
      %s446 = sphi 0, %s448
      %s449 = sphi 0, %s446
      %s450 = sphi 0, %s449
      %s466 = sphi 0, %s450
      %s472 = sphi 0, %s474
      %s475 = sphi 0, %s472
      %s476 = sphi 0, %s475
      %s492 = sphi 0, %s476
      %s498 = sphi 0, %s500
      %s501 = sphi 0, %s498
      %s502 = sphi 0, %s501
      %s518 = sphi 0, %s502
      %s524 = sphi 0, %s526
      %s527 = sphi 0, %s524
      %s528 = sphi 0, %s527
      %s544 = sphi 0, %s528
      %s550 = sphi 0, %s552
      %s553 = sphi 0, %s550
      %s554 = sphi 0, %s553
      %s570 = sphi 0, %s554
      %s576 = sphi 0, %s578
      %s579 = sphi 0, %s576
      %s580 = sphi 0, %s579
      %s596 = sphi 0, %s580
      %s602 = sphi 0, %s604
      %s605 = sphi 0, %s602
      %s606 = sphi 0, %s605
      %s622 = sphi 0, %s606
      %s628 = sphi 0, %s630
      %s631 = sphi 0, %s628
      %s632 = sphi 0, %s631
      %s648 = sphi 0, %s632
      %s654 = sphi 0, %s656
      %s657 = sphi 0, %s654
      %s658 = sphi 0, %s657
      %s674 = sphi 0, %s658
      %s682 = sphi 0, %s684
      %s685 = sphi 0, %s682
      %s686 = sphi 0, %s685
      %s702 = sphi 0, %s686
    $region4: #{decoder_forward.1} parent=1 // loop_header_branch
      %37 = sbr.rel (%p35) target = $region8
    $region5: #{decoder_forward.1} parent=1 // loop_body
      %s39 = ssub.s32 %s34, 1
      %s40 = ssub.s32 %s34, 2
      %s47 = sadd.s32 1, %s42
      %p48 = scmp.ge.s32.totalorder %s47, 2
      %s49 = scalar_select %p48, 0, %s47
      %s50 = sadd.s32 1, %s41
      %s51 = scalar_select %p48, %s50, %s41
      %p52 = scmp.ge.s32.totalorder %s51, 2
      %s53 = scalar_select %p52, 0, %s51
      %s54 = ssub.s32 %s41, %s53
      %p55 = scmp.eq.s32.totalorder %s54, 0
      %s57 = sadd.s32 %s56, 1
      %s58 = scalar_select %p55, %s56, %s57
      %p61 = pneg %p55
      %p62 = scmp.eq.s32.totalorder %s34, 3
      %p63 = por %p61, %p62
      %p64 = scmp.ne.s32.totalorder %s56, %s59
      %p65 = scmp.eq.s32.totalorder %s34, 0
      %p66 = por %p64, %p65
      %p67 = scmp.ne.s32.totalorder %s56, %s59
      %p68 = scmp.eq.s32.totalorder %s39, 3
      %p69 = por %p67, %p68
      %p70 = scmp.ne.s32.totalorder %s59, %s60
      %p71 = scmp.eq.s32.totalorder %s39, 0
      %p72 = por %p70, %p71
      %p73 = scmp.ne.s32.totalorder %s59, %s60
      %p74 = scmp.eq.s32.totalorder %s40, 3
      %p75 = por %p73, %p74
      %p77 = scmp.ne.s32.totalorder %s60, %s76
      %p78 = scmp.eq.s32.totalorder %s40, 0
      %p79 = por %p77, %p78
      %s80 = ssub.s32 %s41, %s53
      %p81 = scmp.eq.s32.totalorder %s80, 0
      %s83 = sadd.s32 %s82, 1
      %s84 = scalar_select %p81, %s82, %s83
      %p87 = pneg %p81
      %p88 = scmp.eq.s32.totalorder %s34, 3
      %p89 = por %p87, %p88
      %p90 = scmp.ne.s32.totalorder %s82, %s85
      %p91 = scmp.eq.s32.totalorder %s34, 0
      %p92 = por %p90, %p91
      %p93 = scmp.ne.s32.totalorder %s82, %s85
      %p94 = scmp.eq.s32.totalorder %s39, 3
      %p95 = por %p93, %p94
      %p96 = scmp.ne.s32.totalorder %s85, %s86
      %p97 = scmp.eq.s32.totalorder %s39, 0
      %p98 = por %p96, %p97
      %p99 = scmp.ne.s32.totalorder %s85, %s86
      %p100 = scmp.eq.s32.totalorder %s40, 3
      %p101 = por %p99, %p100
      %p103 = scmp.ne.s32.totalorder %s86, %s102
      %p104 = scmp.eq.s32.totalorder %s40, 0
      %p105 = por %p103, %p104
      %s106 = ssub.s32 %s41, %s53
      %p107 = scmp.eq.s32.totalorder %s106, 0
      %s109 = sadd.s32 %s108, 1
      %s110 = scalar_select %p107, %s108, %s109
      %p113 = pneg %p107
      %p114 = scmp.eq.s32.totalorder %s34, 3
      %p115 = por %p113, %p114
      %p116 = scmp.ne.s32.totalorder %s108, %s111
      %p117 = scmp.eq.s32.totalorder %s34, 0
      %p118 = por %p116, %p117
      %p119 = scmp.ne.s32.totalorder %s108, %s111
      %p120 = scmp.eq.s32.totalorder %s39, 3
      %p121 = por %p119, %p120
      %p122 = scmp.ne.s32.totalorder %s111, %s112
      %p123 = scmp.eq.s32.totalorder %s39, 0
      %p124 = por %p122, %p123
      %p125 = scmp.ne.s32.totalorder %s111, %s112
      %p126 = scmp.eq.s32.totalorder %s40, 3
      %p127 = por %p125, %p126
      %p129 = scmp.ne.s32.totalorder %s112, %s128
      %p130 = scmp.eq.s32.totalorder %s40, 0
      %p131 = por %p129, %p130
      %s132 = ssub.s32 %s42, %s49
      %p133 = scmp.eq.s32.totalorder %s132, 0
      %s135 = sadd.s32 %s134, 1
      %s136 = scalar_select %p133, %s134, %s135
      %p139 = pneg %p133
      %p140 = scmp.eq.s32.totalorder %s34, 3
      %p141 = por %p139, %p140
      %p142 = scmp.ne.s32.totalorder %s134, %s137
      %p143 = scmp.eq.s32.totalorder %s34, 0
      %p144 = por %p142, %p143
      %p145 = scmp.ne.s32.totalorder %s134, %s137
      %p146 = scmp.eq.s32.totalorder %s39, 3
      %p147 = por %p145, %p146
      %p148 = scmp.ne.s32.totalorder %s137, %s138
      %p149 = scmp.eq.s32.totalorder %s39, 0
      %p150 = por %p148, %p149
      %p151 = scmp.ne.s32.totalorder %s137, %s138
      %p152 = scmp.eq.s32.totalorder %s40, 3
      %p153 = por %p151, %p152
      %p155 = scmp.ne.s32.totalorder %s138, %s154
      %p156 = scmp.eq.s32.totalorder %s40, 0
      %p157 = por %p155, %p156
      %s158 = ssub.s32 %s42, %s49
      %p159 = scmp.eq.s32.totalorder %s158, 0
      %s161 = sadd.s32 %s160, 1
      %s162 = scalar_select %p159, %s160, %s161
      %p165 = pneg %p159
      %p166 = scmp.eq.s32.totalorder %s34, 3
      %p167 = por %p165, %p166
      %p168 = scmp.ne.s32.totalorder %s160, %s163
      %p169 = scmp.eq.s32.totalorder %s34, 0
      %p170 = por %p168, %p169
      %p171 = scmp.ne.s32.totalorder %s160, %s163
      %p172 = scmp.eq.s32.totalorder %s39, 3
      %p173 = por %p171, %p172
      %p174 = scmp.ne.s32.totalorder %s163, %s164
      %p175 = scmp.eq.s32.totalorder %s39, 0
      %p176 = por %p174, %p175
      %p177 = scmp.ne.s32.totalorder %s163, %s164
      %p178 = scmp.eq.s32.totalorder %s40, 3
      %p179 = por %p177, %p178
      %p181 = scmp.ne.s32.totalorder %s164, %s180
      %p182 = scmp.eq.s32.totalorder %s40, 0
      %p183 = por %p181, %p182
      %s184 = ssub.s32 %s42, %s49
      %p185 = scmp.eq.s32.totalorder %s184, 0
      %s187 = sadd.s32 %s186, 1
      %s188 = scalar_select %p185, %s186, %s187
      %p191 = pneg %p185
      %p192 = scmp.eq.s32.totalorder %s34, 3
      %p193 = por %p191, %p192
      %p194 = scmp.ne.s32.totalorder %s186, %s189
      %p195 = scmp.eq.s32.totalorder %s34, 0
      %p196 = por %p194, %p195
      %p197 = scmp.ne.s32.totalorder %s186, %s189
      %p198 = scmp.eq.s32.totalorder %s39, 3
      %p199 = por %p197, %p198
      %p200 = scmp.ne.s32.totalorder %s189, %s190
      %p201 = scmp.eq.s32.totalorder %s39, 0
      %p202 = por %p200, %p201
      %p203 = scmp.ne.s32.totalorder %s189, %s190
      %p204 = scmp.eq.s32.totalorder %s40, 3
      %p205 = por %p203, %p204
      %p207 = scmp.ne.s32.totalorder %s190, %s206
      %p208 = scmp.eq.s32.totalorder %s40, 0
      %p209 = por %p207, %p208
      %s210 = ssub.s32 %s42, %s49
      %p211 = scmp.eq.s32.totalorder %s210, 0
      %s213 = sadd.s32 %s212, 1
      %s214 = scalar_select %p211, %s212, %s213
      %p217 = pneg %p211
      %p218 = scmp.eq.s32.totalorder %s34, 3
      %p219 = por %p217, %p218
      %p220 = scmp.ne.s32.totalorder %s212, %s215
      %p221 = scmp.eq.s32.totalorder %s34, 0
      %p222 = por %p220, %p221
      %p223 = scmp.ne.s32.totalorder %s212, %s215
      %p224 = scmp.eq.s32.totalorder %s39, 3
      %p225 = por %p223, %p224
      %p226 = scmp.ne.s32.totalorder %s215, %s216
      %p227 = scmp.eq.s32.totalorder %s39, 0
      %p228 = por %p226, %p227
      %p229 = scmp.ne.s32.totalorder %s215, %s216
      %p230 = scmp.eq.s32.totalorder %s40, 3
      %p231 = por %p229, %p230
      %p233 = scmp.ne.s32.totalorder %s216, %s232
      %p234 = scmp.eq.s32.totalorder %s40, 0
      %p235 = por %p233, %p234
      %s236 = ssub.s32 %s42, %s49
      %p237 = scmp.eq.s32.totalorder %s236, 0
      %s239 = sadd.s32 %s238, 1
      %s240 = scalar_select %p237, %s238, %s239
      %p243 = pneg %p237
      %p244 = scmp.eq.s32.totalorder %s34, 3
      %p245 = por %p243, %p244
      %p246 = scmp.ne.s32.totalorder %s238, %s241
      %p247 = scmp.eq.s32.totalorder %s34, 0
      %p248 = por %p246, %p247
      %p249 = scmp.ne.s32.totalorder %s238, %s241
      %p250 = scmp.eq.s32.totalorder %s39, 3
      %p251 = por %p249, %p250
      %p252 = scmp.ne.s32.totalorder %s241, %s242
      %p253 = scmp.eq.s32.totalorder %s39, 0
      %p254 = por %p252, %p253
      %p255 = scmp.ne.s32.totalorder %s241, %s242
      %p256 = scmp.eq.s32.totalorder %s40, 3
      %p257 = por %p255, %p256
      %p259 = scmp.ne.s32.totalorder %s242, %s258
      %p260 = scmp.eq.s32.totalorder %s40, 0
      %p261 = por %p259, %p260
      %s262 = ssub.s32 %s42, %s49
      %p263 = scmp.eq.s32.totalorder %s262, 0
      %s265 = sadd.s32 %s264, 1
      %s266 = scalar_select %p263, %s264, %s265
      %p269 = pneg %p263
      %p270 = scmp.eq.s32.totalorder %s34, 3
      %p271 = por %p269, %p270
      %p272 = scmp.ne.s32.totalorder %s264, %s267
      %p273 = scmp.eq.s32.totalorder %s34, 0
      %p274 = por %p272, %p273
      %p275 = scmp.ne.s32.totalorder %s264, %s267
      %p276 = scmp.eq.s32.totalorder %s39, 3
      %p277 = por %p275, %p276
      %p278 = scmp.ne.s32.totalorder %s267, %s268
      %p279 = scmp.eq.s32.totalorder %s39, 0
      %p280 = por %p278, %p279
      %p281 = scmp.ne.s32.totalorder %s267, %s268
      %p282 = scmp.eq.s32.totalorder %s40, 3
      %p283 = por %p281, %p282
      %p285 = scmp.ne.s32.totalorder %s268, %s284
      %p286 = scmp.eq.s32.totalorder %s40, 0
      %p287 = por %p285, %p286
      %s288 = ssub.s32 %s42, %s49
      %p289 = scmp.eq.s32.totalorder %s288, 0
      %s291 = sadd.s32 %s290, 1
      %s292 = scalar_select %p289, %s290, %s291
      %p295 = pneg %p289
      %p296 = scmp.eq.s32.totalorder %s34, 3
      %p297 = por %p295, %p296
      %p298 = scmp.ne.s32.totalorder %s290, %s293
      %p299 = scmp.eq.s32.totalorder %s34, 0
      %p300 = por %p298, %p299
      %p301 = scmp.ne.s32.totalorder %s290, %s293
      %p302 = scmp.eq.s32.totalorder %s39, 3
      %p303 = por %p301, %p302
      %p304 = scmp.ne.s32.totalorder %s293, %s294
      %p305 = scmp.eq.s32.totalorder %s39, 0
      %p306 = por %p304, %p305
      %p307 = scmp.ne.s32.totalorder %s293, %s294
      %p308 = scmp.eq.s32.totalorder %s40, 3
      %p309 = por %p307, %p308
      %p311 = scmp.ne.s32.totalorder %s294, %s310
      %p312 = scmp.eq.s32.totalorder %s40, 0
      %p313 = por %p311, %p312
      %s314 = ssub.s32 %s42, %s49
      %p315 = scmp.eq.s32.totalorder %s314, 0
      %s317 = sadd.s32 %s316, 1
      %s318 = scalar_select %p315, %s316, %s317
      %p321 = pneg %p315
      %p322 = scmp.eq.s32.totalorder %s34, 3
      %p323 = por %p321, %p322
      %p324 = scmp.ne.s32.totalorder %s316, %s319
      %p325 = scmp.eq.s32.totalorder %s34, 0
      %p326 = por %p324, %p325
      %p327 = scmp.ne.s32.totalorder %s316, %s319
      %p328 = scmp.eq.s32.totalorder %s39, 3
      %p329 = por %p327, %p328
      %p330 = scmp.ne.s32.totalorder %s319, %s320
      %p331 = scmp.eq.s32.totalorder %s39, 0
      %p332 = por %p330, %p331
      %p333 = scmp.ne.s32.totalorder %s319, %s320
      %p334 = scmp.eq.s32.totalorder %s40, 3
      %p335 = por %p333, %p334
      %p337 = scmp.ne.s32.totalorder %s320, %s336
      %p338 = scmp.eq.s32.totalorder %s40, 0
      %p339 = por %p337, %p338
      %s340 = ssub.s32 %s42, %s49
      %p341 = scmp.eq.s32.totalorder %s340, 0
      %s343 = sadd.s32 %s342, 1
      %s344 = scalar_select %p341, %s342, %s343
      %p347 = pneg %p341
      %p348 = scmp.eq.s32.totalorder %s34, 3
      %p349 = por %p347, %p348
      %p350 = scmp.ne.s32.totalorder %s342, %s345
      %p351 = scmp.eq.s32.totalorder %s34, 0
      %p352 = por %p350, %p351
      %p353 = scmp.ne.s32.totalorder %s342, %s345
      %p354 = scmp.eq.s32.totalorder %s39, 3
      %p355 = por %p353, %p354
      %p356 = scmp.ne.s32.totalorder %s345, %s346
      %p357 = scmp.eq.s32.totalorder %s39, 0
      %p358 = por %p356, %p357
      %p359 = scmp.ne.s32.totalorder %s345, %s346
      %p360 = scmp.eq.s32.totalorder %s40, 3
      %p361 = por %p359, %p360
      %p363 = scmp.ne.s32.totalorder %s346, %s362
      %p364 = scmp.eq.s32.totalorder %s40, 0
      %p365 = por %p363, %p364
      %s366 = ssub.s32 %s42, %s49
      %p367 = scmp.eq.s32.totalorder %s366, 0
      %s369 = sadd.s32 %s368, 1
      %s370 = scalar_select %p367, %s368, %s369
      %p373 = pneg %p367
      %p374 = scmp.eq.s32.totalorder %s34, 3
      %p375 = por %p373, %p374
      %p376 = scmp.ne.s32.totalorder %s368, %s371
      %p377 = scmp.eq.s32.totalorder %s34, 0
      %p378 = por %p376, %p377
      %p379 = scmp.ne.s32.totalorder %s368, %s371
      %p380 = scmp.eq.s32.totalorder %s39, 3
      %p381 = por %p379, %p380
      %p382 = scmp.ne.s32.totalorder %s371, %s372
      %p383 = scmp.eq.s32.totalorder %s39, 0
      %p384 = por %p382, %p383
      %p385 = scmp.ne.s32.totalorder %s371, %s372
      %p386 = scmp.eq.s32.totalorder %s40, 3
      %p387 = por %p385, %p386
      %p389 = scmp.ne.s32.totalorder %s372, %s388
      %p390 = scmp.eq.s32.totalorder %s40, 0
      %p391 = por %p389, %p390
      %s392 = ssub.s32 %s42, %s49
      %p393 = scmp.eq.s32.totalorder %s392, 0
      %s395 = sadd.s32 %s394, 1
      %s396 = scalar_select %p393, %s394, %s395
      %p399 = pneg %p393
      %p400 = scmp.eq.s32.totalorder %s34, 3
      %p401 = por %p399, %p400
      %p402 = scmp.ne.s32.totalorder %s394, %s397
      %p403 = scmp.eq.s32.totalorder %s34, 0
      %p404 = por %p402, %p403
      %p405 = scmp.ne.s32.totalorder %s394, %s397
      %p406 = scmp.eq.s32.totalorder %s39, 3
      %p407 = por %p405, %p406
      %p408 = scmp.ne.s32.totalorder %s397, %s398
      %p409 = scmp.eq.s32.totalorder %s39, 0
      %p410 = por %p408, %p409
      %p411 = scmp.ne.s32.totalorder %s397, %s398
      %p412 = scmp.eq.s32.totalorder %s40, 3
      %p413 = por %p411, %p412
      %p415 = scmp.ne.s32.totalorder %s398, %s414
      %p416 = scmp.eq.s32.totalorder %s40, 0
      %p417 = por %p415, %p416
      %s418 = ssub.s32 %s42, %s49
      %p419 = scmp.eq.s32.totalorder %s418, 0
      %s421 = sadd.s32 %s420, 1
      %s422 = scalar_select %p419, %s420, %s421
      %p425 = pneg %p419
      %p426 = scmp.eq.s32.totalorder %s34, 3
      %p427 = por %p425, %p426
      %p428 = scmp.ne.s32.totalorder %s420, %s423
      %p429 = scmp.eq.s32.totalorder %s34, 0
      %p430 = por %p428, %p429
      %p431 = scmp.ne.s32.totalorder %s420, %s423
      %p432 = scmp.eq.s32.totalorder %s39, 3
      %p433 = por %p431, %p432
      %p434 = scmp.ne.s32.totalorder %s423, %s424
      %p435 = scmp.eq.s32.totalorder %s39, 0
      %p436 = por %p434, %p435
      %p437 = scmp.ne.s32.totalorder %s423, %s424
      %p438 = scmp.eq.s32.totalorder %s40, 3
      %p439 = por %p437, %p438
      %p441 = scmp.ne.s32.totalorder %s424, %s440
      %p442 = scmp.eq.s32.totalorder %s40, 0
      %p443 = por %p441, %p442
      %s444 = ssub.s32 %s42, %s49
      %p445 = scmp.eq.s32.totalorder %s444, 0
      %s447 = sadd.s32 %s446, 1
      %s448 = scalar_select %p445, %s446, %s447
      %p451 = pneg %p445
      %p452 = scmp.eq.s32.totalorder %s34, 3
      %p453 = por %p451, %p452
      %p454 = scmp.ne.s32.totalorder %s446, %s449
      %p455 = scmp.eq.s32.totalorder %s34, 0
      %p456 = por %p454, %p455
      %p457 = scmp.ne.s32.totalorder %s446, %s449
      %p458 = scmp.eq.s32.totalorder %s39, 3
      %p459 = por %p457, %p458
      %p460 = scmp.ne.s32.totalorder %s449, %s450
      %p461 = scmp.eq.s32.totalorder %s39, 0
      %p462 = por %p460, %p461
      %p463 = scmp.ne.s32.totalorder %s449, %s450
      %p464 = scmp.eq.s32.totalorder %s40, 3
      %p465 = por %p463, %p464
      %p467 = scmp.ne.s32.totalorder %s450, %s466
      %p468 = scmp.eq.s32.totalorder %s40, 0
      %p469 = por %p467, %p468
      %s470 = ssub.s32 %s42, %s49
      %p471 = scmp.eq.s32.totalorder %s470, 0
      %s473 = sadd.s32 %s472, 1
      %s474 = scalar_select %p471, %s472, %s473
      %p477 = pneg %p471
      %p478 = scmp.eq.s32.totalorder %s34, 3
      %p479 = por %p477, %p478
      %p480 = scmp.ne.s32.totalorder %s472, %s475
      %p481 = scmp.eq.s32.totalorder %s34, 0
      %p482 = por %p480, %p481
      %p483 = scmp.ne.s32.totalorder %s472, %s475
      %p484 = scmp.eq.s32.totalorder %s39, 3
      %p485 = por %p483, %p484
      %p486 = scmp.ne.s32.totalorder %s475, %s476
      %p487 = scmp.eq.s32.totalorder %s39, 0
      %p488 = por %p486, %p487
      %p489 = scmp.ne.s32.totalorder %s475, %s476
      %p490 = scmp.eq.s32.totalorder %s40, 3
      %p491 = por %p489, %p490
      %p493 = scmp.ne.s32.totalorder %s476, %s492
      %p494 = scmp.eq.s32.totalorder %s40, 0
      %p495 = por %p493, %p494
      %s496 = ssub.s32 %s42, %s49
      %p497 = scmp.eq.s32.totalorder %s496, 0
      %s499 = sadd.s32 %s498, 1
      %s500 = scalar_select %p497, %s498, %s499
      %p503 = pneg %p497
      %p504 = scmp.eq.s32.totalorder %s34, 3
      %p505 = por %p503, %p504
      %p506 = scmp.ne.s32.totalorder %s498, %s501
      %p507 = scmp.eq.s32.totalorder %s34, 0
      %p508 = por %p506, %p507
      %p509 = scmp.ne.s32.totalorder %s498, %s501
      %p510 = scmp.eq.s32.totalorder %s39, 3
      %p511 = por %p509, %p510
      %p512 = scmp.ne.s32.totalorder %s501, %s502
      %p513 = scmp.eq.s32.totalorder %s39, 0
      %p514 = por %p512, %p513
      %p515 = scmp.ne.s32.totalorder %s501, %s502
      %p516 = scmp.eq.s32.totalorder %s40, 3
      %p517 = por %p515, %p516
      %p519 = scmp.ne.s32.totalorder %s502, %s518
      %p520 = scmp.eq.s32.totalorder %s40, 0
      %p521 = por %p519, %p520
      %s522 = ssub.s32 %s42, %s49
      %p523 = scmp.eq.s32.totalorder %s522, 0
      %s525 = sadd.s32 %s524, 1
      %s526 = scalar_select %p523, %s524, %s525
      %p529 = pneg %p523
      %p530 = scmp.eq.s32.totalorder %s34, 3
      %p531 = por %p529, %p530
      %p532 = scmp.ne.s32.totalorder %s524, %s527
      %p533 = scmp.eq.s32.totalorder %s34, 0
      %p534 = por %p532, %p533
      %p535 = scmp.ne.s32.totalorder %s524, %s527
      %p536 = scmp.eq.s32.totalorder %s39, 3
      %p537 = por %p535, %p536
      %p538 = scmp.ne.s32.totalorder %s527, %s528
      %p539 = scmp.eq.s32.totalorder %s39, 0
      %p540 = por %p538, %p539
      %p541 = scmp.ne.s32.totalorder %s527, %s528
      %p542 = scmp.eq.s32.totalorder %s40, 3
      %p543 = por %p541, %p542
      %p545 = scmp.ne.s32.totalorder %s528, %s544
      %p546 = scmp.eq.s32.totalorder %s40, 0
      %p547 = por %p545, %p546
      %s548 = ssub.s32 %s42, %s49
      %p549 = scmp.eq.s32.totalorder %s548, 0
      %s551 = sadd.s32 %s550, 1
      %s552 = scalar_select %p549, %s550, %s551
      %p555 = pneg %p549
      %p556 = scmp.eq.s32.totalorder %s34, 3
      %p557 = por %p555, %p556
      %p558 = scmp.ne.s32.totalorder %s550, %s553
      %p559 = scmp.eq.s32.totalorder %s34, 0
      %p560 = por %p558, %p559
      %p561 = scmp.ne.s32.totalorder %s550, %s553
      %p562 = scmp.eq.s32.totalorder %s39, 3
      %p563 = por %p561, %p562
      %p564 = scmp.ne.s32.totalorder %s553, %s554
      %p565 = scmp.eq.s32.totalorder %s39, 0
      %p566 = por %p564, %p565
      %p567 = scmp.ne.s32.totalorder %s553, %s554
      %p568 = scmp.eq.s32.totalorder %s40, 3
      %p569 = por %p567, %p568
      %p571 = scmp.ne.s32.totalorder %s554, %s570
      %p572 = scmp.eq.s32.totalorder %s40, 0
      %p573 = por %p571, %p572
      %s574 = ssub.s32 %s42, %s49
      %p575 = scmp.eq.s32.totalorder %s574, 0
      %s577 = sadd.s32 %s576, 1
      %s578 = scalar_select %p575, %s576, %s577
      %p581 = pneg %p575
      %p582 = scmp.eq.s32.totalorder %s34, 3
      %p583 = por %p581, %p582
      %p584 = scmp.ne.s32.totalorder %s576, %s579
      %p585 = scmp.eq.s32.totalorder %s34, 0
      %p586 = por %p584, %p585
      %p587 = scmp.ne.s32.totalorder %s576, %s579
      %p588 = scmp.eq.s32.totalorder %s39, 3
      %p589 = por %p587, %p588
      %p590 = scmp.ne.s32.totalorder %s579, %s580
      %p591 = scmp.eq.s32.totalorder %s39, 0
      %p592 = por %p590, %p591
      %p593 = scmp.ne.s32.totalorder %s579, %s580
      %p594 = scmp.eq.s32.totalorder %s40, 3
      %p595 = por %p593, %p594
      %p597 = scmp.ne.s32.totalorder %s580, %s596
      %p598 = scmp.eq.s32.totalorder %s40, 0
      %p599 = por %p597, %p598
      %s600 = ssub.s32 %s42, %s49
      %p601 = scmp.eq.s32.totalorder %s600, 0
      %s603 = sadd.s32 %s602, 1
      %s604 = scalar_select %p601, %s602, %s603
      %p607 = pneg %p601
      %p608 = scmp.eq.s32.totalorder %s34, 3
      %p609 = por %p607, %p608
      %p610 = scmp.ne.s32.totalorder %s602, %s605
      %p611 = scmp.eq.s32.totalorder %s34, 0
      %p612 = por %p610, %p611
      %p613 = scmp.ne.s32.totalorder %s602, %s605
      %p614 = scmp.eq.s32.totalorder %s39, 3
      %p615 = por %p613, %p614
      %p616 = scmp.ne.s32.totalorder %s605, %s606
      %p617 = scmp.eq.s32.totalorder %s39, 0
      %p618 = por %p616, %p617
      %p619 = scmp.ne.s32.totalorder %s605, %s606
      %p620 = scmp.eq.s32.totalorder %s40, 3
      %p621 = por %p619, %p620
      %p623 = scmp.ne.s32.totalorder %s606, %s622
      %p624 = scmp.eq.s32.totalorder %s40, 0
      %p625 = por %p623, %p624
      %s626 = ssub.s32 %s42, %s49
      %p627 = scmp.eq.s32.totalorder %s626, 0
      %s629 = sadd.s32 %s628, 1
      %s630 = scalar_select %p627, %s628, %s629
      %p633 = pneg %p627
      %p634 = scmp.eq.s32.totalorder %s34, 3
      %p635 = por %p633, %p634
      %p636 = scmp.ne.s32.totalorder %s628, %s631
      %p637 = scmp.eq.s32.totalorder %s34, 0
      %p638 = por %p636, %p637
      %p639 = scmp.ne.s32.totalorder %s628, %s631
      %p640 = scmp.eq.s32.totalorder %s39, 3
      %p641 = por %p639, %p640
      %p642 = scmp.ne.s32.totalorder %s631, %s632
      %p643 = scmp.eq.s32.totalorder %s39, 0
      %p644 = por %p642, %p643
      %p645 = scmp.ne.s32.totalorder %s631, %s632
      %p646 = scmp.eq.s32.totalorder %s40, 3
      %p647 = por %p645, %p646
      %p649 = scmp.ne.s32.totalorder %s632, %s648
      %p650 = scmp.eq.s32.totalorder %s40, 0
      %p651 = por %p649, %p650
      %s652 = ssub.s32 %s41, %s53
      %p653 = scmp.eq.s32.totalorder %s652, 0
      %s655 = sadd.s32 %s654, 1
      %s656 = scalar_select %p653, %s654, %s655
      %p659 = pneg %p653
      %p660 = scmp.eq.s32.totalorder %s34, 3
      %p661 = por %p659, %p660
      %p662 = scmp.ne.s32.totalorder %s654, %s657
      %p663 = scmp.eq.s32.totalorder %s34, 0
      %p664 = por %p662, %p663
      %p665 = scmp.ne.s32.totalorder %s654, %s657
      %p666 = scmp.eq.s32.totalorder %s39, 3
      %p667 = por %p665, %p666
      %p668 = scmp.ne.s32.totalorder %s657, %s658
      %p669 = scmp.eq.s32.totalorder %s39, 0
      %p670 = por %p668, %p669
      %p671 = scmp.ne.s32.totalorder %s657, %s658
      %p672 = scmp.eq.s32.totalorder %s40, 3
      %p673 = por %p671, %p672
      %p675 = scmp.ne.s32.totalorder %s658, %s674
      %p676 = scmp.eq.s32.totalorder %s40, 0
      %p677 = por %p675, %p676
      %s678 = ssub.s32 %s42, %s49
      %s679 = ssub.s32 %s41, %s53
      %s680 = sor.u32 %s678, %s679
      %p681 = scmp.eq.s32.totalorder %s680, 0
      %s683 = sadd.s32 %s682, 1
      %s684 = scalar_select %p681, %s682, %s683
      %p687 = pneg %p681
      %p688 = scmp.eq.s32.totalorder %s34, 3
      %p689 = por %p687, %p688
      %p690 = scmp.ne.s32.totalorder %s682, %s685
      %p691 = scmp.eq.s32.totalorder %s34, 0
      %p692 = por %p690, %p691
      %p693 = scmp.ne.s32.totalorder %s682, %s685
      %p694 = scmp.eq.s32.totalorder %s39, 3
      %p695 = por %p693, %p694
      %p696 = scmp.ne.s32.totalorder %s685, %s686
      %p697 = scmp.eq.s32.totalorder %s39, 0
      %p698 = por %p696, %p697
      %p699 = scmp.ne.s32.totalorder %s685, %s686
      %p700 = scmp.eq.s32.totalorder %s40, 3
      %p701 = por %p699, %p700
      %p703 = scmp.ne.s32.totalorder %s686, %s702
      %p704 = scmp.eq.s32.totalorder %s40, 0
      %p705 = por %p703, %p704
      %p706 = scmp.le.s32.totalorder 1, %s34
      %p707 = scmp.lt.s32.totalorder %s34, 5
      %p708 = pnand %p706, %p707
      %p709 = pneg %p708
      // Predicated region
      $region9: #{decoder_forward.1} parent=5 // pred_check
        _
      $region10: #{decoder_forward.1} parent=5 // pred_check_branch
        %711 = sbr.rel (%p708) target = $region12
      $region11: #{decoder_forward.1} parent=5 // pred_region
        %s712 = ssub.s32 %s34, 1
      $region12: #{decoder_forward.1} parent=5 // pred_fallthru
        _
      %p713 = scmp.lt.s32.totalorder %s34, 4
      // Predicated region
      $region13: #{decoder_forward.1} parent=5 // pred_check
        %p714 = pneg %p713
      $region14: #{decoder_forward.1} parent=5 // pred_check_branch
        %716 = sbr.rel (%p714) target = $region16
      $region15: #{decoder_forward.1} parent=5 // pred_region
        // Predicated region
        $region17: #{decoder_forward.1} parent=15 // pred_check
          %p717 = pneg %p66
        $region18: #{decoder_forward.1} parent=15 // pred_check_branch
          %719 = sbr.rel (%p717) target = $region20
        $region19: #{decoder_forward.1} parent=15 // pred_region
          %p720 = scmp.lt.s32.totalorder %s41, 1
          %s721 = scalar_select %p720, %s41, 1
          %s722 = smul.addr %s721, 8
          %s723 = scalar_lea.vmem %s0, %s722
        $region20: #{decoder_forward.1} parent=15 // pred_fallthru
          _
        // Predicated region
        $region21: #{decoder_forward.1} parent=15 // pred_check
          %p724 = pneg %p92
        $region22: #{decoder_forward.1} parent=15 // pred_check_branch
          %726 = sbr.rel (%p724) target = $region24
        $region23: #{decoder_forward.1} parent=15 // pred_region
          %p727 = scmp.lt.s32.totalorder %s41, 1
          %s728 = scalar_select %p727, %s41, 1
          %s729 = smul.addr %s728, 2
          %s730 = smul.addr %s729, 8
          %s731 = scalar_lea.vmem %s1, %s730
        $region24: #{decoder_forward.1} parent=15 // pred_fallthru
          _
        // Predicated region
        $region25: #{decoder_forward.1} parent=15 // pred_check
          %p732 = pneg %p118
        $region26: #{decoder_forward.1} parent=15 // pred_check_branch
          %734 = sbr.rel (%p732) target = $region28
        $region27: #{decoder_forward.1} parent=15 // pred_region
          %p735 = scmp.lt.s32.totalorder %s41, 1
          %s736 = scalar_select %p735, %s41, 1
          %s737 = scalar_lea.vmem %s2, %s736
        $region28: #{decoder_forward.1} parent=15 // pred_fallthru
          _
        // Predicated region
        $region29: #{decoder_forward.1} parent=15 // pred_check
          %p738 = pneg %p144
        $region30: #{decoder_forward.1} parent=15 // pred_check_branch
          %740 = sbr.rel (%p738) target = $region32
        $region31: #{decoder_forward.1} parent=15 // pred_region
          %p741 = scmp.lt.s32.totalorder %s42, 1
          %s742 = scalar_select %p741, %s42, 1
          %s743 = smul.addr %s742, 4
          %s744 = smul.addr %s743, 4
          %s745 = scalar_lea.vmem %s3, %s744
        $region32: #{decoder_forward.1} parent=15 // pred_fallthru
          _
        // Predicated region
        $region33: #{decoder_forward.1} parent=15 // pred_check
          %p746 = pneg %p170
        $region34: #{decoder_forward.1} parent=15 // pred_check_branch
          %748 = sbr.rel (%p746) target = $region36
        $region35: #{decoder_forward.1} parent=15 // pred_region
          %p749 = scmp.lt.s32.totalorder %s42, 1
          %s750 = scalar_select %p749, %s42, 1
          %s751 = scalar_lea.vmem %s4, %s750
        $region36: #{decoder_forward.1} parent=15 // pred_fallthru
          _
        // Predicated region
        $region37: #{decoder_forward.1} parent=15 // pred_check
          %p752 = pneg %p196
        $region38: #{decoder_forward.1} parent=15 // pred_check_branch
          %754 = sbr.rel (%p752) target = $region40
        $region39: #{decoder_forward.1} parent=15 // pred_region
          %p755 = scmp.lt.s32.totalorder %s42, 1
          %s756 = scalar_select %p755, %s42, 1
          %s757 = smul.addr %s756, 4
          %s758 = smul.addr %s757, 4
          %s759 = scalar_lea.vmem %s5, %s758
        $region40: #{decoder_forward.1} parent=15 // pred_fallthru
          _
        // Predicated region
        $region41: #{decoder_forward.1} parent=15 // pred_check
          %p760 = pneg %p222
        $region42: #{decoder_forward.1} parent=15 // pred_check_branch
          %762 = sbr.rel (%p760) target = $region44
        $region43: #{decoder_forward.1} parent=15 // pred_region
          %p763 = scmp.lt.s32.totalorder %s42, 1
          %s764 = scalar_select %p763, %s42, 1
          %s765 = scalar_lea.vmem %s6, %s764
        $region44: #{decoder_forward.1} parent=15 // pred_fallthru
          _
        // Predicated region
        $region45: #{decoder_forward.1} parent=15 // pred_check
          %p766 = pneg %p248
        $region46: #{decoder_forward.1} parent=15 // pred_check_branch
          %768 = sbr.rel (%p766) target = $region48
        $region47: #{decoder_forward.1} parent=15 // pred_region
          %p769 = scmp.lt.s32.totalorder %s42, 1
          %s770 = scalar_select %p769, %s42, 1
          %s771 = scalar_lea.vmem %s7, %s770
        $region48: #{decoder_forward.1} parent=15 // pred_fallthru
          _
        // Predicated region
        $region49: #{decoder_forward.1} parent=15 // pred_check
          %p772 = pneg %p274
        $region50: #{decoder_forward.1} parent=15 // pred_check_branch
          %774 = sbr.rel (%p772) target = $region52
        $region51: #{decoder_forward.1} parent=15 // pred_region
          %p775 = scmp.lt.s32.totalorder %s42, 1
          %s776 = scalar_select %p775, %s42, 1
          %s777 = scalar_lea.vmem %s8, %s776
        $region52: #{decoder_forward.1} parent=15 // pred_fallthru
          _
        // Predicated region
        $region53: #{decoder_forward.1} parent=15 // pred_check
          %p778 = pneg %p300
        $region54: #{decoder_forward.1} parent=15 // pred_check_branch
          %780 = sbr.rel (%p778) target = $region56
        $region55: #{decoder_forward.1} parent=15 // pred_region
          %p781 = scmp.lt.s32.totalorder %s42, 1
          %s782 = scalar_select %p781, %s42, 1
          %s783 = smul.addr %s782, 4
          %s784 = smul.addr %s783, 4
          %s785 = scalar_lea.vmem %s9, %s784
        $region56: #{decoder_forward.1} parent=15 // pred_fallthru
          _
        // Predicated region
        $region57: #{decoder_forward.1} parent=15 // pred_check
          %p786 = pneg %p326
        $region58: #{decoder_forward.1} parent=15 // pred_check_branch
          %788 = sbr.rel (%p786) target = $region60
        $region59: #{decoder_forward.1} parent=15 // pred_region
          %p789 = scmp.lt.s32.totalorder %s42, 1
          %s790 = scalar_select %p789, %s42, 1
          %s791 = scalar_lea.vmem %s10, %s790
        $region60: #{decoder_forward.1} parent=15 // pred_fallthru
          _
        // Predicated region
        $region61: #{decoder_forward.1} parent=15 // pred_check
          %p792 = pneg %p352
        $region62: #{decoder_forward.1} parent=15 // pred_check_branch
          %794 = sbr.rel (%p792) target = $region64
        $region63: #{decoder_forward.1} parent=15 // pred_region
          %p795 = scmp.lt.s32.totalorder %s42, 1
          %s796 = scalar_select %p795, %s42, 1
          %s797 = smul.addr %s796, 4
          %s798 = smul.addr %s797, 4
          %s799 = scalar_lea.vmem %s11, %s798
        $region64: #{decoder_forward.1} parent=15 // pred_fallthru
          _
        // Predicated region
        $region65: #{decoder_forward.1} parent=15 // pred_check
          %p800 = pneg %p378
        $region66: #{decoder_forward.1} parent=15 // pred_check_branch
          %802 = sbr.rel (%p800) target = $region68
        $region67: #{decoder_forward.1} parent=15 // pred_region
          %p803 = scmp.lt.s32.totalorder %s42, 1
          %s804 = scalar_select %p803, %s42, 1
          %s805 = scalar_lea.vmem %s12, %s804
        $region68: #{decoder_forward.1} parent=15 // pred_fallthru
          _
        // Predicated region
        $region69: #{decoder_forward.1} parent=15 // pred_check
          %p806 = pneg %p404
        $region70: #{decoder_forward.1} parent=15 // pred_check_branch
          %808 = sbr.rel (%p806) target = $region72
        $region71: #{decoder_forward.1} parent=15 // pred_region
          %p809 = scmp.lt.s32.totalorder %s42, 1
          %s810 = scalar_select %p809, %s42, 1
          %s811 = smul.addr %s810, 4
          %s812 = smul.addr %s811, 4
          %s813 = scalar_lea.vmem %s13, %s812
        $region72: #{decoder_forward.1} parent=15 // pred_fallthru
          _
        // Predicated region
        $region73: #{decoder_forward.1} parent=15 // pred_check
          %p814 = pneg %p430
        $region74: #{decoder_forward.1} parent=15 // pred_check_branch
          %816 = sbr.rel (%p814) target = $region76
        $region75: #{decoder_forward.1} parent=15 // pred_region
          %p817 = scmp.lt.s32.totalorder %s42, 1
          %s818 = scalar_select %p817, %s42, 1
          %s819 = scalar_lea.vmem %s14, %s818
        $region76: #{decoder_forward.1} parent=15 // pred_fallthru
          _
        // Predicated region
        $region77: #{decoder_forward.1} parent=15 // pred_check
          %p820 = pneg %p456
        $region78: #{decoder_forward.1} parent=15 // pred_check_branch
          %822 = sbr.rel (%p820) target = $region80
        $region79: #{decoder_forward.1} parent=15 // pred_region
          %p823 = scmp.lt.s32.totalorder %s42, 1
          %s824 = scalar_select %p823, %s42, 1
          %s825 = scalar_lea.vmem %s15, %s824
        $region80: #{decoder_forward.1} parent=15 // pred_fallthru
          _
        // Predicated region
        $region81: #{decoder_forward.1} parent=15 // pred_check
          %p826 = pneg %p482
        $region82: #{decoder_forward.1} parent=15 // pred_check_branch
          %828 = sbr.rel (%p826) target = $region84
        $region83: #{decoder_forward.1} parent=15 // pred_region
          %p829 = scmp.lt.s32.totalorder %s42, 1
          %s830 = scalar_select %p829, %s42, 1
          %s831 = scalar_lea.vmem %s16, %s830
        $region84: #{decoder_forward.1} parent=15 // pred_fallthru
          _
        // Predicated region
        $region85: #{decoder_forward.1} parent=15 // pred_check
          %p832 = pneg %p508
        $region86: #{decoder_forward.1} parent=15 // pred_check_branch
          %834 = sbr.rel (%p832) target = $region88
        $region87: #{decoder_forward.1} parent=15 // pred_region
          %p835 = scmp.lt.s32.totalorder %s42, 1
          %s836 = scalar_select %p835, %s42, 1
          %s837 = smul.addr %s836, 4
          %s838 = smul.addr %s837, 4
          %s839 = scalar_lea.vmem %s17, %s838
        $region88: #{decoder_forward.1} parent=15 // pred_fallthru
          _
        // Predicated region
        $region89: #{decoder_forward.1} parent=15 // pred_check
          %p840 = pneg %p534
        $region90: #{decoder_forward.1} parent=15 // pred_check_branch
          %842 = sbr.rel (%p840) target = $region92
        $region91: #{decoder_forward.1} parent=15 // pred_region
          %p843 = scmp.lt.s32.totalorder %s42, 1
          %s844 = scalar_select %p843, %s42, 1
          %s845 = scalar_lea.vmem %s18, %s844
        $region92: #{decoder_forward.1} parent=15 // pred_fallthru
          _
        // Predicated region
        $region93: #{decoder_forward.1} parent=15 // pred_check
          %p846 = pneg %p560
        $region94: #{decoder_forward.1} parent=15 // pred_check_branch
          %848 = sbr.rel (%p846) target = $region96
        $region95: #{decoder_forward.1} parent=15 // pred_region
          %p849 = scmp.lt.s32.totalorder %s42, 1
          %s850 = scalar_select %p849, %s42, 1
          %s851 = smul.addr %s850, 8
          %s852 = smul.addr %s851, 4
          %s853 = scalar_lea.vmem %s19, %s852
        $region96: #{decoder_forward.1} parent=15 // pred_fallthru
          _
        // Predicated region
        $region97: #{decoder_forward.1} parent=15 // pred_check
          %p854 = pneg %p586
        $region98: #{decoder_forward.1} parent=15 // pred_check_branch
          %856 = sbr.rel (%p854) target = $region100
        $region99: #{decoder_forward.1} parent=15 // pred_region
          %p857 = scmp.lt.s32.totalorder %s42, 1
          %s858 = scalar_select %p857, %s42, 1
          %s859 = scalar_lea.vmem %s20, %s858
        $region100: #{decoder_forward.1} parent=15 // pred_fallthru
          _
        // Predicated region
        $region101: #{decoder_forward.1} parent=15 // pred_check
          %p860 = pneg %p612
        $region102: #{decoder_forward.1} parent=15 // pred_check_branch
          %862 = sbr.rel (%p860) target = $region104
        $region103: #{decoder_forward.1} parent=15 // pred_region
          %p863 = scmp.lt.s32.totalorder %s42, 1
          %s864 = scalar_select %p863, %s42, 1
          %s865 = scalar_lea.vmem %s21, %s864
        $region104: #{decoder_forward.1} parent=15 // pred_fallthru
          _
        // Predicated region
        $region105: #{decoder_forward.1} parent=15 // pred_check
          %p866 = pneg %p638
        $region106: #{decoder_forward.1} parent=15 // pred_check_branch
          %868 = sbr.rel (%p866) target = $region108
        $region107: #{decoder_forward.1} parent=15 // pred_region
          %p869 = scmp.lt.s32.totalorder %s42, 1
          %s870 = scalar_select %p869, %s42, 1
          %s871 = scalar_lea.vmem %s22, %s870
        $region108: #{decoder_forward.1} parent=15 // pred_fallthru
          _
      $region16: #{decoder_forward.1} parent=5 // pred_fallthru
        _
      %p872 = scmp.le.s32.totalorder 1, %s34
      %p873 = scmp.lt.s32.totalorder %s34, 5
      %p874 = pnand %p872, %p873
      %p875 = pneg %p874
      // Predicated region
      $region109: #{decoder_forward.1} parent=5 // pred_check
        _
      $region110: #{decoder_forward.1} parent=5 // pred_check_branch
        %877 = sbr.rel (%p874) target = $region112
      $region111: #{decoder_forward.1} parent=5 // pred_region
        %s878 = ssub.s32 %s34, 1
        %p879 = scmp.lt.s32.totalorder %s43, 1
        %s880 = scalar_select %p879, %s43, 1
        %s881 = smul.addr %s880, 8
        %s882 = scalar_lea.vmem %s0, %s881
        %p883 = pneg %p72
        %p884 = pneg %p69
        %p885 = scmp.lt.s32.totalorder %s43, 1
        %s886 = scalar_select %p885, %s43, 1
        %s887 = smul.addr %s886, 2
        %s888 = smul.addr %s887, 8
        %s889 = scalar_lea.vmem %s1, %s888
        %p890 = pneg %p98
        %p891 = pneg %p95
        %p892 = scmp.lt.s32.totalorder %s43, 1
        %s893 = scalar_select %p892, %s43, 1
        %s894 = scalar_lea.vmem %s2, %s893
        %p895 = pneg %p124
        %p896 = pneg %p121
        %p897 = scmp.lt.s32.totalorder %s44, 1
        %s898 = scalar_select %p897, %s44, 1
        %s899 = smul.addr %s898, 4
        %s900 = smul.addr %s899, 4
        %s901 = scalar_lea.vmem %s3, %s900
        %p902 = pneg %p150
        %p903 = pneg %p147
        %p904 = scmp.lt.s32.totalorder %s44, 1
        %s905 = scalar_select %p904, %s44, 1
        %s906 = scalar_lea.vmem %s4, %s905
        %p907 = pneg %p176
        %p908 = pneg %p173
        %p909 = scmp.lt.s32.totalorder %s44, 1
        %s910 = scalar_select %p909, %s44, 1
        %s911 = smul.addr %s910, 4
        %s912 = smul.addr %s911, 4
        %s913 = scalar_lea.vmem %s5, %s912
        %p914 = pneg %p202
        %p915 = pneg %p199
        %p916 = scmp.lt.s32.totalorder %s44, 1
        %s917 = scalar_select %p916, %s44, 1
        %s918 = scalar_lea.vmem %s6, %s917
        %p919 = pneg %p228
        %p920 = pneg %p225
        %p921 = scmp.lt.s32.totalorder %s44, 1
        %s922 = scalar_select %p921, %s44, 1
        %s923 = scalar_lea.vmem %s7, %s922
        %p924 = pneg %p254
        %p925 = pneg %p251
        %p926 = scmp.lt.s32.totalorder %s44, 1
        %s927 = scalar_select %p926, %s44, 1
        %s928 = scalar_lea.vmem %s8, %s927
        %p929 = pneg %p280
        %p930 = pneg %p277
        %p931 = scmp.lt.s32.totalorder %s44, 1
        %s932 = scalar_select %p931, %s44, 1
        %s933 = smul.addr %s932, 4
        %s934 = smul.addr %s933, 4
        %s935 = scalar_lea.vmem %s9, %s934
        %p936 = pneg %p306
        %p937 = pneg %p303
        %p938 = scmp.lt.s32.totalorder %s44, 1
        %s939 = scalar_select %p938, %s44, 1
        %s940 = scalar_lea.vmem %s10, %s939
        %p941 = pneg %p332
        %p942 = pneg %p329
        %p943 = scmp.lt.s32.totalorder %s44, 1
        %s944 = scalar_select %p943, %s44, 1
        %s945 = smul.addr %s944, 4
        %s946 = smul.addr %s945, 4
        %s947 = scalar_lea.vmem %s11, %s946
        %p948 = pneg %p358
        %p949 = pneg %p355
        %p950 = scmp.lt.s32.totalorder %s44, 1
        %s951 = scalar_select %p950, %s44, 1
        %s952 = scalar_lea.vmem %s12, %s951
        %p953 = pneg %p384
        %p954 = pneg %p381
        %p955 = scmp.lt.s32.totalorder %s44, 1
        %s956 = scalar_select %p955, %s44, 1
        %s957 = smul.addr %s956, 4
        %s958 = smul.addr %s957, 4
        %s959 = scalar_lea.vmem %s13, %s958
        %p960 = pneg %p410
        %p961 = pneg %p407
        %p962 = scmp.lt.s32.totalorder %s44, 1
        %s963 = scalar_select %p962, %s44, 1
        %s964 = scalar_lea.vmem %s14, %s963
        %p965 = pneg %p436
        %p966 = pneg %p433
        %p967 = scmp.lt.s32.totalorder %s44, 1
        %s968 = scalar_select %p967, %s44, 1
        %s969 = scalar_lea.vmem %s15, %s968
        %p970 = pneg %p462
        %p971 = pneg %p459
        %p972 = scmp.lt.s32.totalorder %s44, 1
        %s973 = scalar_select %p972, %s44, 1
        %s974 = scalar_lea.vmem %s16, %s973
        %p975 = pneg %p488
        %p976 = pneg %p485
        %p977 = scmp.lt.s32.totalorder %s44, 1
        %s978 = scalar_select %p977, %s44, 1
        %s979 = smul.addr %s978, 4
        %s980 = smul.addr %s979, 4
        %s981 = scalar_lea.vmem %s17, %s980
        %p982 = pneg %p514
        %p983 = pneg %p511
        %p984 = scmp.lt.s32.totalorder %s44, 1
        %s985 = scalar_select %p984, %s44, 1
        %s986 = scalar_lea.vmem %s18, %s985
        %p987 = pneg %p540
        %p988 = pneg %p537
        %p989 = scmp.lt.s32.totalorder %s44, 1
        %s990 = scalar_select %p989, %s44, 1
        %s991 = smul.addr %s990, 8
        %s992 = smul.addr %s991, 4
        %s993 = scalar_lea.vmem %s19, %s992
        %p994 = pneg %p566
        %p995 = pneg %p563
        %p996 = scmp.lt.s32.totalorder %s44, 1
        %s997 = scalar_select %p996, %s44, 1
        %s998 = scalar_lea.vmem %s20, %s997
        %p999 = pneg %p592
        %p1000 = pneg %p589
        %p1001 = scmp.lt.s32.totalorder %s44, 1
        %s1002 = scalar_select %p1001, %s44, 1
        %s1003 = scalar_lea.vmem %s21, %s1002
        %p1004 = pneg %p618
        %p1005 = pneg %p615
        %p1006 = scmp.lt.s32.totalorder %s44, 1
        %s1007 = scalar_select %p1006, %s44, 1
        %s1008 = scalar_lea.vmem %s22, %s1007
        %p1009 = pneg %p644
        %p1010 = pneg %p641
        %p1011 = pneg %p670
        %p1012 = pneg %p667
        %p1013 = scmp.lt.s32.totalorder %s43, 1
        %s1014 = scalar_select %p1013, %s43, 1
        %s1015 = smul.addr %s1014, 8
        %s1016 = scalar_lea.vmem %s23, %s1015
        %p1017 = pneg %p698
        %p1018 = pneg %p695
        %s1019 = sand.u32 %s685, 1
        %s1020 = scalar_lea.sflag [#allocation5], %s1019
        %s1021 = sand.u32 %s685, 1
        %s1022 = smul.addr %s1021, 8
        %s1023 = scalar_lea.vmem [#allocation4], %s1022
        %p1024 = scmp.lt.s32.totalorder %s43, 1
        %s1025 = scalar_select %p1024, %s43, 1
        %s1026 = smul.addr %s1025, 8
        %s1027 = scalar_lea.vmem %s0, %s1026
        %p1028 = scmp.lt.s32.totalorder %s43, 1
        %s1029 = scalar_select %p1028, %s43, 1
        %s1030 = smul.addr %s1029, 2
        %s1031 = smul.addr %s1030, 8
        %s1032 = scalar_lea.vmem %s1, %s1031
        %p1033 = scmp.lt.s32.totalorder %s43, 1
        %s1034 = scalar_select %p1033, %s43, 1
        %s1035 = scalar_lea.vmem %s2, %s1034
        %p1036 = scmp.lt.s32.totalorder %s44, 1
        %s1037 = scalar_select %p1036, %s44, 1
        %s1038 = smul.addr %s1037, 4
        %s1039 = smul.addr %s1038, 4
        %s1040 = scalar_lea.vmem %s3, %s1039
        %p1041 = scmp.lt.s32.totalorder %s44, 1
        %s1042 = scalar_select %p1041, %s44, 1
        %s1043 = scalar_lea.vmem %s4, %s1042
        %p1044 = scmp.lt.s32.totalorder %s44, 1
        %s1045 = scalar_select %p1044, %s44, 1
        %s1046 = smul.addr %s1045, 4
        %s1047 = smul.addr %s1046, 4
        %s1048 = scalar_lea.vmem %s5, %s1047
        %p1049 = scmp.lt.s32.totalorder %s44, 1
        %s1050 = scalar_select %p1049, %s44, 1
        %s1051 = scalar_lea.vmem %s6, %s1050
        %p1052 = scmp.lt.s32.totalorder %s44, 1
        %s1053 = scalar_select %p1052, %s44, 1
        %s1054 = scalar_lea.vmem %s7, %s1053
        %p1055 = scmp.lt.s32.totalorder %s44, 1
        %s1056 = scalar_select %p1055, %s44, 1
        %s1057 = scalar_lea.vmem %s8, %s1056
        %p1058 = scmp.lt.s32.totalorder %s44, 1
        %s1059 = scalar_select %p1058, %s44, 1
        %s1060 = smul.addr %s1059, 4
        %s1061 = smul.addr %s1060, 4
        %s1062 = scalar_lea.vmem %s9, %s1061
        %p1063 = scmp.lt.s32.totalorder %s44, 1
        %s1064 = scalar_select %p1063, %s44, 1
        %s1065 = scalar_lea.vmem %s10, %s1064
        %p1066 = scmp.lt.s32.totalorder %s44, 1
        %s1067 = scalar_select %p1066, %s44, 1
        %s1068 = smul.addr %s1067, 4
        %s1069 = smul.addr %s1068, 4
        %s1070 = scalar_lea.vmem %s11, %s1069
        %p1071 = scmp.lt.s32.totalorder %s44, 1
        %s1072 = scalar_select %p1071, %s44, 1
        %s1073 = scalar_lea.vmem %s12, %s1072
        %p1074 = scmp.lt.s32.totalorder %s44, 1
        %s1075 = scalar_select %p1074, %s44, 1
        %s1076 = smul.addr %s1075, 4
        %s1077 = smul.addr %s1076, 4
        %s1078 = scalar_lea.vmem %s13, %s1077
        %p1079 = scmp.lt.s32.totalorder %s44, 1
        %s1080 = scalar_select %p1079, %s44, 1
        %s1081 = scalar_lea.vmem %s14, %s1080
        %p1082 = scmp.lt.s32.totalorder %s44, 1
        %s1083 = scalar_select %p1082, %s44, 1
        %s1084 = scalar_lea.vmem %s15, %s1083
        %p1085 = scmp.lt.s32.totalorder %s44, 1
        %s1086 = scalar_select %p1085, %s44, 1
        %s1087 = scalar_lea.vmem %s16, %s1086
        %p1088 = scmp.lt.s32.totalorder %s44, 1
        %s1089 = scalar_select %p1088, %s44, 1
        %s1090 = smul.addr %s1089, 4
        %s1091 = smul.addr %s1090, 4
        %s1092 = scalar_lea.vmem %s17, %s1091
        %p1093 = scmp.lt.s32.totalorder %s44, 1
        %s1094 = scalar_select %p1093, %s44, 1
        %s1095 = scalar_lea.vmem %s18, %s1094
        %p1096 = scmp.lt.s32.totalorder %s44, 1
        %s1097 = scalar_select %p1096, %s44, 1
        %s1098 = smul.addr %s1097, 8
        %s1099 = smul.addr %s1098, 4
        %s1100 = scalar_lea.vmem %s19, %s1099
        %p1101 = scmp.lt.s32.totalorder %s44, 1
        %s1102 = scalar_select %p1101, %s44, 1
        %s1103 = scalar_lea.vmem %s20, %s1102
        %p1104 = scmp.lt.s32.totalorder %s44, 1
        %s1105 = scalar_select %p1104, %s44, 1
        %s1106 = scalar_lea.vmem %s21, %s1105
        %p1107 = scmp.lt.s32.totalorder %s44, 1
        %s1108 = scalar_select %p1107, %s44, 1
        %s1109 = scalar_lea.vmem %s22, %s1108
        %p1110 = scmp.lt.s32.totalorder %s43, 1
        %s1111 = scalar_select %p1110, %s43, 1
        %s1112 = smul.addr %s1111, 8
        %s1113 = scalar_lea.vmem %s23, %s1112
        %p1115 = scmp.eq.s32.totalorder %s44, 0
        // Predicated region
        $region113: #{decoder_forward.1} parent=111 // pred_check
          %p1116 = pneg %p1115
        $region114: #{decoder_forward.1} parent=111 // pred_check_branch
          %1118 = sbr.rel (%p1116) target = $region116
        $region115: #{decoder_forward.1} parent=111 // pred_region
          %v1119 = vld [vmem:[%s1027] sm:$0xff]
          %vm1120 = vcmask 261120
          %1121 = vst.msk [vmem:[#allocation2] sm:$0xff] %vm1120, %v1119
        $region116: #{decoder_forward.1} parent=111 // pred_fallthru
          _
        %v1122 = vld [vmem:[#allocation2] sm:$0xff]
        %v1123 = vpack.c.bf16 %v1122, %v1122
        %v1124 = vld [vmem:[%s1040] sm:$0xf]
        %v1125 = vld [vmem:[%s1040 + $0x4] sm:$0xf]
        %v1126 = vld [vmem:[%s1040 + $0x8] sm:$0xf]
        %v1127 = vld [vmem:[%s1040 + $0xc] sm:$0xf]
        %v1128 = vld [vmem:[%s1043] sm:$0x1]
        %v1130 = vlaneseq
        %v1131 = vshrl.u32 %v1130, 7
        %v1132 = vsub.s32 0, %v1131
        %v1133 = vrot.slane %v1128, %v1132
        %v1139 = vunpack.c.l.b16 %v1124
        %v1140 = vunpack.c.l.b16 %v1125
        %v1141 = vunpack.c.l.b16 %v1126
        %v1142 = vunpack.c.l.b16 %v1127
        %v1143 = vpack.c.b16 %v1140, %v1139
        %v1144 = vpack.c.b16 %v1142, %v1141
        %vm1147 = vcmask 261120
        %v1149 = vsel %vm1147, %v1123, 0
        %1151 = vmatprep.subr.bf16.mxu0 0
        %1152 = vmatpush1.bf16.msra.mxu0 %v1143
        %1153 = vmatprep.subr.bf16.mxu0 0
        %1154 = vmatpush1.bf16.msra.mxu0 %v1144
        %1155 = vmatprep.subr.bf16.mxu0 0
        %1156 = vmatpush1.bf16.msra.mxu0 0
        %1157 = vmatprep.subr.bf16.mxu0 0
        %1158 = vmatpush1.bf16.msra.mxu0 0
        %1159 = vmatprep.subr.bf16.mxu0 0
        %1160 = vmatpush1.bf16.msra.mxu0 0
        %1161 = vmatprep.subr.bf16.mxu0 0
        %1162 = vmatpush1.bf16.msra.mxu0 0
        %1163 = vmatprep.subr.bf16.mxu0 0
        %1164 = vmatpush1.bf16.msra.mxu0 0
        %1165 = vmatprep.subr.bf16.mxu0 0
        %1166 = vmatpush1.bf16.msra.mxu0 0
        %1167 = vmatprep.subr.bf16.mxu0 0
        %1168 = vmatpush1.bf16.msra.mxu0 0
        %1169 = vmatprep.subr.bf16.mxu0 0
        %1170 = vmatpush1.bf16.msra.mxu0 0
        %1171 = vmatprep.subr.bf16.mxu0 0
        %1172 = vmatpush1.bf16.msra.mxu0 0
        %1173 = vmatprep.subr.bf16.mxu0 0
        %1174 = vmatpush1.bf16.msra.mxu0 0
        %1175 = vmatprep.subr.bf16.mxu0 0
        %1176 = vmatpush1.bf16.msra.mxu0 0
        %1177 = vmatprep.subr.bf16.mxu0 0
        %1178 = vmatpush1.bf16.msra.mxu0 0
        %1179 = vmatprep.subr.bf16.mxu0 0
        %1180 = vmatpush1.bf16.msra.mxu0 0
        %1181 = vmatprep.subr.bf16.mxu0 0
        %1182 = vmatpush1.bf16.msra.mxu0 0
        %1183 = vmatprep.mubr.bf16.mxu0 0
        %1184 = vmatmul.mubr.bf16.gmra.mrb[0].mxu0 %v1149
        %v1185 = vpop.f32.mrb[0].mxu0
        %v1186 = vadd.f32 %v1133, %v1185
        %v1187 = vpop.f32.mrb[0].mxu0
        %v1188 = vpop.f32.mrb[0].mxu0
        %v1189 = vpop.f32.mrb[0].mxu0
        %1190 = vdwg.mxu0
        %v1191 = vlaneseq
        %v1192 = vshrl.u32 %v1191, 7
        %v1193 = vlaneseq
        %v1194 = vand.u32 %v1193, 127
        %vm1195 = vcmp.gt.s32.totalorder %v1194, %v1192
        %v1196 = vsel %vm1195, -1e+30, 0.0
        %v1197 = vld [vmem:[%s1035] sm:$0x1]
        %v1199 = vlaneseq
        %v1200 = vshrl.u32 %v1199, 7
        %v1201 = vsub.s32 0, %v1200
        %v1202 = vrot.slane %v1197, %v1201
        %v1204 = vadd.f32 %v1196, %v1202
        %v1205 = vpack.c.bf16 %v1186, %v1186
        %1207 = vrot.lane.b32.xlu0 %v1205, 96
        %v1208 = vpop.permute.xlu0 %1207
        %vm1209 = vcmask 64512
        %v1211 = vsel %vm1209, %v1205, 0
        %v1214 = vsel %vm1209, %v1208, 0
        %1216 = vmatprep.subr.bf16.mxu0 0
        %1217 = vmatpush1.bf16.xpose.msra.mxu0 %v1214
        %1218 = vmatprep.subr.bf16.mxu0 0
        %1219 = vmatpush1.bf16.xpose.msra.mxu0 0
        %1220 = vmatprep.subr.bf16.mxu0 0
        %1221 = vmatpush1.bf16.xpose.msra.mxu0 0
        %1222 = vmatprep.subr.bf16.mxu0 0
        %1223 = vmatpush1.bf16.xpose.msra.mxu0 0
        %1224 = vmatprep.subr.bf16.mxu0 0
        %1225 = vmatpush1.bf16.xpose.msra.mxu0 0
        %1226 = vmatprep.subr.bf16.mxu0 0
        %1227 = vmatpush1.bf16.xpose.msra.mxu0 0
        %1228 = vmatprep.subr.bf16.mxu0 0
        %1229 = vmatpush1.bf16.xpose.msra.mxu0 0
        %1230 = vmatprep.subr.bf16.mxu0 0
        %1231 = vmatpush1.bf16.xpose.msra.mxu0 0
        %1232 = vmatprep.subr.bf16.mxu0 0
        %1233 = vmatpush1.bf16.xpose.msra.mxu0 0
        %1234 = vmatprep.subr.bf16.mxu0 0
        %1235 = vmatpush1.bf16.xpose.msra.mxu0 0
        %1236 = vmatprep.subr.bf16.mxu0 0
        %1237 = vmatpush1.bf16.xpose.msra.mxu0 0
        %1238 = vmatprep.subr.bf16.mxu0 0
        %1239 = vmatpush1.bf16.xpose.msra.mxu0 0
        %1240 = vmatprep.subr.bf16.mxu0 0
        %1241 = vmatpush1.bf16.xpose.msra.mxu0 0
        %1242 = vmatprep.subr.bf16.mxu0 0
        %1243 = vmatpush1.bf16.xpose.msra.mxu0 0
        %1244 = vmatprep.subr.bf16.mxu0 0
        %1245 = vmatpush1.bf16.xpose.msra.mxu0 0
        %1246 = vmatprep.subr.bf16.mxu0 0
        %1247 = vmatpush1.bf16.xpose.msra.mxu0 0
        %1248 = vmatprep.mubr.bf16.mxu0 0
        %1249 = vmatmul.mubr.bf16.gmra.mrb[0].mxu0 %v1211
        %v1250 = vpop.f32.mrb[0].mxu0
        %v1251 = vadd.f32 %v1204, %v1250
        %v1252 = vpop.f32.mrb[0].mxu0
        %v1253 = vpop.f32.mrb[0].mxu0
        %v1254 = vpop.f32.mrb[0].mxu0
        %1255 = vdwg.mxu0
        %v1256 = vsel %vm1209, %v1251, -inf
        %1257 = vmax.xlane.f32.xlu0 %v1256
        %v1258 = vpop.xlane.xlu0 %1257
        %v1259 = vsub.f32 %v1251, %v1258
        %v1260 = vmul.f32 %v1259, 1.442695
        %v1261 = vpow.pop %v1260
        %v1262 = vsel %vm1209, %v1261, 0.0
        %1263 = vadd.xlane.f32.xlu0 %v1262
        %v1264 = vpop.xlane.xlu0 %1263
        %v1265 = vrcp.pop %v1264
        %v1266 = vmul.f32 %v1261, %v1265
        %v1267 = vpack.c.bf16 %v1266, %v1266
        %1268 = vrot.lane.b32.xlu0 %v1205, 64
        %v1269 = vpop.permute.xlu0 %1268
        %v1271 = vsel %vm1209, %v1267, 0
        %vm1273 = vcmask 1043456
        %v1275 = vsel %vm1273, %v1269, 0
        %1277 = vmatprep.subr.bf16.mxu0 0
        %1278 = vmatpush1.bf16.msra.mxu0 %v1275
        %1279 = vmatprep.subr.bf16.mxu0 0
        %1280 = vmatpush1.bf16.msra.mxu0 0
        %1281 = vmatprep.subr.bf16.mxu0 0
        %1282 = vmatpush1.bf16.msra.mxu0 0
        %1283 = vmatprep.subr.bf16.mxu0 0
        %1284 = vmatpush1.bf16.msra.mxu0 0
        %1285 = vmatprep.subr.bf16.mxu0 0
        %1286 = vmatpush1.bf16.msra.mxu0 0
        %1287 = vmatprep.subr.bf16.mxu0 0
        %1288 = vmatpush1.bf16.msra.mxu0 0
        %1289 = vmatprep.subr.bf16.mxu0 0
        %1290 = vmatpush1.bf16.msra.mxu0 0
        %1291 = vmatprep.subr.bf16.mxu0 0
        %1292 = vmatpush1.bf16.msra.mxu0 0
        %1293 = vmatprep.subr.bf16.mxu0 0
        %1294 = vmatpush1.bf16.msra.mxu0 0
        %1295 = vmatprep.subr.bf16.mxu0 0
        %1296 = vmatpush1.bf16.msra.mxu0 0
        %1297 = vmatprep.subr.bf16.mxu0 0
        %1298 = vmatpush1.bf16.msra.mxu0 0
        %1299 = vmatprep.subr.bf16.mxu0 0
        %1300 = vmatpush1.bf16.msra.mxu0 0
        %1301 = vmatprep.subr.bf16.mxu0 0
        %1302 = vmatpush1.bf16.msra.mxu0 0
        %1303 = vmatprep.subr.bf16.mxu0 0
        %1304 = vmatpush1.bf16.msra.mxu0 0
        %1305 = vmatprep.subr.bf16.mxu0 0
        %1306 = vmatpush1.bf16.msra.mxu0 0
        %1307 = vmatprep.subr.bf16.mxu0 0
        %1308 = vmatpush1.bf16.msra.mxu0 0
        %1309 = vmatprep.mubr.bf16.mxu0 0
        %1310 = vmatmul.mubr.bf16.gmra.mrb[0].mxu0 %v1271
        %v1311 = vpop.f32.mrb[0].mxu0
        %v1312 = vadd.f32 0.0, %v1311
        %v1313 = vpop.f32.mrb[0].mxu0
        %v1314 = vpop.f32.mrb[0].mxu0
        %v1315 = vpop.f32.mrb[0].mxu0
        %1316 = vdwg.mxu0
        %1317 = vst.msk [vmem:[#allocation3] sm:$0xff] %vm1209, %v1312
        %1318 = vrot.lane.b32.xlu0 %v1205, 120
        %v1319 = vpop.permute.xlu0 %1318
        %1320 = vrot.lane.b32.xlu0 %v1205, 88
        %v1321 = vpop.permute.xlu0 %1320
        %v1323 = vsel %vm1209, %v1319, 0
        %v1326 = vsel %vm1209, %v1321, 0
        %1328 = vmatprep.subr.bf16.mxu0 0
        %1329 = vmatpush1.bf16.xpose.msra.mxu0 %v1326
        %1330 = vmatprep.subr.bf16.mxu0 0
        %1331 = vmatpush1.bf16.xpose.msra.mxu0 0
        %1332 = vmatprep.subr.bf16.mxu0 0
        %1333 = vmatpush1.bf16.xpose.msra.mxu0 0
        %1334 = vmatprep.subr.bf16.mxu0 0
        %1335 = vmatpush1.bf16.xpose.msra.mxu0 0
        %1336 = vmatprep.subr.bf16.mxu0 0
        %1337 = vmatpush1.bf16.xpose.msra.mxu0 0
        %1338 = vmatprep.subr.bf16.mxu0 0
        %1339 = vmatpush1.bf16.xpose.msra.mxu0 0
        %1340 = vmatprep.subr.bf16.mxu0 0
        %1341 = vmatpush1.bf16.xpose.msra.mxu0 0
        %1342 = vmatprep.subr.bf16.mxu0 0
        %1343 = vmatpush1.bf16.xpose.msra.mxu0 0
        %1344 = vmatprep.subr.bf16.mxu0 0
        %1345 = vmatpush1.bf16.xpose.msra.mxu0 0
        %1346 = vmatprep.subr.bf16.mxu0 0
        %1347 = vmatpush1.bf16.xpose.msra.mxu0 0
        %1348 = vmatprep.subr.bf16.mxu0 0
        %1349 = vmatpush1.bf16.xpose.msra.mxu0 0
        %1350 = vmatprep.subr.bf16.mxu0 0
        %1351 = vmatpush1.bf16.xpose.msra.mxu0 0
        %1352 = vmatprep.subr.bf16.mxu0 0
        %1353 = vmatpush1.bf16.xpose.msra.mxu0 0
        %1354 = vmatprep.subr.bf16.mxu0 0
        %1355 = vmatpush1.bf16.xpose.msra.mxu0 0
        %1356 = vmatprep.subr.bf16.mxu0 0
        %1357 = vmatpush1.bf16.xpose.msra.mxu0 0
        %1358 = vmatprep.subr.bf16.mxu0 0
        %1359 = vmatpush1.bf16.xpose.msra.mxu0 0
        %1360 = vmatprep.mubr.bf16.mxu0 0
        %1361 = vmatmul.mubr.bf16.gmra.mrb[0].mxu0 %v1323
        %v1362 = vpop.f32.mrb[0].mxu0
        %v1363 = vadd.f32 %v1204, %v1362
        %v1364 = vpop.f32.mrb[0].mxu0
        %v1365 = vpop.f32.mrb[0].mxu0
        %v1366 = vpop.f32.mrb[0].mxu0
        %1367 = vdwg.mxu0
        %v1368 = vsel %vm1209, %v1363, -inf
        %1369 = vmax.xlane.f32.xlu0 %v1368
        %v1370 = vpop.xlane.xlu0 %1369
        %v1371 = vsub.f32 %v1363, %v1370
        %v1372 = vmul.f32 %v1371, 1.442695
        %v1373 = vpow.pop %v1372
        %v1374 = vsel %vm1209, %v1373, 0.0
        %1375 = vadd.xlane.f32.xlu0 %v1374
        %v1376 = vpop.xlane.xlu0 %1375
        %v1377 = vrcp.pop %v1376
        %v1378 = vmul.f32 %v1373, %v1377
        %v1379 = vpack.c.bf16 %v1378, %v1378
        %1380 = vrot.lane.b32.xlu0 %v1205, 56
        %v1381 = vpop.permute.xlu0 %1380
        %v1383 = vsel %vm1209, %v1379, 0
        %v1386 = vsel %vm1273, %v1381, 0
        %1388 = vmatprep.subr.bf16.mxu0 0
        %1389 = vmatpush1.bf16.msra.mxu0 %v1386
        %1390 = vmatprep.subr.bf16.mxu0 0
        %1391 = vmatpush1.bf16.msra.mxu0 0
        %1392 = vmatprep.subr.bf16.mxu0 0
        %1393 = vmatpush1.bf16.msra.mxu0 0
        %1394 = vmatprep.subr.bf16.mxu0 0
        %1395 = vmatpush1.bf16.msra.mxu0 0
        %1396 = vmatprep.subr.bf16.mxu0 0
        %1397 = vmatpush1.bf16.msra.mxu0 0
        %1398 = vmatprep.subr.bf16.mxu0 0
        %1399 = vmatpush1.bf16.msra.mxu0 0
        %1400 = vmatprep.subr.bf16.mxu0 0
        %1401 = vmatpush1.bf16.msra.mxu0 0
        %1402 = vmatprep.subr.bf16.mxu0 0
        %1403 = vmatpush1.bf16.msra.mxu0 0
        %1404 = vmatprep.subr.bf16.mxu0 0
        %1405 = vmatpush1.bf16.msra.mxu0 0
        %1406 = vmatprep.subr.bf16.mxu0 0
        %1407 = vmatpush1.bf16.msra.mxu0 0
        %1408 = vmatprep.subr.bf16.mxu0 0
        %1409 = vmatpush1.bf16.msra.mxu0 0
        %1410 = vmatprep.subr.bf16.mxu0 0
        %1411 = vmatpush1.bf16.msra.mxu0 0
        %1412 = vmatprep.subr.bf16.mxu0 0
        %1413 = vmatpush1.bf16.msra.mxu0 0
        %1414 = vmatprep.subr.bf16.mxu0 0
        %1415 = vmatpush1.bf16.msra.mxu0 0
        %1416 = vmatprep.subr.bf16.mxu0 0
        %1417 = vmatpush1.bf16.msra.mxu0 0
        %1418 = vmatprep.subr.bf16.mxu0 0
        %1419 = vmatpush1.bf16.msra.mxu0 0
        %1420 = vmatprep.mubr.bf16.mxu0 0
        %1421 = vmatmul.mubr.bf16.gmra.mrb[0].mxu0 %v1383
        %v1422 = vpop.f32.mrb[0].mxu0
        %v1423 = vadd.f32 0.0, %v1422
        %v1424 = vpop.f32.mrb[0].mxu0
        %v1425 = vpop.f32.mrb[0].mxu0
        %v1426 = vpop.f32.mrb[0].mxu0
        %1427 = vdwg.mxu0
        %1429 = vrot.lane.b32.xlu0 %v1423, 8
        %v1430 = vpop.permute.xlu0 %1429
        %vm1432 = vcmask 130112
        %1433 = vst.msk [vmem:[#allocation3] sm:$0xff] %vm1432, %v1430
        %1434 = vrot.lane.b32.xlu0 %v1205, 112
        %v1435 = vpop.permute.xlu0 %1434
        %1436 = vrot.lane.b32.xlu0 %v1205, 80
        %v1437 = vpop.permute.xlu0 %1436
        %v1439 = vsel %vm1209, %v1435, 0
        %v1442 = vsel %vm1209, %v1437, 0
        %1444 = vmatprep.subr.bf16.mxu0 0
        %1445 = vmatpush1.bf16.xpose.msra.mxu0 %v1442
        %1446 = vmatprep.subr.bf16.mxu0 0
        %1447 = vmatpush1.bf16.xpose.msra.mxu0 0
        %1448 = vmatprep.subr.bf16.mxu0 0
        %1449 = vmatpush1.bf16.xpose.msra.mxu0 0
        %1450 = vmatprep.subr.bf16.mxu0 0
        %1451 = vmatpush1.bf16.xpose.msra.mxu0 0
        %1452 = vmatprep.subr.bf16.mxu0 0
        %1453 = vmatpush1.bf16.xpose.msra.mxu0 0
        %1454 = vmatprep.subr.bf16.mxu0 0
        %1455 = vmatpush1.bf16.xpose.msra.mxu0 0
        %1456 = vmatprep.subr.bf16.mxu0 0
        %1457 = vmatpush1.bf16.xpose.msra.mxu0 0
        %1458 = vmatprep.subr.bf16.mxu0 0
        %1459 = vmatpush1.bf16.xpose.msra.mxu0 0
        %1460 = vmatprep.subr.bf16.mxu0 0
        %1461 = vmatpush1.bf16.xpose.msra.mxu0 0
        %1462 = vmatprep.subr.bf16.mxu0 0
        %1463 = vmatpush1.bf16.xpose.msra.mxu0 0
        %1464 = vmatprep.subr.bf16.mxu0 0
        %1465 = vmatpush1.bf16.xpose.msra.mxu0 0
        %1466 = vmatprep.subr.bf16.mxu0 0
        %1467 = vmatpush1.bf16.xpose.msra.mxu0 0
        %1468 = vmatprep.subr.bf16.mxu0 0
        %1469 = vmatpush1.bf16.xpose.msra.mxu0 0
        %1470 = vmatprep.subr.bf16.mxu0 0
        %1471 = vmatpush1.bf16.xpose.msra.mxu0 0
        %1472 = vmatprep.subr.bf16.mxu0 0
        %1473 = vmatpush1.bf16.xpose.msra.mxu0 0
        %1474 = vmatprep.subr.bf16.mxu0 0
        %1475 = vmatpush1.bf16.xpose.msra.mxu0 0
        %1476 = vmatprep.mubr.bf16.mxu0 0
        %1477 = vmatmul.mubr.bf16.gmra.mrb[0].mxu0 %v1439
        %v1478 = vpop.f32.mrb[0].mxu0
        %v1479 = vadd.f32 %v1204, %v1478
        %v1480 = vpop.f32.mrb[0].mxu0
        %v1481 = vpop.f32.mrb[0].mxu0
        %v1482 = vpop.f32.mrb[0].mxu0
        %1483 = vdwg.mxu0
        %v1484 = vsel %vm1209, %v1479, -inf
        %1485 = vmax.xlane.f32.xlu0 %v1484
        %v1486 = vpop.xlane.xlu0 %1485
        %v1487 = vsub.f32 %v1479, %v1486
        %v1488 = vmul.f32 %v1487, 1.442695
        %v1489 = vpow.pop %v1488
        %v1490 = vsel %vm1209, %v1489, 0.0
        %1491 = vadd.xlane.f32.xlu0 %v1490
        %v1492 = vpop.xlane.xlu0 %1491
        %v1493 = vrcp.pop %v1492
        %v1494 = vmul.f32 %v1489, %v1493
        %v1495 = vpack.c.bf16 %v1494, %v1494
        %1496 = vrot.lane.b32.xlu0 %v1205, 48
        %v1497 = vpop.permute.xlu0 %1496
        %v1499 = vsel %vm1209, %v1495, 0
        %v1502 = vsel %vm1273, %v1497, 0
        %1504 = vmatprep.subr.bf16.mxu0 0
        %1505 = vmatpush1.bf16.msra.mxu0 %v1502
        %1506 = vmatprep.subr.bf16.mxu0 0
        %1507 = vmatpush1.bf16.msra.mxu0 0
        %1508 = vmatprep.subr.bf16.mxu0 0
        %1509 = vmatpush1.bf16.msra.mxu0 0
        %1510 = vmatprep.subr.bf16.mxu0 0
        %1511 = vmatpush1.bf16.msra.mxu0 0
        %1512 = vmatprep.subr.bf16.mxu0 0
        %1513 = vmatpush1.bf16.msra.mxu0 0
        %1514 = vmatprep.subr.bf16.mxu0 0
        %1515 = vmatpush1.bf16.msra.mxu0 0
        %1516 = vmatprep.subr.bf16.mxu0 0
        %1517 = vmatpush1.bf16.msra.mxu0 0
        %1518 = vmatprep.subr.bf16.mxu0 0
        %1519 = vmatpush1.bf16.msra.mxu0 0
        %1520 = vmatprep.subr.bf16.mxu0 0
        %1521 = vmatpush1.bf16.msra.mxu0 0
        %1522 = vmatprep.subr.bf16.mxu0 0
        %1523 = vmatpush1.bf16.msra.mxu0 0
        %1524 = vmatprep.subr.bf16.mxu0 0
        %1525 = vmatpush1.bf16.msra.mxu0 0
        %1526 = vmatprep.subr.bf16.mxu0 0
        %1527 = vmatpush1.bf16.msra.mxu0 0
        %1528 = vmatprep.subr.bf16.mxu0 0
        %1529 = vmatpush1.bf16.msra.mxu0 0
        %1530 = vmatprep.subr.bf16.mxu0 0
        %1531 = vmatpush1.bf16.msra.mxu0 0
        %1532 = vmatprep.subr.bf16.mxu0 0
        %1533 = vmatpush1.bf16.msra.mxu0 0
        %1534 = vmatprep.subr.bf16.mxu0 0
        %1535 = vmatpush1.bf16.msra.mxu0 0
        %1536 = vmatprep.mubr.bf16.mxu0 0
        %1537 = vmatmul.mubr.bf16.gmra.mrb[0].mxu0 %v1499
        %v1538 = vpop.f32.mrb[0].mxu0
        %v1539 = vadd.f32 0.0, %v1538
        %v1540 = vpop.f32.mrb[0].mxu0
        %v1541 = vpop.f32.mrb[0].mxu0
        %v1542 = vpop.f32.mrb[0].mxu0
        %1543 = vdwg.mxu0
        %1545 = vrot.lane.b32.xlu0 %v1539, 16
        %v1546 = vpop.permute.xlu0 %1545
        %vm1548 = vcmask 195712
        %1549 = vst.msk [vmem:[#allocation3] sm:$0xff] %vm1548, %v1546
        %1550 = vrot.lane.b32.xlu0 %v1205, 104
        %v1551 = vpop.permute.xlu0 %1550
        %1552 = vrot.lane.b32.xlu0 %v1205, 72
        %v1553 = vpop.permute.xlu0 %1552
        %v1555 = vsel %vm1209, %v1551, 0
        %v1558 = vsel %vm1209, %v1553, 0
        %1560 = vmatprep.subr.bf16.mxu0 0
        %1561 = vmatpush1.bf16.xpose.msra.mxu0 %v1558
        %1562 = vmatprep.subr.bf16.mxu0 0
        %1563 = vmatpush1.bf16.xpose.msra.mxu0 0
        %1564 = vmatprep.subr.bf16.mxu0 0
        %1565 = vmatpush1.bf16.xpose.msra.mxu0 0
        %1566 = vmatprep.subr.bf16.mxu0 0
        %1567 = vmatpush1.bf16.xpose.msra.mxu0 0
        %1568 = vmatprep.subr.bf16.mxu0 0
        %1569 = vmatpush1.bf16.xpose.msra.mxu0 0
        %1570 = vmatprep.subr.bf16.mxu0 0
        %1571 = vmatpush1.bf16.xpose.msra.mxu0 0
        %1572 = vmatprep.subr.bf16.mxu0 0
        %1573 = vmatpush1.bf16.xpose.msra.mxu0 0
        %1574 = vmatprep.subr.bf16.mxu0 0
        %1575 = vmatpush1.bf16.xpose.msra.mxu0 0
        %1576 = vmatprep.subr.bf16.mxu0 0
        %1577 = vmatpush1.bf16.xpose.msra.mxu0 0
        %1578 = vmatprep.subr.bf16.mxu0 0
        %1579 = vmatpush1.bf16.xpose.msra.mxu0 0
        %1580 = vmatprep.subr.bf16.mxu0 0
        %1581 = vmatpush1.bf16.xpose.msra.mxu0 0
        %1582 = vmatprep.subr.bf16.mxu0 0
        %1583 = vmatpush1.bf16.xpose.msra.mxu0 0
        %1584 = vmatprep.subr.bf16.mxu0 0
        %1585 = vmatpush1.bf16.xpose.msra.mxu0 0
        %1586 = vmatprep.subr.bf16.mxu0 0
        %1587 = vmatpush1.bf16.xpose.msra.mxu0 0
        %1588 = vmatprep.subr.bf16.mxu0 0
        %1589 = vmatpush1.bf16.xpose.msra.mxu0 0
        %1590 = vmatprep.subr.bf16.mxu0 0
        %1591 = vmatpush1.bf16.xpose.msra.mxu0 0
        %1592 = vmatprep.mubr.bf16.mxu0 0
        %1593 = vmatmul.mubr.bf16.gmra.mrb[0].mxu0 %v1555
        %v1594 = vpop.f32.mrb[0].mxu0
        %v1595 = vadd.f32 %v1204, %v1594
        %v1596 = vpop.f32.mrb[0].mxu0
        %v1597 = vpop.f32.mrb[0].mxu0
        %v1598 = vpop.f32.mrb[0].mxu0
        %1599 = vdwg.mxu0
        %v1600 = vsel %vm1209, %v1595, -inf
        %1601 = vmax.xlane.f32.xlu0 %v1600
        %v1602 = vpop.xlane.xlu0 %1601
        %v1603 = vsub.f32 %v1595, %v1602
        %v1604 = vmul.f32 %v1603, 1.442695
        %v1605 = vpow.pop %v1604
        %v1606 = vsel %vm1209, %v1605, 0.0
        %1607 = vadd.xlane.f32.xlu0 %v1606
        %v1608 = vpop.xlane.xlu0 %1607
        %v1609 = vrcp.pop %v1608
        %v1610 = vmul.f32 %v1605, %v1609
        %v1611 = vpack.c.bf16 %v1610, %v1610
        %1612 = vrot.lane.b32.xlu0 %v1205, 40
        %v1613 = vpop.permute.xlu0 %1612
        %v1615 = vsel %vm1209, %v1611, 0
        %v1618 = vsel %vm1273, %v1613, 0
        %1620 = vmatprep.subr.bf16.mxu0 0
        %1621 = vmatpush1.bf16.msra.mxu0 %v1618
        %1622 = vmatprep.subr.bf16.mxu0 0
        %1623 = vmatpush1.bf16.msra.mxu0 0
        %1624 = vmatprep.subr.bf16.mxu0 0
        %1625 = vmatpush1.bf16.msra.mxu0 0
        %1626 = vmatprep.subr.bf16.mxu0 0
        %1627 = vmatpush1.bf16.msra.mxu0 0
        %1628 = vmatprep.subr.bf16.mxu0 0
        %1629 = vmatpush1.bf16.msra.mxu0 0
        %1630 = vmatprep.subr.bf16.mxu0 0
        %1631 = vmatpush1.bf16.msra.mxu0 0
        %1632 = vmatprep.subr.bf16.mxu0 0
        %1633 = vmatpush1.bf16.msra.mxu0 0
        %1634 = vmatprep.subr.bf16.mxu0 0
        %1635 = vmatpush1.bf16.msra.mxu0 0
        %1636 = vmatprep.subr.bf16.mxu0 0
        %1637 = vmatpush1.bf16.msra.mxu0 0
        %1638 = vmatprep.subr.bf16.mxu0 0
        %1639 = vmatpush1.bf16.msra.mxu0 0
        %1640 = vmatprep.subr.bf16.mxu0 0
        %1641 = vmatpush1.bf16.msra.mxu0 0
        %1642 = vmatprep.subr.bf16.mxu0 0
        %1643 = vmatpush1.bf16.msra.mxu0 0
        %1644 = vmatprep.subr.bf16.mxu0 0
        %1645 = vmatpush1.bf16.msra.mxu0 0
        %1646 = vmatprep.subr.bf16.mxu0 0
        %1647 = vmatpush1.bf16.msra.mxu0 0
        %1648 = vmatprep.subr.bf16.mxu0 0
        %1649 = vmatpush1.bf16.msra.mxu0 0
        %1650 = vmatprep.subr.bf16.mxu0 0
        %1651 = vmatpush1.bf16.msra.mxu0 0
        %1652 = vmatprep.mubr.bf16.mxu0 0
        %1653 = vmatmul.mubr.bf16.gmra.mrb[0].mxu0 %v1615
        %v1654 = vpop.f32.mrb[0].mxu0
        %v1655 = vadd.f32 0.0, %v1654
        %v1656 = vpop.f32.mrb[0].mxu0
        %v1657 = vpop.f32.mrb[0].mxu0
        %v1658 = vpop.f32.mrb[0].mxu0
        %1659 = vdwg.mxu0
        %1661 = vrot.lane.b32.xlu0 %v1655, 24
        %v1662 = vpop.permute.xlu0 %1661
        %vm1664 = vcmask 261312
        %1665 = vst.msk [vmem:[#allocation3] sm:$0xff] %vm1664, %v1662
        %v1666 = vld [vmem:[#allocation3] sm:$0xff]
        %v1667 = vpack.c.bf16 %v1666, %v1666
        %v1668 = vld [vmem:[%s1048] sm:$0xf]
        %v1669 = vld [vmem:[%s1048 + $0x4] sm:$0xf]
        %v1670 = vld [vmem:[%s1048 + $0x8] sm:$0xf]
        %v1671 = vld [vmem:[%s1048 + $0xc] sm:$0xf]
        %v1672 = vld [vmem:[%s1051] sm:$0x1]
        %v1674 = vlaneseq
        %v1675 = vshrl.u32 %v1674, 7
        %v1676 = vsub.s32 0, %v1675
        %v1677 = vrot.slane %v1672, %v1676
        %v1683 = vunpack.c.l.b16 %v1668
        %v1684 = vunpack.c.l.b16 %v1669
        %v1685 = vunpack.c.l.b16 %v1670
        %v1686 = vunpack.c.l.b16 %v1671
        %v1687 = vpack.c.b16 %v1684, %v1683
        %v1688 = vpack.c.b16 %v1686, %v1685
        %v1692 = vsel %vm1147, %v1667, 0
        %1694 = vmatprep.subr.bf16.mxu0 0
        %1695 = vmatpush1.bf16.msra.mxu0 %v1687
        %1696 = vmatprep.subr.bf16.mxu0 0
        %1697 = vmatpush1.bf16.msra.mxu0 %v1688
        %1698 = vmatprep.subr.bf16.mxu0 0
        %1699 = vmatpush1.bf16.msra.mxu0 0
        %1700 = vmatprep.subr.bf16.mxu0 0
        %1701 = vmatpush1.bf16.msra.mxu0 0
        %1702 = vmatprep.subr.bf16.mxu0 0
        %1703 = vmatpush1.bf16.msra.mxu0 0
        %1704 = vmatprep.subr.bf16.mxu0 0
        %1705 = vmatpush1.bf16.msra.mxu0 0
        %1706 = vmatprep.subr.bf16.mxu0 0
        %1707 = vmatpush1.bf16.msra.mxu0 0
        %1708 = vmatprep.subr.bf16.mxu0 0
        %1709 = vmatpush1.bf16.msra.mxu0 0
        %1710 = vmatprep.subr.bf16.mxu0 0
        %1711 = vmatpush1.bf16.msra.mxu0 0
        %1712 = vmatprep.subr.bf16.mxu0 0
        %1713 = vmatpush1.bf16.msra.mxu0 0
        %1714 = vmatprep.subr.bf16.mxu0 0
        %1715 = vmatpush1.bf16.msra.mxu0 0
        %1716 = vmatprep.subr.bf16.mxu0 0
        %1717 = vmatpush1.bf16.msra.mxu0 0
        %1718 = vmatprep.subr.bf16.mxu0 0
        %1719 = vmatpush1.bf16.msra.mxu0 0
        %1720 = vmatprep.subr.bf16.mxu0 0
        %1721 = vmatpush1.bf16.msra.mxu0 0
        %1722 = vmatprep.subr.bf16.mxu0 0
        %1723 = vmatpush1.bf16.msra.mxu0 0
        %1724 = vmatprep.subr.bf16.mxu0 0
        %1725 = vmatpush1.bf16.msra.mxu0 0
        %1726 = vmatprep.mubr.bf16.mxu0 0
        %1727 = vmatmul.mubr.bf16.gmra.mrb[0].mxu0 %v1692
        %v1728 = vpop.f32.mrb[0].mxu0
        %v1729 = vadd.f32 %v1677, %v1728
        %v1730 = vpop.f32.mrb[0].mxu0
        %v1731 = vpop.f32.mrb[0].mxu0
        %v1732 = vpop.f32.mrb[0].mxu0
        %1733 = vdwg.mxu0
        %v1734 = vadd.f32 %v1122, %v1729
        %v1735 = vsel %vm1147, %v1734, 0.0
        %1736 = vadd.xlane.f32.xlu0 %v1735
        %v1737 = vpop.xlane.xlu0 %1736
        %v1738 = vrcp.pop 32.0
        %v1739 = vmul.f32 %v1737, %v1738
        %v1740 = vsub.f32 %v1734, %v1739
        %v1741 = vmul.f32 %v1740, %v1740
        %v1742 = vsel %vm1147, %v1741, 0.0
        %1743 = vadd.xlane.f32.xlu0 %v1742
        %v1744 = vpop.xlane.xlu0 %1743
        %v1745 = vmul.f32 %v1744, %v1738
        %v1746 = vadd.f32 %v1745, 1e-05
        %v1747 = vrsqrt.pop %v1746
        %v1748 = vmul.f32 %v1740, %v1747
        %v1749 = vld [vmem:[%s1054] sm:$0x1]
        %v1751 = vlaneseq
        %v1752 = vshrl.u32 %v1751, 7
        %v1753 = vsub.s32 0, %v1752
        %v1754 = vrot.slane %v1749, %v1753
        %v1756 = vmul.f32 %v1748, %v1754
        %v1757 = vld [vmem:[%s1057] sm:$0x1]
        %v1759 = vlaneseq
        %v1760 = vshrl.u32 %v1759, 7
        %v1761 = vsub.s32 0, %v1760
        %v1762 = vrot.slane %v1757, %v1761
        %v1764 = vadd.f32 %v1756, %v1762
        %v1765 = vpack.c.bf16 %v1764, %v1764
        %v1766 = vld [vmem:[%s1062] sm:$0xf]
        %v1767 = vld [vmem:[%s1062 + $0x4] sm:$0xf]
        %v1768 = vld [vmem:[%s1062 + $0x8] sm:$0xf]
        %v1769 = vld [vmem:[%s1062 + $0xc] sm:$0xf]
        %v1770 = vld [vmem:[%s1065] sm:$0x1]
        %v1772 = vlaneseq
        %v1773 = vshrl.u32 %v1772, 7
        %v1774 = vsub.s32 0, %v1773
        %v1775 = vrot.slane %v1770, %v1774
        %v1781 = vunpack.c.l.b16 %v1766
        %v1782 = vunpack.c.l.b16 %v1767
        %v1783 = vunpack.c.l.b16 %v1768
        %v1784 = vunpack.c.l.b16 %v1769
        %v1785 = vpack.c.b16 %v1782, %v1781
        %v1786 = vpack.c.b16 %v1784, %v1783
        %v1790 = vsel %vm1147, %v1765, 0
        %1792 = vmatprep.subr.bf16.mxu0 0
        %1793 = vmatpush1.bf16.msra.mxu0 %v1785
        %1794 = vmatprep.subr.bf16.mxu0 0
        %1795 = vmatpush1.bf16.msra.mxu0 %v1786
        %1796 = vmatprep.subr.bf16.mxu0 0
        %1797 = vmatpush1.bf16.msra.mxu0 0
        %1798 = vmatprep.subr.bf16.mxu0 0
        %1799 = vmatpush1.bf16.msra.mxu0 0
        %1800 = vmatprep.subr.bf16.mxu0 0
        %1801 = vmatpush1.bf16.msra.mxu0 0
        %1802 = vmatprep.subr.bf16.mxu0 0
        %1803 = vmatpush1.bf16.msra.mxu0 0
        %1804 = vmatprep.subr.bf16.mxu0 0
        %1805 = vmatpush1.bf16.msra.mxu0 0
        %1806 = vmatprep.subr.bf16.mxu0 0
        %1807 = vmatpush1.bf16.msra.mxu0 0
        %1808 = vmatprep.subr.bf16.mxu0 0
        %1809 = vmatpush1.bf16.msra.mxu0 0
        %1810 = vmatprep.subr.bf16.mxu0 0
        %1811 = vmatpush1.bf16.msra.mxu0 0
        %1812 = vmatprep.subr.bf16.mxu0 0
        %1813 = vmatpush1.bf16.msra.mxu0 0
        %1814 = vmatprep.subr.bf16.mxu0 0
        %1815 = vmatpush1.bf16.msra.mxu0 0
        %1816 = vmatprep.subr.bf16.mxu0 0
        %1817 = vmatpush1.bf16.msra.mxu0 0
        %1818 = vmatprep.subr.bf16.mxu0 0
        %1819 = vmatpush1.bf16.msra.mxu0 0
        %1820 = vmatprep.subr.bf16.mxu0 0
        %1821 = vmatpush1.bf16.msra.mxu0 0
        %1822 = vmatprep.subr.bf16.mxu0 0
        %1823 = vmatpush1.bf16.msra.mxu0 0
        %1824 = vmatprep.mubr.bf16.mxu0 0
        %1825 = vmatmul.mubr.bf16.gmra.mrb[0].mxu0 %v1790
        %v1826 = vpop.f32.mrb[0].mxu0
        %v1827 = vadd.f32 %v1775, %v1826
        %v1828 = vpop.f32.mrb[0].mxu0
        %v1829 = vpop.f32.mrb[0].mxu0
        %v1830 = vpop.f32.mrb[0].mxu0
        %1831 = vdwg.mxu0
        %v1832 = vld [vmem:[%s1032] sm:$0xff]
        %v1833 = vld [vmem:[%s1032 + $0x8] sm:$0xff]
        %v1834 = vpack.c.bf16 %v1833, %v1832
        %v1835 = vld [vmem:[%s1070] sm:$0xf]
        %v1836 = vld [vmem:[%s1070 + $0x4] sm:$0xf]
        %v1837 = vld [vmem:[%s1070 + $0x8] sm:$0xf]
        %v1838 = vld [vmem:[%s1070 + $0xc] sm:$0xf]
        %v1839 = vld [vmem:[%s1073] sm:$0x1]
        %v1841 = vlaneseq
        %v1842 = vshrl.u32 %v1841, 7
        %v1843 = vsub.s32 0, %v1842
        %v1844 = vrot.slane %v1839, %v1843
        %v1850 = vunpack.c.l.b16 %v1835
        %v1851 = vunpack.c.l.b16 %v1836
        %v1852 = vunpack.c.l.b16 %v1837
        %v1853 = vunpack.c.l.b16 %v1838
        %v1854 = vpack.c.b16 %v1851, %v1850
        %v1855 = vpack.c.b16 %v1853, %v1852
        %v1859 = vsel %vm1147, %v1834, 0
        %1861 = vmatprep.subr.bf16.mxu0 0
        %1862 = vmatpush1.bf16.msra.mxu0 %v1854
        %1863 = vmatprep.subr.bf16.mxu0 0
        %1864 = vmatpush1.bf16.msra.mxu0 %v1855
        %1865 = vmatprep.subr.bf16.mxu0 0
        %1866 = vmatpush1.bf16.msra.mxu0 0
        %1867 = vmatprep.subr.bf16.mxu0 0
        %1868 = vmatpush1.bf16.msra.mxu0 0
        %1869 = vmatprep.subr.bf16.mxu0 0
        %1870 = vmatpush1.bf16.msra.mxu0 0
        %1871 = vmatprep.subr.bf16.mxu0 0
        %1872 = vmatpush1.bf16.msra.mxu0 0
        %1873 = vmatprep.subr.bf16.mxu0 0
        %1874 = vmatpush1.bf16.msra.mxu0 0
        %1875 = vmatprep.subr.bf16.mxu0 0
        %1876 = vmatpush1.bf16.msra.mxu0 0
        %1877 = vmatprep.subr.bf16.mxu0 0
        %1878 = vmatpush1.bf16.msra.mxu0 0
        %1879 = vmatprep.subr.bf16.mxu0 0
        %1880 = vmatpush1.bf16.msra.mxu0 0
        %1881 = vmatprep.subr.bf16.mxu0 0
        %1882 = vmatpush1.bf16.msra.mxu0 0
        %1883 = vmatprep.subr.bf16.mxu0 0
        %1884 = vmatpush1.bf16.msra.mxu0 0
        %1885 = vmatprep.subr.bf16.mxu0 0
        %1886 = vmatpush1.bf16.msra.mxu0 0
        %1887 = vmatprep.subr.bf16.mxu0 0
        %1888 = vmatpush1.bf16.msra.mxu0 0
        %1889 = vmatprep.subr.bf16.mxu0 0
        %1890 = vmatpush1.bf16.msra.mxu0 0
        %1891 = vmatprep.subr.bf16.mxu0 0
        %1892 = vmatpush1.bf16.msra.mxu0 0
        %1893 = vmatprep.mubr.bf16.mxu0 0
        %1894 = vmatmul.mubr.bf16.gmra.mrb[0].mxu0 %v1859
        %v1895 = vpop.f32.mrb[0].mxu0
        %v1896 = vadd.f32 %v1844, %v1895
        %v1897 = vpop.f32.mrb[0].mxu0
        %v1898 = vpop.f32.mrb[0].mxu0
        %v1899 = vadd.f32 %v1844, %v1898
        %v1900 = vpop.f32.mrb[0].mxu0
        %1901 = vdwg.mxu0
        %v1902 = vpack.c.bf16 %v1827, %v1827
        %v1903 = vpack.c.bf16 %v1899, %v1896
        %v1905 = vsel %vm1209, %v1902, 0
        %v1908 = vsel %vm1209, %v1903, 0
        %1910 = vmatprep.subr.bf16.mxu0 0
        %1911 = vmatpush1.bf16.xpose.msra.mxu0 %v1908
        %1912 = vmatprep.subr.bf16.mxu0 0
        %1913 = vmatpush1.bf16.xpose.msra.mxu0 0
        %1914 = vmatprep.subr.bf16.mxu0 0
        %1915 = vmatpush1.bf16.xpose.msra.mxu0 0
        %1916 = vmatprep.subr.bf16.mxu0 0
        %1917 = vmatpush1.bf16.xpose.msra.mxu0 0
        %1918 = vmatprep.subr.bf16.mxu0 0
        %1919 = vmatpush1.bf16.xpose.msra.mxu0 0
        %1920 = vmatprep.subr.bf16.mxu0 0
        %1921 = vmatpush1.bf16.xpose.msra.mxu0 0
        %1922 = vmatprep.subr.bf16.mxu0 0
        %1923 = vmatpush1.bf16.xpose.msra.mxu0 0
        %1924 = vmatprep.subr.bf16.mxu0 0
        %1925 = vmatpush1.bf16.xpose.msra.mxu0 0
        %1926 = vmatprep.subr.bf16.mxu0 0
        %1927 = vmatpush1.bf16.xpose.msra.mxu0 0
        %1928 = vmatprep.subr.bf16.mxu0 0
        %1929 = vmatpush1.bf16.xpose.msra.mxu0 0
        %1930 = vmatprep.subr.bf16.mxu0 0
        %1931 = vmatpush1.bf16.xpose.msra.mxu0 0
        %1932 = vmatprep.subr.bf16.mxu0 0
        %1933 = vmatpush1.bf16.xpose.msra.mxu0 0
        %1934 = vmatprep.subr.bf16.mxu0 0
        %1935 = vmatpush1.bf16.xpose.msra.mxu0 0
        %1936 = vmatprep.subr.bf16.mxu0 0
        %1937 = vmatpush1.bf16.xpose.msra.mxu0 0
        %1938 = vmatprep.subr.bf16.mxu0 0
        %1939 = vmatpush1.bf16.xpose.msra.mxu0 0
        %1940 = vmatprep.subr.bf16.mxu0 0
        %1941 = vmatpush1.bf16.xpose.msra.mxu0 0
        %1942 = vmatprep.mubr.bf16.mxu0 0
        %1943 = vmatmul.mubr.bf16.gmra.mrb[0].mxu0 %v1905
        %v1944 = vpop.f32.mrb[0].mxu0
        %v1945 = vadd.f32 0.0, %v1944
        %v1946 = vpop.f32.mrb[0].mxu0
        %v1947 = vpop.f32.mrb[0].mxu0
        %v1948 = vpop.f32.mrb[0].mxu0
        %1949 = vdwg.mxu0
        %vm1950 = vcmask 130048
        %v1951 = vsel %vm1950, %v1945, -inf
        %1952 = vmax.xlane.f32.xlu0 %v1951
        %v1953 = vpop.xlane.xlu0 %1952
        %v1954 = vsub.f32 %v1945, %v1953
        %v1955 = vmul.f32 %v1954, 1.442695
        %v1956 = vpow.pop %v1955
        %v1957 = vsel %vm1950, %v1956, 0.0
        %1958 = vadd.xlane.f32.xlu0 %v1957
        %v1959 = vpop.xlane.xlu0 %1958
        %v1960 = vrcp.pop %v1959
        %v1961 = vmul.f32 %v1956, %v1960
        %v1962 = vpack.c.bf16 %v1961, %v1961
        %1964 = vrot.lane.b32.xlu0 %v1903, 96
        %v1965 = vpop.permute.xlu0 %1964
        %v1968 = vsel %vm1950, %v1962, 0
        %1970 = vmatprep.subr.bf16.mxu0 0
        %1971 = vmatpush1.bf16.msra.mxu0 %v1965
        %1972 = vmatprep.subr.bf16.mxu0 0
        %1973 = vmatpush1.bf16.msra.mxu0 0
        %1974 = vmatprep.subr.bf16.mxu0 0
        %1975 = vmatpush1.bf16.msra.mxu0 0
        %1976 = vmatprep.subr.bf16.mxu0 0
        %1977 = vmatpush1.bf16.msra.mxu0 0
        %1978 = vmatprep.subr.bf16.mxu0 0
        %1979 = vmatpush1.bf16.msra.mxu0 0
        %1980 = vmatprep.subr.bf16.mxu0 0
        %1981 = vmatpush1.bf16.msra.mxu0 0
        %1982 = vmatprep.subr.bf16.mxu0 0
        %1983 = vmatpush1.bf16.msra.mxu0 0
        %1984 = vmatprep.subr.bf16.mxu0 0
        %1985 = vmatpush1.bf16.msra.mxu0 0
        %1986 = vmatprep.subr.bf16.mxu0 0
        %1987 = vmatpush1.bf16.msra.mxu0 0
        %1988 = vmatprep.subr.bf16.mxu0 0
        %1989 = vmatpush1.bf16.msra.mxu0 0
        %1990 = vmatprep.subr.bf16.mxu0 0
        %1991 = vmatpush1.bf16.msra.mxu0 0
        %1992 = vmatprep.subr.bf16.mxu0 0
        %1993 = vmatpush1.bf16.msra.mxu0 0
        %1994 = vmatprep.subr.bf16.mxu0 0
        %1995 = vmatpush1.bf16.msra.mxu0 0
        %1996 = vmatprep.subr.bf16.mxu0 0
        %1997 = vmatpush1.bf16.msra.mxu0 0
        %1998 = vmatprep.subr.bf16.mxu0 0
        %1999 = vmatpush1.bf16.msra.mxu0 0
        %2000 = vmatprep.subr.bf16.mxu0 0
        %2001 = vmatpush1.bf16.msra.mxu0 0
        %2002 = vmatprep.mubr.bf16.mxu0 0
        %2003 = vmatmul.mubr.bf16.gmra.mrb[0].mxu0 %v1968
        %v2004 = vpop.f32.mrb[0].mxu0
        %v2005 = vadd.f32 0.0, %v2004
        %v2006 = vpop.f32.mrb[0].mxu0
        %v2007 = vpop.f32.mrb[0].mxu0
        %v2008 = vpop.f32.mrb[0].mxu0
        %2009 = vdwg.mxu0
        %2010 = vst.msk [vmem:[#allocation3] sm:$0xff] %vm1209, %v2005
        %2012 = vrot.lane.b32.xlu0 %v1902, 120
        %v2013 = vpop.permute.xlu0 %2012
        %2014 = vrot.lane.b32.xlu0 %v1903, 120
        %v2015 = vpop.permute.xlu0 %2014
        %v2017 = vsel %vm1209, %v2013, 0
        %v2020 = vsel %vm1209, %v2015, 0
        %2022 = vmatprep.subr.bf16.mxu0 0
        %2023 = vmatpush1.bf16.xpose.msra.mxu0 %v2020
        %2024 = vmatprep.subr.bf16.mxu0 0
        %2025 = vmatpush1.bf16.xpose.msra.mxu0 0
        %2026 = vmatprep.subr.bf16.mxu0 0
        %2027 = vmatpush1.bf16.xpose.msra.mxu0 0
        %2028 = vmatprep.subr.bf16.mxu0 0
        %2029 = vmatpush1.bf16.xpose.msra.mxu0 0
        %2030 = vmatprep.subr.bf16.mxu0 0
        %2031 = vmatpush1.bf16.xpose.msra.mxu0 0
        %2032 = vmatprep.subr.bf16.mxu0 0
        %2033 = vmatpush1.bf16.xpose.msra.mxu0 0
        %2034 = vmatprep.subr.bf16.mxu0 0
        %2035 = vmatpush1.bf16.xpose.msra.mxu0 0
        %2036 = vmatprep.subr.bf16.mxu0 0
        %2037 = vmatpush1.bf16.xpose.msra.mxu0 0
        %2038 = vmatprep.subr.bf16.mxu0 0
        %2039 = vmatpush1.bf16.xpose.msra.mxu0 0
        %2040 = vmatprep.subr.bf16.mxu0 0
        %2041 = vmatpush1.bf16.xpose.msra.mxu0 0
        %2042 = vmatprep.subr.bf16.mxu0 0
        %2043 = vmatpush1.bf16.xpose.msra.mxu0 0
        %2044 = vmatprep.subr.bf16.mxu0 0
        %2045 = vmatpush1.bf16.xpose.msra.mxu0 0
        %2046 = vmatprep.subr.bf16.mxu0 0
        %2047 = vmatpush1.bf16.xpose.msra.mxu0 0
        %2048 = vmatprep.subr.bf16.mxu0 0
        %2049 = vmatpush1.bf16.xpose.msra.mxu0 0
        %2050 = vmatprep.subr.bf16.mxu0 0
        %2051 = vmatpush1.bf16.xpose.msra.mxu0 0
        %2052 = vmatprep.subr.bf16.mxu0 0
        %2053 = vmatpush1.bf16.xpose.msra.mxu0 0
        %2054 = vmatprep.mubr.bf16.mxu0 0
        %2055 = vmatmul.mubr.bf16.gmra.mrb[0].mxu0 %v2017
        %v2056 = vpop.f32.mrb[0].mxu0
        %v2057 = vadd.f32 0.0, %v2056
        %v2058 = vpop.f32.mrb[0].mxu0
        %v2059 = vpop.f32.mrb[0].mxu0
        %v2060 = vpop.f32.mrb[0].mxu0
        %2061 = vdwg.mxu0
        %v2062 = vsel %vm1950, %v2057, -inf
        %2063 = vmax.xlane.f32.xlu0 %v2062
        %v2064 = vpop.xlane.xlu0 %2063
        %v2065 = vsub.f32 %v2057, %v2064
        %v2066 = vmul.f32 %v2065, 1.442695
        %v2067 = vpow.pop %v2066
        %v2068 = vsel %vm1950, %v2067, 0.0
        %2069 = vadd.xlane.f32.xlu0 %v2068
        %v2070 = vpop.xlane.xlu0 %2069
        %v2071 = vrcp.pop %v2070
        %v2072 = vmul.f32 %v2067, %v2071
        %v2073 = vpack.c.bf16 %v2072, %v2072
        %2074 = vrot.lane.b32.xlu0 %v1903, 88
        %v2075 = vpop.permute.xlu0 %2074
        %v2078 = vsel %vm1950, %v2073, 0
        %2080 = vmatprep.subr.bf16.mxu0 0
        %2081 = vmatpush1.bf16.msra.mxu0 %v2075
        %2082 = vmatprep.subr.bf16.mxu0 0
        %2083 = vmatpush1.bf16.msra.mxu0 0
        %2084 = vmatprep.subr.bf16.mxu0 0
        %2085 = vmatpush1.bf16.msra.mxu0 0
        %2086 = vmatprep.subr.bf16.mxu0 0
        %2087 = vmatpush1.bf16.msra.mxu0 0
        %2088 = vmatprep.subr.bf16.mxu0 0
        %2089 = vmatpush1.bf16.msra.mxu0 0
        %2090 = vmatprep.subr.bf16.mxu0 0
        %2091 = vmatpush1.bf16.msra.mxu0 0
        %2092 = vmatprep.subr.bf16.mxu0 0
        %2093 = vmatpush1.bf16.msra.mxu0 0
        %2094 = vmatprep.subr.bf16.mxu0 0
        %2095 = vmatpush1.bf16.msra.mxu0 0
        %2096 = vmatprep.subr.bf16.mxu0 0
        %2097 = vmatpush1.bf16.msra.mxu0 0
        %2098 = vmatprep.subr.bf16.mxu0 0
        %2099 = vmatpush1.bf16.msra.mxu0 0
        %2100 = vmatprep.subr.bf16.mxu0 0
        %2101 = vmatpush1.bf16.msra.mxu0 0
        %2102 = vmatprep.subr.bf16.mxu0 0
        %2103 = vmatpush1.bf16.msra.mxu0 0
        %2104 = vmatprep.subr.bf16.mxu0 0
        %2105 = vmatpush1.bf16.msra.mxu0 0
        %2106 = vmatprep.subr.bf16.mxu0 0
        %2107 = vmatpush1.bf16.msra.mxu0 0
        %2108 = vmatprep.subr.bf16.mxu0 0
        %2109 = vmatpush1.bf16.msra.mxu0 0
        %2110 = vmatprep.subr.bf16.mxu0 0
        %2111 = vmatpush1.bf16.msra.mxu0 0
        %2112 = vmatprep.mubr.bf16.mxu0 0
        %2113 = vmatmul.mubr.bf16.gmra.mrb[0].mxu0 %v2078
        %v2114 = vpop.f32.mrb[0].mxu0
        %v2115 = vadd.f32 0.0, %v2114
        %v2116 = vpop.f32.mrb[0].mxu0
        %v2117 = vpop.f32.mrb[0].mxu0
        %v2118 = vpop.f32.mrb[0].mxu0
        %2119 = vdwg.mxu0
        %2121 = vrot.lane.b32.xlu0 %v2115, 8
        %v2122 = vpop.permute.xlu0 %2121
        %2124 = vst.msk [vmem:[#allocation3] sm:$0xff] %vm1432, %v2122
        %v2125 = vadd.f32 %v1961, %v2072
        %2126 = vrot.lane.b32.xlu0 %v1902, 112
        %v2127 = vpop.permute.xlu0 %2126
        %2128 = vrot.lane.b32.xlu0 %v1903, 112
        %v2129 = vpop.permute.xlu0 %2128
        %v2131 = vsel %vm1209, %v2127, 0
        %v2134 = vsel %vm1209, %v2129, 0
        %2136 = vmatprep.subr.bf16.mxu0 0
        %2137 = vmatpush1.bf16.xpose.msra.mxu0 %v2134
        %2138 = vmatprep.subr.bf16.mxu0 0
        %2139 = vmatpush1.bf16.xpose.msra.mxu0 0
        %2140 = vmatprep.subr.bf16.mxu0 0
        %2141 = vmatpush1.bf16.xpose.msra.mxu0 0
        %2142 = vmatprep.subr.bf16.mxu0 0
        %2143 = vmatpush1.bf16.xpose.msra.mxu0 0
        %2144 = vmatprep.subr.bf16.mxu0 0
        %2145 = vmatpush1.bf16.xpose.msra.mxu0 0
        %2146 = vmatprep.subr.bf16.mxu0 0
        %2147 = vmatpush1.bf16.xpose.msra.mxu0 0
        %2148 = vmatprep.subr.bf16.mxu0 0
        %2149 = vmatpush1.bf16.xpose.msra.mxu0 0
        %2150 = vmatprep.subr.bf16.mxu0 0
        %2151 = vmatpush1.bf16.xpose.msra.mxu0 0
        %2152 = vmatprep.subr.bf16.mxu0 0
        %2153 = vmatpush1.bf16.xpose.msra.mxu0 0
        %2154 = vmatprep.subr.bf16.mxu0 0
        %2155 = vmatpush1.bf16.xpose.msra.mxu0 0
        %2156 = vmatprep.subr.bf16.mxu0 0
        %2157 = vmatpush1.bf16.xpose.msra.mxu0 0
        %2158 = vmatprep.subr.bf16.mxu0 0
        %2159 = vmatpush1.bf16.xpose.msra.mxu0 0
        %2160 = vmatprep.subr.bf16.mxu0 0
        %2161 = vmatpush1.bf16.xpose.msra.mxu0 0
        %2162 = vmatprep.subr.bf16.mxu0 0
        %2163 = vmatpush1.bf16.xpose.msra.mxu0 0
        %2164 = vmatprep.subr.bf16.mxu0 0
        %2165 = vmatpush1.bf16.xpose.msra.mxu0 0
        %2166 = vmatprep.subr.bf16.mxu0 0
        %2167 = vmatpush1.bf16.xpose.msra.mxu0 0
        %2168 = vmatprep.mubr.bf16.mxu0 0
        %2169 = vmatmul.mubr.bf16.gmra.mrb[0].mxu0 %v2131
        %v2170 = vpop.f32.mrb[0].mxu0
        %v2171 = vadd.f32 0.0, %v2170
        %v2172 = vpop.f32.mrb[0].mxu0
        %v2173 = vpop.f32.mrb[0].mxu0
        %v2174 = vpop.f32.mrb[0].mxu0
        %2175 = vdwg.mxu0
        %v2176 = vsel %vm1950, %v2171, -inf
        %2177 = vmax.xlane.f32.xlu0 %v2176
        %v2178 = vpop.xlane.xlu0 %2177
        %v2179 = vsub.f32 %v2171, %v2178
        %v2180 = vmul.f32 %v2179, 1.442695
        %v2181 = vpow.pop %v2180
        %v2182 = vsel %vm1950, %v2181, 0.0
        %2183 = vadd.xlane.f32.xlu0 %v2182
        %v2184 = vpop.xlane.xlu0 %2183
        %v2185 = vrcp.pop %v2184
        %v2186 = vmul.f32 %v2181, %v2185
        %v2187 = vpack.c.bf16 %v2186, %v2186
        %2188 = vrot.lane.b32.xlu0 %v1903, 80
        %v2189 = vpop.permute.xlu0 %2188
        %v2192 = vsel %vm1950, %v2187, 0
        %2194 = vmatprep.subr.bf16.mxu0 0
        %2195 = vmatpush1.bf16.msra.mxu0 %v2189
        %2196 = vmatprep.subr.bf16.mxu0 0
        %2197 = vmatpush1.bf16.msra.mxu0 0
        %2198 = vmatprep.subr.bf16.mxu0 0
        %2199 = vmatpush1.bf16.msra.mxu0 0
        %2200 = vmatprep.subr.bf16.mxu0 0
        %2201 = vmatpush1.bf16.msra.mxu0 0
        %2202 = vmatprep.subr.bf16.mxu0 0
        %2203 = vmatpush1.bf16.msra.mxu0 0
        %2204 = vmatprep.subr.bf16.mxu0 0
        %2205 = vmatpush1.bf16.msra.mxu0 0
        %2206 = vmatprep.subr.bf16.mxu0 0
        %2207 = vmatpush1.bf16.msra.mxu0 0
        %2208 = vmatprep.subr.bf16.mxu0 0
        %2209 = vmatpush1.bf16.msra.mxu0 0
        %2210 = vmatprep.subr.bf16.mxu0 0
        %2211 = vmatpush1.bf16.msra.mxu0 0
        %2212 = vmatprep.subr.bf16.mxu0 0
        %2213 = vmatpush1.bf16.msra.mxu0 0
        %2214 = vmatprep.subr.bf16.mxu0 0
        %2215 = vmatpush1.bf16.msra.mxu0 0
        %2216 = vmatprep.subr.bf16.mxu0 0
        %2217 = vmatpush1.bf16.msra.mxu0 0
        %2218 = vmatprep.subr.bf16.mxu0 0
        %2219 = vmatpush1.bf16.msra.mxu0 0
        %2220 = vmatprep.subr.bf16.mxu0 0
        %2221 = vmatpush1.bf16.msra.mxu0 0
        %2222 = vmatprep.subr.bf16.mxu0 0
        %2223 = vmatpush1.bf16.msra.mxu0 0
        %2224 = vmatprep.subr.bf16.mxu0 0
        %2225 = vmatpush1.bf16.msra.mxu0 0
        %2226 = vmatprep.mubr.bf16.mxu0 0
        %2227 = vmatmul.mubr.bf16.gmra.mrb[0].mxu0 %v2192
        %v2228 = vpop.f32.mrb[0].mxu0
        %v2229 = vadd.f32 0.0, %v2228
        %v2230 = vpop.f32.mrb[0].mxu0
        %v2231 = vpop.f32.mrb[0].mxu0
        %v2232 = vpop.f32.mrb[0].mxu0
        %2233 = vdwg.mxu0
        %2235 = vrot.lane.b32.xlu0 %v2229, 16
        %v2236 = vpop.permute.xlu0 %2235
        %2238 = vst.msk [vmem:[#allocation3] sm:$0xff] %vm1548, %v2236
        %v2239 = vadd.f32 %v2125, %v2186
        %2240 = vrot.lane.b32.xlu0 %v1902, 104
        %v2241 = vpop.permute.xlu0 %2240
        %2242 = vrot.lane.b32.xlu0 %v1903, 104
        %v2243 = vpop.permute.xlu0 %2242
        %v2245 = vsel %vm1209, %v2241, 0
        %v2248 = vsel %vm1209, %v2243, 0
        %2250 = vmatprep.subr.bf16.mxu0 0
        %2251 = vmatpush1.bf16.xpose.msra.mxu0 %v2248
        %2252 = vmatprep.subr.bf16.mxu0 0
        %2253 = vmatpush1.bf16.xpose.msra.mxu0 0
        %2254 = vmatprep.subr.bf16.mxu0 0
        %2255 = vmatpush1.bf16.xpose.msra.mxu0 0
        %2256 = vmatprep.subr.bf16.mxu0 0
        %2257 = vmatpush1.bf16.xpose.msra.mxu0 0
        %2258 = vmatprep.subr.bf16.mxu0 0
        %2259 = vmatpush1.bf16.xpose.msra.mxu0 0
        %2260 = vmatprep.subr.bf16.mxu0 0
        %2261 = vmatpush1.bf16.xpose.msra.mxu0 0
        %2262 = vmatprep.subr.bf16.mxu0 0
        %2263 = vmatpush1.bf16.xpose.msra.mxu0 0
        %2264 = vmatprep.subr.bf16.mxu0 0
        %2265 = vmatpush1.bf16.xpose.msra.mxu0 0
        %2266 = vmatprep.subr.bf16.mxu0 0
        %2267 = vmatpush1.bf16.xpose.msra.mxu0 0
        %2268 = vmatprep.subr.bf16.mxu0 0
        %2269 = vmatpush1.bf16.xpose.msra.mxu0 0
        %2270 = vmatprep.subr.bf16.mxu0 0
        %2271 = vmatpush1.bf16.xpose.msra.mxu0 0
        %2272 = vmatprep.subr.bf16.mxu0 0
        %2273 = vmatpush1.bf16.xpose.msra.mxu0 0
        %2274 = vmatprep.subr.bf16.mxu0 0
        %2275 = vmatpush1.bf16.xpose.msra.mxu0 0
        %2276 = vmatprep.subr.bf16.mxu0 0
        %2277 = vmatpush1.bf16.xpose.msra.mxu0 0
        %2278 = vmatprep.subr.bf16.mxu0 0
        %2279 = vmatpush1.bf16.xpose.msra.mxu0 0
        %2280 = vmatprep.subr.bf16.mxu0 0
        %2281 = vmatpush1.bf16.xpose.msra.mxu0 0
        %2282 = vmatprep.mubr.bf16.mxu0 0
        %2283 = vmatmul.mubr.bf16.gmra.mrb[0].mxu0 %v2245
        %v2284 = vpop.f32.mrb[0].mxu0
        %v2285 = vadd.f32 0.0, %v2284
        %v2286 = vpop.f32.mrb[0].mxu0
        %v2287 = vpop.f32.mrb[0].mxu0
        %v2288 = vpop.f32.mrb[0].mxu0
        %2289 = vdwg.mxu0
        %v2290 = vsel %vm1950, %v2285, -inf
        %2291 = vmax.xlane.f32.xlu0 %v2290
        %v2292 = vpop.xlane.xlu0 %2291
        %v2293 = vsub.f32 %v2285, %v2292
        %v2294 = vmul.f32 %v2293, 1.442695
        %v2295 = vpow.pop %v2294
        %v2296 = vsel %vm1950, %v2295, 0.0
        %2297 = vadd.xlane.f32.xlu0 %v2296
        %v2298 = vpop.xlane.xlu0 %2297
        %v2299 = vrcp.pop %v2298
        %v2300 = vmul.f32 %v2295, %v2299
        %v2301 = vpack.c.bf16 %v2300, %v2300
        %2302 = vrot.lane.b32.xlu0 %v1903, 72
        %v2303 = vpop.permute.xlu0 %2302
        %v2306 = vsel %vm1950, %v2301, 0
        %2308 = vmatprep.subr.bf16.mxu0 0
        %2309 = vmatpush1.bf16.msra.mxu0 %v2303
        %2310 = vmatprep.subr.bf16.mxu0 0
        %2311 = vmatpush1.bf16.msra.mxu0 0
        %2312 = vmatprep.subr.bf16.mxu0 0
        %2313 = vmatpush1.bf16.msra.mxu0 0
        %2314 = vmatprep.subr.bf16.mxu0 0
        %2315 = vmatpush1.bf16.msra.mxu0 0
        %2316 = vmatprep.subr.bf16.mxu0 0
        %2317 = vmatpush1.bf16.msra.mxu0 0
        %2318 = vmatprep.subr.bf16.mxu0 0
        %2319 = vmatpush1.bf16.msra.mxu0 0
        %2320 = vmatprep.subr.bf16.mxu0 0
        %2321 = vmatpush1.bf16.msra.mxu0 0
        %2322 = vmatprep.subr.bf16.mxu0 0
        %2323 = vmatpush1.bf16.msra.mxu0 0
        %2324 = vmatprep.subr.bf16.mxu0 0
        %2325 = vmatpush1.bf16.msra.mxu0 0
        %2326 = vmatprep.subr.bf16.mxu0 0
        %2327 = vmatpush1.bf16.msra.mxu0 0
        %2328 = vmatprep.subr.bf16.mxu0 0
        %2329 = vmatpush1.bf16.msra.mxu0 0
        %2330 = vmatprep.subr.bf16.mxu0 0
        %2331 = vmatpush1.bf16.msra.mxu0 0
        %2332 = vmatprep.subr.bf16.mxu0 0
        %2333 = vmatpush1.bf16.msra.mxu0 0
        %2334 = vmatprep.subr.bf16.mxu0 0
        %2335 = vmatpush1.bf16.msra.mxu0 0
        %2336 = vmatprep.subr.bf16.mxu0 0
        %2337 = vmatpush1.bf16.msra.mxu0 0
        %2338 = vmatprep.subr.bf16.mxu0 0
        %2339 = vmatpush1.bf16.msra.mxu0 0
        %2340 = vmatprep.mubr.bf16.mxu0 0
        %2341 = vmatmul.mubr.bf16.gmra.mrb[0].mxu0 %v2306
        %v2342 = vpop.f32.mrb[0].mxu0
        %v2343 = vadd.f32 0.0, %v2342
        %v2344 = vpop.f32.mrb[0].mxu0
        %v2345 = vpop.f32.mrb[0].mxu0
        %v2346 = vpop.f32.mrb[0].mxu0
        %2347 = vdwg.mxu0
        %2349 = vrot.lane.b32.xlu0 %v2343, 24
        %v2350 = vpop.permute.xlu0 %2349
        %2352 = vst.msk [vmem:[#allocation3] sm:$0xff] %vm1664, %v2350
        %v2353 = vadd.f32 %v2239, %v2300
        %v2354 = vld [vmem:[#allocation3] sm:$0xff]
        %v2355 = vmul.f32 %v2353, 0.25
        %2356 = vst.msk [vmem:[%s1023] sm:$0xff] %vm1950, %v2355
        %v2357 = vpack.c.bf16 %v2354, %v2354
        %v2358 = vld [vmem:[%s1078] sm:$0xf]
        %v2359 = vld [vmem:[%s1078 + $0x4] sm:$0xf]
        %v2360 = vld [vmem:[%s1078 + $0x8] sm:$0xf]
        %v2361 = vld [vmem:[%s1078 + $0xc] sm:$0xf]
        %v2362 = vld [vmem:[%s1081] sm:$0x1]
        %v2364 = vlaneseq
        %v2365 = vshrl.u32 %v2364, 7
        %v2366 = vsub.s32 0, %v2365
        %v2367 = vrot.slane %v2362, %v2366
        %v2373 = vunpack.c.l.b16 %v2358
        %v2374 = vunpack.c.l.b16 %v2359
        %v2375 = vunpack.c.l.b16 %v2360
        %v2376 = vunpack.c.l.b16 %v2361
        %v2377 = vpack.c.b16 %v2374, %v2373
        %v2378 = vpack.c.b16 %v2376, %v2375
        %v2382 = vsel %vm1147, %v2357, 0
        %2384 = vmatprep.subr.bf16.mxu0 0
        %2385 = vmatpush1.bf16.msra.mxu0 %v2377
        %2386 = vmatprep.subr.bf16.mxu0 0
        %2387 = vmatpush1.bf16.msra.mxu0 %v2378
        %2388 = vmatprep.subr.bf16.mxu0 0
        %2389 = vmatpush1.bf16.msra.mxu0 0
        %2390 = vmatprep.subr.bf16.mxu0 0
        %2391 = vmatpush1.bf16.msra.mxu0 0
        %2392 = vmatprep.subr.bf16.mxu0 0
        %2393 = vmatpush1.bf16.msra.mxu0 0
        %2394 = vmatprep.subr.bf16.mxu0 0
        %2395 = vmatpush1.bf16.msra.mxu0 0
        %2396 = vmatprep.subr.bf16.mxu0 0
        %2397 = vmatpush1.bf16.msra.mxu0 0
        %2398 = vmatprep.subr.bf16.mxu0 0
        %2399 = vmatpush1.bf16.msra.mxu0 0
        %2400 = vmatprep.subr.bf16.mxu0 0
        %2401 = vmatpush1.bf16.msra.mxu0 0
        %2402 = vmatprep.subr.bf16.mxu0 0
        %2403 = vmatpush1.bf16.msra.mxu0 0
        %2404 = vmatprep.subr.bf16.mxu0 0
        %2405 = vmatpush1.bf16.msra.mxu0 0
        %2406 = vmatprep.subr.bf16.mxu0 0
        %2407 = vmatpush1.bf16.msra.mxu0 0
        %2408 = vmatprep.subr.bf16.mxu0 0
        %2409 = vmatpush1.bf16.msra.mxu0 0
        %2410 = vmatprep.subr.bf16.mxu0 0
        %2411 = vmatpush1.bf16.msra.mxu0 0
        %2412 = vmatprep.subr.bf16.mxu0 0
        %2413 = vmatpush1.bf16.msra.mxu0 0
        %2414 = vmatprep.subr.bf16.mxu0 0
        %2415 = vmatpush1.bf16.msra.mxu0 0
        %2416 = vmatprep.mubr.bf16.mxu0 0
        %2417 = vmatmul.mubr.bf16.gmra.mrb[0].mxu0 %v2382
        %v2418 = vpop.f32.mrb[0].mxu0
        %v2419 = vadd.f32 %v2367, %v2418
        %v2420 = vpop.f32.mrb[0].mxu0
        %v2421 = vpop.f32.mrb[0].mxu0
        %v2422 = vpop.f32.mrb[0].mxu0
        %2423 = vdwg.mxu0
        %v2424 = vadd.f32 %v1764, %v2419
        %v2425 = vsel %vm1147, %v2424, 0.0
        %2426 = vadd.xlane.f32.xlu0 %v2425
        %v2427 = vpop.xlane.xlu0 %2426
        %v2428 = vmul.f32 %v2427, %v1738
        %v2429 = vsub.f32 %v2424, %v2428
        %v2430 = vmul.f32 %v2429, %v2429
        %v2431 = vsel %vm1147, %v2430, 0.0
        %2432 = vadd.xlane.f32.xlu0 %v2431
        %v2433 = vpop.xlane.xlu0 %2432
        %v2434 = vmul.f32 %v2433, %v1738
        %v2435 = vadd.f32 %v2434, 1e-05
        %v2436 = vrsqrt.pop %v2435
        %v2437 = vmul.f32 %v2429, %v2436
        %v2438 = vld [vmem:[%s1084] sm:$0x1]
        %v2440 = vlaneseq
        %v2441 = vshrl.u32 %v2440, 7
        %v2442 = vsub.s32 0, %v2441
        %v2443 = vrot.slane %v2438, %v2442
        %v2445 = vmul.f32 %v2437, %v2443
        %v2446 = vld [vmem:[%s1087] sm:$0x1]
        %v2448 = vlaneseq
        %v2449 = vshrl.u32 %v2448, 7
        %v2450 = vsub.s32 0, %v2449
        %v2451 = vrot.slane %v2446, %v2450
        %v2453 = vadd.f32 %v2445, %v2451
        %v2454 = vpack.c.bf16 %v2453, %v2453
        %v2455 = vld [vmem:[%s1092] sm:$0xf]
        %v2456 = vld [vmem:[%s1092 + $0x4] sm:$0xf]
        %v2457 = vld [vmem:[%s1092 + $0x8] sm:$0xf]
        %v2458 = vld [vmem:[%s1092 + $0xc] sm:$0xf]
        %v2459 = vld [vmem:[%s1095] sm:$0x1]
        %v2461 = vlaneseq
        %v2462 = vshrl.u32 %v2461, 7
        %v2463 = vsub.s32 0, %v2462
        %v2464 = vrot.slane %v2459, %v2463
        %v2470 = vunpack.c.l.b16 %v2455
        %v2471 = vunpack.c.l.b16 %v2456
        %v2472 = vunpack.c.l.b16 %v2457
        %v2473 = vunpack.c.l.b16 %v2458
        %v2474 = vpack.c.b16 %v2471, %v2470
        %v2475 = vpack.c.b16 %v2473, %v2472
        %v2479 = vsel %vm1147, %v2454, 0
        %2481 = vmatprep.subr.bf16.mxu0 0
        %2482 = vmatpush1.bf16.msra.mxu0 %v2474
        %2483 = vmatprep.subr.bf16.mxu0 0
        %2484 = vmatpush1.bf16.msra.mxu0 %v2475
        %2485 = vmatprep.subr.bf16.mxu0 0
        %2486 = vmatpush1.bf16.msra.mxu0 0
        %2487 = vmatprep.subr.bf16.mxu0 0
        %2488 = vmatpush1.bf16.msra.mxu0 0
        %2489 = vmatprep.subr.bf16.mxu0 0
        %2490 = vmatpush1.bf16.msra.mxu0 0
        %2491 = vmatprep.subr.bf16.mxu0 0
        %2492 = vmatpush1.bf16.msra.mxu0 0
        %2493 = vmatprep.subr.bf16.mxu0 0
        %2494 = vmatpush1.bf16.msra.mxu0 0
        %2495 = vmatprep.subr.bf16.mxu0 0
        %2496 = vmatpush1.bf16.msra.mxu0 0
        %2497 = vmatprep.subr.bf16.mxu0 0
        %2498 = vmatpush1.bf16.msra.mxu0 0
        %2499 = vmatprep.subr.bf16.mxu0 0
        %2500 = vmatpush1.bf16.msra.mxu0 0
        %2501 = vmatprep.subr.bf16.mxu0 0
        %2502 = vmatpush1.bf16.msra.mxu0 0
        %2503 = vmatprep.subr.bf16.mxu0 0
        %2504 = vmatpush1.bf16.msra.mxu0 0
        %2505 = vmatprep.subr.bf16.mxu0 0
        %2506 = vmatpush1.bf16.msra.mxu0 0
        %2507 = vmatprep.subr.bf16.mxu0 0
        %2508 = vmatpush1.bf16.msra.mxu0 0
        %2509 = vmatprep.subr.bf16.mxu0 0
        %2510 = vmatpush1.bf16.msra.mxu0 0
        %2511 = vmatprep.subr.bf16.mxu0 0
        %2512 = vmatpush1.bf16.msra.mxu0 0
        %2513 = vmatprep.mubr.bf16.mxu0 0
        %2514 = vmatmul.mubr.bf16.gmra.mrb[0].mxu0 %v2479
        %v2515 = vpop.f32.mrb[0].mxu0
        %v2516 = vadd.f32 %v2464, %v2515
        %v2517 = vpop.f32.mrb[0].mxu0
        %v2518 = vpop.f32.mrb[0].mxu0
        %v2519 = vpop.f32.mrb[0].mxu0
        %2520 = vdwg.mxu0
        %v2521 = vmax.f32 %v2516, 0.0
        %v2522 = vpack.c.bf16 %v2521, %v2521
        %v2523 = vld [vmem:[%s1100] sm:$0xf]
        %v2524 = vld [vmem:[%s1100 + $0x4] sm:$0xf]
        %v2525 = vld [vmem:[%s1100 + $0x8] sm:$0xf]
        %v2526 = vld [vmem:[%s1100 + $0xc] sm:$0xf]
        %v2527 = vld [vmem:[%s1100 + $0x10] sm:$0xf]
        %v2528 = vld [vmem:[%s1100 + $0x14] sm:$0xf]
        %v2529 = vld [vmem:[%s1100 + $0x18] sm:$0xf]
        %v2530 = vld [vmem:[%s1100 + $0x1c] sm:$0xf]
        %v2531 = vld [vmem:[%s1103] sm:$0x1]
        %v2533 = vlaneseq
        %v2534 = vshrl.u32 %v2533, 7
        %v2535 = vsub.s32 0, %v2534
        %v2536 = vrot.slane %v2531, %v2535
        %v2546 = vunpack.c.l.b16 %v2523
        %v2547 = vunpack.c.l.b16 %v2524
        %v2548 = vunpack.c.l.b16 %v2525
        %v2549 = vunpack.c.l.b16 %v2526
        %v2550 = vunpack.c.l.b16 %v2527
        %v2551 = vunpack.c.l.b16 %v2528
        %v2552 = vunpack.c.l.b16 %v2529
        %v2553 = vunpack.c.l.b16 %v2530
        %v2554 = vpack.c.b16 %v2547, %v2546
        %v2555 = vpack.c.b16 %v2549, %v2548
        %v2556 = vpack.c.b16 %v2551, %v2550
        %v2557 = vpack.c.b16 %v2553, %v2552
        %vm2562 = vcmask 523264
        %v2564 = vsel %vm2562, %v2522, 0
        %2566 = vmatprep.subr.bf16.mxu0 0
        %2567 = vmatpush1.bf16.msra.mxu0 %v2554
        %2568 = vmatprep.subr.bf16.mxu0 0
        %2569 = vmatpush1.bf16.msra.mxu0 %v2555
        %2570 = vmatprep.subr.bf16.mxu0 0
        %2571 = vmatpush1.bf16.msra.mxu0 %v2556
        %2572 = vmatprep.subr.bf16.mxu0 0
        %2573 = vmatpush1.bf16.msra.mxu0 %v2557
        %2574 = vmatprep.subr.bf16.mxu0 0
        %2575 = vmatpush1.bf16.msra.mxu0 0
        %2576 = vmatprep.subr.bf16.mxu0 0
        %2577 = vmatpush1.bf16.msra.mxu0 0
        %2578 = vmatprep.subr.bf16.mxu0 0
        %2579 = vmatpush1.bf16.msra.mxu0 0
        %2580 = vmatprep.subr.bf16.mxu0 0
        %2581 = vmatpush1.bf16.msra.mxu0 0
        %2582 = vmatprep.subr.bf16.mxu0 0
        %2583 = vmatpush1.bf16.msra.mxu0 0
        %2584 = vmatprep.subr.bf16.mxu0 0
        %2585 = vmatpush1.bf16.msra.mxu0 0
        %2586 = vmatprep.subr.bf16.mxu0 0
        %2587 = vmatpush1.bf16.msra.mxu0 0
        %2588 = vmatprep.subr.bf16.mxu0 0
        %2589 = vmatpush1.bf16.msra.mxu0 0
        %2590 = vmatprep.subr.bf16.mxu0 0
        %2591 = vmatpush1.bf16.msra.mxu0 0
        %2592 = vmatprep.subr.bf16.mxu0 0
        %2593 = vmatpush1.bf16.msra.mxu0 0
        %2594 = vmatprep.subr.bf16.mxu0 0
        %2595 = vmatpush1.bf16.msra.mxu0 0
        %2596 = vmatprep.subr.bf16.mxu0 0
        %2597 = vmatpush1.bf16.msra.mxu0 0
        %2598 = vmatprep.mubr.bf16.mxu0 0
        %2599 = vmatmul.mubr.bf16.gmra.mrb[0].mxu0 %v2564
        %v2600 = vpop.f32.mrb[0].mxu0
        %v2601 = vadd.f32 %v2536, %v2600
        %v2602 = vpop.f32.mrb[0].mxu0
        %v2603 = vpop.f32.mrb[0].mxu0
        %v2604 = vpop.f32.mrb[0].mxu0
        %2605 = vdwg.mxu0
        %v2606 = vadd.f32 %v2453, %v2601
        %v2607 = vsel %vm1147, %v2606, 0.0
        %2608 = vadd.xlane.f32.xlu0 %v2607
        %v2609 = vpop.xlane.xlu0 %2608
        %v2610 = vmul.f32 %v2609, %v1738
        %v2611 = vsub.f32 %v2606, %v2610
        %v2612 = vmul.f32 %v2611, %v2611
        %v2613 = vsel %vm1147, %v2612, 0.0
        %2614 = vadd.xlane.f32.xlu0 %v2613
        %v2615 = vpop.xlane.xlu0 %2614
        %v2616 = vmul.f32 %v2615, %v1738
        %v2617 = vadd.f32 %v2616, 1e-05
        %v2618 = vrsqrt.pop %v2617
        %v2619 = vmul.f32 %v2611, %v2618
        %v2620 = vld [vmem:[%s1106] sm:$0x1]
        %v2622 = vlaneseq
        %v2623 = vshrl.u32 %v2622, 7
        %v2624 = vsub.s32 0, %v2623
        %v2625 = vrot.slane %v2620, %v2624
        %v2627 = vmul.f32 %v2619, %v2625
        %v2628 = vld [vmem:[%s1109] sm:$0x1]
        %v2630 = vlaneseq
        %v2631 = vshrl.u32 %v2630, 7
        %v2632 = vsub.s32 0, %v2631
        %v2633 = vrot.slane %v2628, %v2632
        %v2635 = vadd.f32 %v2627, %v2633
        %2636 = vst.msk [vmem:[#allocation2] sm:$0xff] %vm1147, %v2635
        %p2637 = scmp.eq.s32.totalorder %s44, 1
        // Predicated region
        $region117: #{decoder_forward.1} parent=111 // pred_check
          %p2638 = pneg %p2637
        $region118: #{decoder_forward.1} parent=111 // pred_check_branch
          %2640 = sbr.rel (%p2638) target = $region120
        $region119: #{decoder_forward.1} parent=111 // pred_region
          %2641 = vst.msk [vmem:[%s1113] sm:$0xff] %vm1147, %v2635
        $region120: #{decoder_forward.1} parent=111 // pred_fallthru
          _
        %p2642 = scmp.lt.s32.totalorder %s43, 1
        %s2643 = scalar_select %p2642, %s43, 1
        %s2644 = smul.addr %s2643, 8
        %s2645 = scalar_lea.vmem %s23, %s2644
        %s2646 = sand.u32 %s685, 1
        %s2647 = scalar_lea.sflag [#allocation5], %s2646
        %s2648 = sand.u32 %s685, 1
        %s2649 = smul.addr %s2648, 8
        %s2650 = scalar_lea.vmem [#allocation4], %s2649
        // Predicated region
        $region121: #{decoder_forward.1} parent=111 // pred_check
          %p2651 = pneg %p667
        $region122: #{decoder_forward.1} parent=111 // pred_check_branch
          %2653 = sbr.rel (%p2651) target = $region124
        $region123: #{decoder_forward.1} parent=111 // pred_region
          _
        $region124: #{decoder_forward.1} parent=111 // pred_fallthru
          _
        // Predicated region
        $region125: #{decoder_forward.1} parent=111 // pred_check
          %p2654 = pneg %p695
        $region126: #{decoder_forward.1} parent=111 // pred_check_branch
          %2656 = sbr.rel (%p2654) target = $region128
        $region127: #{decoder_forward.1} parent=111 // pred_region
          %s2658 = ssub.s32 128, 128
          %2659 = vsyncadd %s2647, %s2658
          %s2660 = smul.addr %s44, 2
          %s2661 = sadd.s32 %s43, %s2660
          %s2662 = smul.addr %s2661, 128
          %s2663 = scalar_lea.hbm %s24, %s2662
          %s2665 = sshll.u32 %s2650, 4
          %s2666 = int_to_ptr.vmem [resolvable:$true] %s2665
          %2668 = dma.vmem_to_hbm [thread:$0]  %s2666, 128, %s2663, %s2647
        $region128: #{decoder_forward.1} parent=111 // pred_fallthru
          _
      $region112: #{decoder_forward.1} parent=5 // pred_fallthru
        _
      %p2669 = scmp.le.s32.totalorder 2, %s34
      // Predicated region
      $region129: #{decoder_forward.1} parent=5 // pred_check
        %p2670 = pneg %p2669
      $region130: #{decoder_forward.1} parent=5 // pred_check_branch
        %2672 = sbr.rel (%p2670) target = $region132
      $region131: #{decoder_forward.1} parent=5 // pred_region
        %s2673 = ssub.s32 %s34, 2
        // Predicated region
        $region133: #{decoder_forward.1} parent=131 // pred_check
          %p2674 = pneg %p673
        $region134: #{decoder_forward.1} parent=131 // pred_check_branch
          %2676 = sbr.rel (%p2674) target = $region136
        $region135: #{decoder_forward.1} parent=131 // pred_region
          %p2677 = scmp.lt.s32.totalorder %s45, 1
          %s2678 = scalar_select %p2677, %s45, 1
          %s2679 = smul.addr %s2678, 8
          %s2680 = scalar_lea.vmem %s23, %s2679
        $region136: #{decoder_forward.1} parent=131 // pred_fallthru
          _
        // Predicated region
        $region137: #{decoder_forward.1} parent=131 // pred_check
          %p2681 = pneg %p701
        $region138: #{decoder_forward.1} parent=131 // pred_check_branch
          %2683 = sbr.rel (%p2681) target = $region140
        $region139: #{decoder_forward.1} parent=131 // pred_region
          %s2684 = sand.u32 %s686, 1
          %s2685 = scalar_lea.sflag [#allocation5], %s2684
          %s2686 = sand.u32 %s686, 1
          %s2687 = smul.addr %s2686, 8
          %s2688 = scalar_lea.vmem [#allocation4], %s2687
          %2689 = dma.done %s2685, 128
        $region140: #{decoder_forward.1} parent=131 // pred_fallthru
          _
      $region132: #{decoder_forward.1} parent=5 // pred_fallthru
        _
    $region6: #{decoder_forward.1} parent=1 // loop_footer
      %s38 = sadd.s32 1, %s34
    $region7: #{decoder_forward.1} parent=1 // loop_footer_branch
      %33 = sbr.rel target = $region3
    $region8: #{decoder_forward.1} parent=1 // loop_exit
      _
    %2690 = vsyncpa [#allocation5], 1
    %s2691 = scalar_lea.sflag [#allocation5], 1
    %2692 = vsyncpa %s2691, 1

</llo_original>
